<compile_context>
chip_gen: v7x
topology: tpu7x:2x2x1
jax: 0.10.0
libtpu: 0.0.40
codegen_flags: <defaults>
</compile_context>

<pallas_src>
import functools
import math

import jax
import jax.numpy as jnp
from jax import lax
from jax.experimental import pallas as pl
from jax.experimental.pallas import tpu as pltpu

_EPS = 1e-5      # nn.BatchNorm1d default eps
_C_PAD = 8       # tiny input-channel dim padded to one sublane tile


def _sinusoidal_time_embedding(ts, dim):
    """TimeEmbedding.forward: concat(sin(ts*f), cos(ts*f)), f = exp(-k*log(1e4)/(dim/2-1))."""
    assert dim % 2 == 0 and dim > 2, "embedding dim must be even and > 2"
    half = dim // 2
    freqs = jnp.exp(jnp.arange(half, dtype=jnp.float32) * (-math.log(10000.0) / (half - 1)))
    arg = ts.astype(jnp.float32)[:, None] * freqs[None, :]
    return jnp.concatenate([jnp.sin(arg), jnp.cos(arg)], axis=-1)


# ------------------------------------------------------------------------------------------------
# Stage 1: conv1 -> folded BN1 -> ReLU -> conv2(+bias) [+pos] -> per-group max -> split conv3,
#          plus whole-block masked partial sums for the BN2 statistics.  Fully vectorized.
# ------------------------------------------------------------------------------------------------
def _stage1_kernel(x_ref, mask_ref, w1_ref, scale1_ref, shift1_ref,
                   w2_ref, b2_ref, w3g_ref, w3l_ref, *rest, nt, s, has_pos):
    if has_pos:
        pos_ref, h3_ref, stats_ref = rest
    else:
        h3_ref, stats_ref = rest
        pos_ref = None
    rows = nt * s

    # conv1 (no bias, f32 -- K is tiny and must match the wrapper-side BN1 folding) + BN1 + ReLU.
    h1 = jnp.dot(x_ref[0], w1_ref[...], preferred_element_type=jnp.float32)
    h1 = jnp.maximum(h1 * scale1_ref[...] + shift1_ref[...], 0.0)              # (rows, 128) f32

    # conv2 (+bias): bf16 operands, f32 accumulation.
    h2 = jnp.dot(h1.astype(jnp.bfloat16), w2_ref[...],
                 preferred_element_type=jnp.float32) + b2_ref[...]              # (rows, 256) f32
    h2 = h2.reshape(nt, s, 256)                                                 # free sublane split
    if has_pos:
        h2 = h2 + pos_ref[...][None]                                            # broadcast over nt

    # per-group global feature (max over points; masked points included, like the reference).
    gmax = jnp.max(h2, axis=1)                                                   # (nt, 256)

    # split conv3: local half over all rows, global half once per group, bf16 operands.
    h3_loc = jnp.dot(h2.astype(jnp.bfloat16).reshape(rows, 256), w3l_ref[...],
                     preferred_element_type=jnp.float32).reshape(nt, s, 512)
    glob = jnp.dot(gmax.astype(jnp.bfloat16), w3g_ref[...],
                   preferred_element_type=jnp.float32)                           # (nt, 512)
    h3 = (h3_loc + glob[:, None, :]).reshape(rows, 512)                          # f32

    # masked partial sums for BN2 statistics, in f32, before the bf16 store.
    m = mask_ref[0]                                                              # (rows, 1) bf16 0/1
    hm = h3 * m
    s1 = jnp.sum(hm, axis=0, keepdims=True)                                      # (1, 512)
    s2 = jnp.sum(hm * h3, axis=0, keepdims=True)                                 # (1, 512)
    stats_ref[...] = jnp.concatenate(
        [s1, s2, jnp.zeros((6, 512), jnp.float32)], axis=0)[None]                # (1, 8, 512)

    h3_ref[...] = h3[None].astype(jnp.bfloat16)                                  # (1, rows, 512)


# ------------------------------------------------------------------------------------------------
# Stage 2: folded BN2 -> ReLU -> conv4(+bias, bf16 MXU) -> per-group max, fully vectorized.
# ------------------------------------------------------------------------------------------------
def _stage2_kernel(h3_ref, scale2_ref, shift2_ref, w4_ref, b4_ref, out_ref, *, nt, s):
    fdim = out_ref.shape[-1]
    h = h3_ref[0].astype(jnp.float32)                                            # (rows, 512)
    h = jnp.maximum(h * scale2_ref[...] + shift2_ref[...], 0.0)
    y = jnp.dot(h.astype(jnp.bfloat16), w4_ref[...],
                preferred_element_type=jnp.float32) + b4_ref[...]                # (rows, F) f32
    out_ref[...] = jnp.max(y.reshape(nt, s, fdim), axis=1)[None]                 # (1, nt, F)


def _choose_tile(n, s):
    """Largest divisor of n with nt*S <= ~1024 rows; keep >= 2 grid blocks when N >= 2 (megacore)."""
    cap = max(1, 1024 // max(s, 1))
    if n >= 2:
        cap = min(cap, max(1, n // 2))
    nt = 1
    for d in range(1, cap + 1):
        if n % d == 0:
            nt = d
    return nt


@functools.partial(jax.jit, static_argnames=("equivariant",))
def masked_mini_pointnet(points, mask, params, *, equivariant=False):
    """Forward pass of MaskedMiniPointNet.

    points : (B, G, S, C) or (N, S, C) grouped points.
    mask   : (B, G, S)    or (N, S)    validity mask (True = real point).
    params : dict from init_params(); 1x1 conv weights stored channels-last as (in, out).
    Returns (B, G, feature_dim) or (N, feature_dim).
    """
    reshape4 = points.ndim == 4
    if reshape4:
        B, G, S, C = points.shape
        points = points.reshape(B * G, S, C)
        mask = mask.reshape(B * G, S)
    N, S, C = points.shape
    x = points.astype(jnp.float32)
    maskf = mask.astype(jnp.float32)

    w1, gamma1, beta1 = params["w1"], params["bn1_gamma"], params["bn1_beta"]
    w2, b2 = params["w2"], params["b2"]
    w3 = params["w3"]
    gamma2, beta2 = params["bn2_gamma"], params["bn2_beta"]
    w4, b4 = params["w4"], params["b4"]
    feature_dim = w4.shape[1]
    hi = lax.Precision.HIGHEST

    nt = _choose_tile(N, S)
    nblk = N // nt
    rows = nt * S

    # ---- BN1 statistics (training-mode masked BN) via linearity of the bias-free conv1:
    #      mean(h1) = mean(x) @ W1,  E[h1^2]_j = sum_cd W1[c,j] W1[d,j] E[x_c x_d]  (masked moments).
    n_valid = jnp.sum(maskf)
    mean_x = jnp.einsum("nsc,ns->c", x, maskf, precision=hi) / n_valid
    m2_x = jnp.einsum("nsc,nsd,ns->cd", x, x, maskf, precision=hi) / n_valid
    mean1 = jnp.einsum("c,cj->j", mean_x, w1, precision=hi)
    var1 = jnp.einsum("cj,cd,dj->j", w1, m2_x, w1, precision=hi) - mean1 * mean1
    inv1 = lax.rsqrt(jnp.maximum(var1, 0.0) + _EPS)
    scale1 = (gamma1 * inv1)[None, :]
    shift1 = (beta1 - mean1 * gamma1 * inv1)[None, :]

    # ---- block-shaped inputs: (nblk, rows, .) so every BlockSpec's last dims equal the array dims.
    x3 = jnp.pad(x.reshape(N * S, C), ((0, 0), (0, _C_PAD - C))).reshape(nblk, rows, _C_PAD)
    w1p = jnp.pad(w1, ((0, _C_PAD - C), (0, 0)))
    mask3 = maskf.reshape(nblk, rows, 1).astype(jnp.bfloat16)     # 0/1 exact in bf16

    stage1_inputs = [x3, mask3, w1p, scale1, shift1,
                     w2.astype(jnp.bfloat16), b2[None, :],
                     w3[:256, :].astype(jnp.bfloat16), w3[256:, :].astype(jnp.bfloat16)]
    stage1_specs = [
        pl.BlockSpec((1, rows, _C_PAD), lambda i: (i, 0, 0)),
        pl.BlockSpec((1, rows, 1), lambda i: (i, 0, 0)),
        pl.BlockSpec((_C_PAD, 128), lambda i: (0, 0)),
        pl.BlockSpec((1, 128), lambda i: (0, 0)),
        pl.BlockSpec((1, 128), lambda i: (0, 0)),
        pl.BlockSpec((128, 256), lambda i: (0, 0)),
        pl.BlockSpec((1, 256), lambda i: (0, 0)),
        pl.BlockSpec((256, 512), lambda i: (0, 0)),
        pl.BlockSpec((256, 512), lambda i: (0, 0)),
    ]
    if equivariant:
        # PointOrderEncoder term (TimeEmbedding -> Linear -> ReLU): a single (S, 256) table,
        # broadcast inside the kernel — no (rows, 256) tiled constant.
        te = _sinusoidal_time_embedding(jnp.arange(S, dtype=jnp.float32), 256)
        pos = jnp.maximum(jnp.dot(te, params["pos_w"], precision=hi) + params["pos_b"], 0.0)
        stage1_inputs.append(pos)
        stage1_specs.append(pl.BlockSpec((S, 256), lambda i: (0, 0)))

    h3, stats = pl.pallas_call(
        functools.partial(_stage1_kernel, nt=nt, s=S, has_pos=equivariant),
        out_shape=(
            jax.ShapeDtypeStruct((nblk, rows, 512), jnp.bfloat16),   # h3 (pre-BN2), bf16 in HBM
            jax.ShapeDtypeStruct((nblk, 8, 512), jnp.float32),       # row0: sum(h3*m), row1: sum(h3^2*m)
        ),
        grid=(nblk,),
        in_specs=stage1_specs,
        out_specs=(
            pl.BlockSpec((1, rows, 512), lambda i: (i, 0, 0)),
            pl.BlockSpec((1, 8, 512), lambda i: (i, 0, 0)),
        ),
        compiler_params=pltpu.CompilerParams(
            dimension_semantics=("parallel",), vmem_limit_bytes=32 * 1024 * 1024),
    )(*stage1_inputs)

    # ---- BN2 statistics from the masked partial sums, folded into a per-channel scale/shift.
    mean2 = jnp.sum(stats[:, 0, :], axis=0) / n_valid
    var2 = jnp.sum(stats[:, 1, :], axis=0) / n_valid - mean2 * mean2
    inv2 = lax.rsqrt(jnp.maximum(var2, 0.0) + _EPS)
    scale2 = (gamma2 * inv2)[None, :]
    shift2 = (beta2 - mean2 * gamma2 * inv2)[None, :]

    out = pl.pallas_call(
        functools.partial(_stage2_kernel, nt=nt, s=S),
        out_shape=jax.ShapeDtypeStruct((nblk, nt, feature_dim), jnp.float32),
        grid=(nblk,),
        in_specs=[
            pl.BlockSpec((1, rows, 512), lambda i: (i, 0, 0)),
            pl.BlockSpec((1, 512), lambda i: (0, 0)),
            pl.BlockSpec((1, 512), lambda i: (0, 0)),
            pl.BlockSpec((512, feature_dim), lambda i: (0, 0)),
            pl.BlockSpec((1, feature_dim), lambda i: (0, 0)),
        ],
        out_specs=pl.BlockSpec((1, nt, feature_dim), lambda i: (i, 0, 0)),
        compiler_params=pltpu.CompilerParams(
            dimension_semantics=("parallel",), vmem_limit_bytes=32 * 1024 * 1024),
    )(h3, scale2, shift2, w4.astype(jnp.bfloat16), b4[None, :])

    out = out.reshape(N, feature_dim)
    if reshape4:
        out = out.reshape(B, G, feature_dim)
    return out


# ------------------------------------------------------------------------------------------------
# Pure-JAX reference mirroring the PyTorch forward (training-mode masked batch norm), all f32.
# ------------------------------------------------------------------------------------------------
def _reference(points, mask, params, *, equivariant=False):
    hi = lax.Precision.HIGHEST
    reshape4 = points.ndim == 4
    if reshape4:
        B, G, S, C = points.shape
        points = points.reshape(B * G, S, C)
        mask = mask.reshape(B * G, S)
    x = points.astype(jnp.float32)
    m = mask.astype(jnp.float32)
    S = x.shape[1]

    pm = (m / jnp.sum(m))[..., None]                              # "probability" mask (N, S, 1)

    def masked_bn(h, gamma, beta):
        mean = jnp.sum(h * pm, axis=(0, 1))
        var = jnp.sum(h * h * pm, axis=(0, 1)) - mean * mean      # biased variance
        return (h - mean) * lax.rsqrt(var + _EPS) * gamma + beta

    h = jnp.einsum("nsc,cj->nsj", x, params["w1"], precision=hi)              # conv1, no bias
    h = jnp.maximum(masked_bn(h, params["bn1_gamma"], params["bn1_beta"]), 0.0)
    h = jnp.einsum("nsj,jk->nsk", h, params["w2"], precision=hi) + params["b2"]
    if equivariant:
        te = _sinusoidal_time_embedding(jnp.arange(S, dtype=jnp.float32), 256)
        pos = jnp.maximum(jnp.dot(te, params["pos_w"], precision=hi) + params["pos_b"], 0.0)
        h = h + pos[None]
    g = jnp.max(h, axis=1, keepdims=True)                                     # (N, 1, 256)
    f = jnp.concatenate([jnp.broadcast_to(g, h.shape), h], axis=-1)           # (N, S, 512)
    h = jnp.einsum("nsk,kj->nsj", f, params["w3"], precision=hi)              # conv3, no bias
    h = jnp.maximum(masked_bn(h, params["bn2_gamma"], params["bn2_beta"]), 0.0)
    h = jnp.einsum("nsj,jf->nsf", h, params["w4"], precision=hi) + params["b4"]
    out = jnp.max(h, axis=1)
    if reshape4:
        out = out.reshape(B, G, -1)
    return out


def init_params(key, channels, feature_dim):
    ks = jax.random.split(key, 12)
    norm = lambda k, shape: jax.random.normal(k, shape, jnp.float32)
    return {
        "w1": norm(ks[0], (channels, 128)) / math.sqrt(channels),
        "bn1_gamma": 1.0 + 0.1 * norm(ks[1], (128,)),
        "bn1_beta": 0.1 * norm(ks[2], (128,)),
        "w2": norm(ks[3], (128, 256)) / math.sqrt(128),
        "b2": 0.1 * norm(ks[4], (256,)),
        "w3": norm(ks[5], (512, 512)) / math.sqrt(512),
        "bn2_gamma": 1.0 + 0.1 * norm(ks[6], (512,)),
        "bn2_beta": 0.1 * norm(ks[7], (512,)),
        "w4": norm(ks[8], (512, feature_dim)) / math.sqrt(512),
        "b4": 0.1 * norm(ks[9], (feature_dim,)),
        # PointOrderEncoder Linear(256, 256) — only used when equivariant=True.
        "pos_w": norm(ks[10], (256, 256)) / math.sqrt(256),
        "pos_b": 0.1 * norm(ks[11], (256,)),
    }


if __name__ == "__main__":
    key = jax.random.PRNGKey(0)
    k_pts, k_mask, k_par = jax.random.split(key, 3)

    B, G, S, C = 2, 4, 32, 4
    FEATURE_DIM = 256

    points = jax.random.normal(k_pts, (B, G, S, C), jnp.float32)
    mask = jax.random.bernoulli(k_mask, 0.8, (B, G, S))
    params = init_params(k_par, C, FEATURE_DIM)

    for equivariant in (False, True):
        out = jax.block_until_ready(
            masked_mini_pointnet(points, mask, params, equivariant=equivariant))
        ref = jax.block_until_ready(
            _reference(points, mask, params, equivariant=equivariant))
        assert out.shape == (B, G, FEATURE_DIM), out.shape
        # bf16 MXU operands vs the all-f32 reference: allow a slightly looser tolerance.
        assert jnp.allclose(out, ref, atol=2e-2, rtol=2e-2), float(jnp.max(jnp.abs(out - ref)))

    print("KERNEL_OK")
</pallas_src>

<mosaic_0001>
module attributes {stable_mosaic.version = 11 : i64} {
  func.func @_stage1_kernel(%arg0: i32, %arg1: memref<1x128x8xf32, #tpu.memory_space<vmem>>, %arg2: memref<1x128x1xbf16, #tpu.memory_space<vmem>>, %arg3: memref<8x128xf32, #tpu.memory_space<vmem>>, %arg4: memref<1x128xf32, #tpu.memory_space<vmem>>, %arg5: memref<1x128xf32, #tpu.memory_space<vmem>>, %arg6: memref<128x256xbf16, #tpu.memory_space<vmem>>, %arg7: memref<1x256xf32, #tpu.memory_space<vmem>>, %arg8: memref<256x512xbf16, #tpu.memory_space<vmem>>, %arg9: memref<256x512xbf16, #tpu.memory_space<vmem>>, %arg10: memref<1x128x512xbf16, #tpu.memory_space<vmem>>, %arg11: memref<1x8x512xf32, #tpu.memory_space<vmem>>) attributes {dimension_semantics = [#tpu.dimension_semantics<parallel>], iteration_bounds = array<i64: 2>, scalar_prefetch = 0 : i64, scratch_operands = 0 : i64, tpu.core_type = #tpu.core_type<tc>, window_params = [{transform_indices = @transform_0, window_bounds = array<i64: 1, 128, 8>}, {transform_indices = @transform_1, window_bounds = array<i64: 1, 128, 1>}, {pipeline_mode = #tpu.pipeline_mode<synchronous>, transform_indices = @transform_2, window_bounds = array<i64: 8, 128>}, {pipeline_mode = #tpu.pipeline_mode<synchronous>, transform_indices = @transform_3, window_bounds = array<i64: 1, 128>}, {pipeline_mode = #tpu.pipeline_mode<synchronous>, transform_indices = @transform_4, window_bounds = array<i64: 1, 128>}, {pipeline_mode = #tpu.pipeline_mode<synchronous>, transform_indices = @transform_5, window_bounds = array<i64: 128, 256>}, {pipeline_mode = #tpu.pipeline_mode<synchronous>, transform_indices = @transform_6, window_bounds = array<i64: 1, 256>}, {pipeline_mode = #tpu.pipeline_mode<synchronous>, transform_indices = @transform_7, window_bounds = array<i64: 256, 512>}, {pipeline_mode = #tpu.pipeline_mode<synchronous>, transform_indices = @transform_8, window_bounds = array<i64: 256, 512>}, {transform_indices = @transform_9, window_bounds = array<i64: 1, 128, 512>}, {transform_indices = @transform_10, window_bounds = array<i64: 1, 8, 512>}]} {
    %c0 = arith.constant 0 : index
    %c0_0 = arith.constant 0 : index
    %c0_1 = arith.constant 0 : index
    %0 = vector.load %arg1[%c0, %c0_0, %c0_1] : memref<1x128x8xf32, #tpu.memory_space<vmem>>, vector<1x128x8xf32>
    %1 = vector.shape_cast %0 : vector<1x128x8xf32> to vector<128x8xf32>
    %c0_2 = arith.constant 0 : index
    %c0_3 = arith.constant 0 : index
    %2 = vector.load %arg3[%c0_2, %c0_3] : memref<8x128xf32, #tpu.memory_space<vmem>>, vector<8x128xf32>
    %cst = arith.constant dense<0.000000e+00> : vector<128x128xf32>
    %3 = tpu.matmul %1, %2, %cst {dimension_numbers = #tpu.dot_dimension_numbers<[1], [0], [0], [1], [0, 0, 1, 1], [], []>} : vector<128x8xf32>, vector<8x128xf32>, vector<128x128xf32> -> vector<128x128xf32>
    %c0_4 = arith.constant 0 : index
    %c0_5 = arith.constant 0 : index
    %4 = vector.load %arg4[%c0_4, %c0_5] : memref<1x128xf32, #tpu.memory_space<vmem>>, vector<1x128xf32>
    %5 = vector.broadcast %4 : vector<1x128xf32> to vector<128x128xf32>
    %6 = arith.mulf %3, %5 : vector<128x128xf32>
    %c0_6 = arith.constant 0 : index
    %c0_7 = arith.constant 0 : index
    %7 = vector.load %arg5[%c0_6, %c0_7] : memref<1x128xf32, #tpu.memory_space<vmem>>, vector<1x128xf32>
    %8 = vector.broadcast %7 : vector<1x128xf32> to vector<128x128xf32>
    %9 = arith.addf %6, %8 : vector<128x128xf32>
    %cst_8 = arith.constant 0.000000e+00 : f32
    %10 = vector.broadcast %cst_8 : f32 to vector<128x128xf32>
    %11 = arith.maximumf %9, %10 : vector<128x128xf32>
    %12 = arith.truncf %11 : vector<128x128xf32> to vector<128x128xbf16>
    %c0_9 = arith.constant 0 : index
    %c0_10 = arith.constant 0 : index
    %13 = vector.load %arg6[%c0_9, %c0_10] : memref<128x256xbf16, #tpu.memory_space<vmem>>, vector<128x256xbf16>
    %cst_11 = arith.constant dense<0.000000e+00> : vector<128x256xf32>
    %14 = tpu.matmul %12, %13, %cst_11 {dimension_numbers = #tpu.dot_dimension_numbers<[1], [0], [0], [1], [0, 0, 1, 1], [], []>} : vector<128x128xbf16>, vector<128x256xbf16>, vector<128x256xf32> -> vector<128x256xf32>
    %c0_12 = arith.constant 0 : index
    %c0_13 = arith.constant 0 : index
    %15 = vector.load %arg7[%c0_12, %c0_13] : memref<1x256xf32, #tpu.memory_space<vmem>>, vector<1x256xf32>
    %16 = vector.broadcast %15 : vector<1x256xf32> to vector<128x256xf32>
    %17 = arith.addf %14, %16 : vector<128x256xf32>
    %18 = vector.shape_cast %17 : vector<128x256xf32> to vector<4x32x256xf32>
    %cst_14 = arith.constant dense<0xFF800000> : vector<4x256xf32>
    %19 = vector.multi_reduction <maximumf>, %18, %cst_14 [1] : vector<4x32x256xf32> to vector<4x256xf32>
    %20 = arith.truncf %18 : vector<4x32x256xf32> to vector<4x32x256xbf16>
    %21 = vector.shape_cast %20 : vector<4x32x256xbf16> to vector<128x256xbf16>
    %c0_15 = arith.constant 0 : index
    %c0_16 = arith.constant 0 : index
    %22 = vector.load %arg9[%c0_15, %c0_16] : memref<256x512xbf16, #tpu.memory_space<vmem>>, vector<256x512xbf16>
    %cst_17 = arith.constant dense<0.000000e+00> : vector<128x512xf32>
    %23 = tpu.matmul %21, %22, %cst_17 {dimension_numbers = #tpu.dot_dimension_numbers<[1], [0], [0], [1], [0, 0, 1, 1], [], []>} : vector<128x256xbf16>, vector<256x512xbf16>, vector<128x512xf32> -> vector<128x512xf32>
    %24 = vector.shape_cast %23 : vector<128x512xf32> to vector<4x32x512xf32>
    %25 = arith.truncf %19 : vector<4x256xf32> to vector<4x256xbf16>
    %c0_18 = arith.constant 0 : index
    %c0_19 = arith.constant 0 : index
    %26 = vector.load %arg8[%c0_18, %c0_19] : memref<256x512xbf16, #tpu.memory_space<vmem>>, vector<256x512xbf16>
    %cst_20 = arith.constant dense<0.000000e+00> : vector<4x512xf32>
    %27 = tpu.matmul %25, %26, %cst_20 {dimension_numbers = #tpu.dot_dimension_numbers<[1], [0], [0], [1], [0, 0, 1, 1], [], []>} : vector<4x256xbf16>, vector<256x512xbf16>, vector<4x512xf32> -> vector<4x512xf32>
    %28 = vector.shape_cast %27 : vector<4x512xf32> to vector<4x1x512xf32>
    %29 = vector.broadcast %28 : vector<4x1x512xf32> to vector<4x32x512xf32>
    %30 = arith.addf %24, %29 : vector<4x32x512xf32>
    %31 = vector.shape_cast %30 : vector<4x32x512xf32> to vector<128x512xf32>
    %c0_21 = arith.constant 0 : index
    %c0_22 = arith.constant 0 : index
    %c0_23 = arith.constant 0 : index
    %32 = vector.load %arg2[%c0_21, %c0_22, %c0_23] : memref<1x128x1xbf16, #tpu.memory_space<vmem>>, vector<1x128x1xbf16>
    %33 = vector.shape_cast %32 : vector<1x128x1xbf16> to vector<128x1xbf16>
    %34 = arith.extf %33 : vector<128x1xbf16> to vector<128x1xf32>
    %35 = vector.broadcast %34 : vector<128x1xf32> to vector<128x512xf32>
    %36 = arith.mulf %31, %35 : vector<128x512xf32>
    %cst_24 = arith.constant dense<0.000000e+00> : vector<512xf32>
    %37 = vector.multi_reduction <add>, %36, %cst_24 [0] : vector<128x512xf32> to vector<512xf32>
    %38 = vector.shape_cast %37 : vector<512xf32> to vector<1x512xf32>
    %39 = arith.mulf %36, %31 : vector<128x512xf32>
    %cst_25 = arith.constant dense<0.000000e+00> : vector<512xf32>
    %40 = vector.multi_reduction <add>, %39, %cst_25 [0] : vector<128x512xf32> to vector<512xf32>
    %41 = vector.shape_cast %40 : vector<512xf32> to vector<1x512xf32>
    %cst_26 = arith.constant 0.000000e+00 : f32
    %42 = vector.broadcast %cst_26 : f32 to vector<6x512xf32>
    %43 = tpu.concatenate %38, %41, %42 in 0 : vector<1x512xf32>, vector<1x512xf32>, vector<6x512xf32> -> vector<8x512xf32>
    %44 = vector.shape_cast %43 : vector<8x512xf32> to vector<1x8x512xf32>
    %c0_27 = arith.constant 0 : index
    %c0_28 = arith.constant 0 : index
    %c0_29 = arith.constant 0 : index
    %45 = vector.load %arg11[%c0_27, %c0_28, %c0_29] : memref<1x8x512xf32, #tpu.memory_space<vmem>>, vector<1x8x512xf32>
    tpu.vector_store %arg11[%c0_27, %c0_28, %c0_29], %44 {strides = array<i32>} : memref<1x8x512xf32, #tpu.memory_space<vmem>>, vector<1x8x512xf32>,
    %46 = vector.shape_cast %31 : vector<128x512xf32> to vector<1x128x512xf32>
    %47 = arith.truncf %46 : vector<1x128x512xf32> to vector<1x128x512xbf16>
    %c0_30 = arith.constant 0 : index
    %c0_31 = arith.constant 0 : index
    %c0_32 = arith.constant 0 : index
    %48 = vector.load %arg10[%c0_30, %c0_31, %c0_32] : memref<1x128x512xbf16, #tpu.memory_space<vmem>>, vector<1x128x512xbf16>
    tpu.vector_store %arg10[%c0_30, %c0_31, %c0_32], %47 {strides = array<i32>} : memref<1x128x512xbf16, #tpu.memory_space<vmem>>, vector<1x128x512xbf16>,
    return
  }
  func.func @transform_0(%arg0: i32) -> (i32, i32, i32) {
    %c0_i32 = arith.constant 0 : i32
    %c0_i32_0 = arith.constant 0 : i32
    %c0_i32_1 = arith.constant 0 : i32
    return %arg0, %c0_i32, %c0_i32_0 : i32, i32, i32
  }
  func.func @transform_1(%arg0: i32) -> (i32, i32, i32) {
    %c0_i32 = arith.constant 0 : i32
    %c0_i32_0 = arith.constant 0 : i32
    %c0_i32_1 = arith.constant 0 : i32
    return %arg0, %c0_i32, %c0_i32_0 : i32, i32, i32
  }
  func.func @transform_2(%arg0: i32) -> (i32, i32) {
    %c0_i32 = arith.constant 0 : i32
    %c0_i32_0 = arith.constant 0 : i32
    %c0_i32_1 = arith.constant 0 : i32
    return %c0_i32, %c0_i32_0 : i32, i32
  }
  func.func @transform_3(%arg0: i32) -> (i32, i32) {
    %c0_i32 = arith.constant 0 : i32
    %c0_i32_0 = arith.constant 0 : i32
    %c0_i32_1 = arith.constant 0 : i32
    return %c0_i32, %c0_i32_0 : i32, i32
  }
  func.func @transform_4(%arg0: i32) -> (i32, i32) {
    %c0_i32 = arith.constant 0 : i32
    %c0_i32_0 = arith.constant 0 : i32
    %c0_i32_1 = arith.constant 0 : i32
    return %c0_i32, %c0_i32_0 : i32, i32
  }
  func.func @transform_5(%arg0: i32) -> (i32, i32) {
    %c0_i32 = arith.constant 0 : i32
    %c0_i32_0 = arith.constant 0 : i32
    %c0_i32_1 = arith.constant 0 : i32
    return %c0_i32, %c0_i32_0 : i32, i32
  }
  func.func @transform_6(%arg0: i32) -> (i32, i32) {
    %c0_i32 = arith.constant 0 : i32
    %c0_i32_0 = arith.constant 0 : i32
    %c0_i32_1 = arith.constant 0 : i32
    return %c0_i32, %c0_i32_0 : i32, i32
  }
  func.func @transform_7(%arg0: i32) -> (i32, i32) {
    %c0_i32 = arith.constant 0 : i32
    %c0_i32_0 = arith.constant 0 : i32
    %c0_i32_1 = arith.constant 0 : i32
    return %c0_i32, %c0_i32_0 : i32, i32
  }
  func.func @transform_8(%arg0: i32) -> (i32, i32) {
    %c0_i32 = arith.constant 0 : i32
    %c0_i32_0 = arith.constant 0 : i32
    %c0_i32_1 = arith.constant 0 : i32
    return %c0_i32, %c0_i32_0 : i32, i32
  }
  func.func @transform_9(%arg0: i32) -> (i32, i32, i32) {
    %c0_i32 = arith.constant 0 : i32
    %c0_i32_0 = arith.constant 0 : i32
    %c0_i32_1 = arith.constant 0 : i32
    return %arg0, %c0_i32, %c0_i32_0 : i32, i32, i32
  }
  func.func @transform_10(%arg0: i32) -> (i32, i32, i32) {
    %c0_i32 = arith.constant 0 : i32
    %c0_i32_0 = arith.constant 0 : i32
    %c0_i32_1 = arith.constant 0 : i32
    return %arg0, %c0_i32, %c0_i32_0 : i32, i32, i32
  }
}

module attributes {stable_mosaic.version = 11 : i64} {
  func.func @_stage2_kernel(%arg0: i32, %arg1: memref<1x128x512xbf16, #tpu.memory_space<vmem>>, %arg2: memref<1x512xf32, #tpu.memory_space<vmem>>, %arg3: memref<1x512xf32, #tpu.memory_space<vmem>>, %arg4: memref<512x256xbf16, #tpu.memory_space<vmem>>, %arg5: memref<1x256xf32, #tpu.memory_space<vmem>>, %arg6: memref<1x4x256xf32, #tpu.memory_space<vmem>>) attributes {dimension_semantics = [#tpu.dimension_semantics<parallel>], iteration_bounds = array<i64: 2>, scalar_prefetch = 0 : i64, scratch_operands = 0 : i64, tpu.core_type = #tpu.core_type<tc>, window_params = [{transform_indices = @transform_0, window_bounds = array<i64: 1, 128, 512>}, {pipeline_mode = #tpu.pipeline_mode<synchronous>, transform_indices = @transform_1, window_bounds = array<i64: 1, 512>}, {pipeline_mode = #tpu.pipeline_mode<synchronous>, transform_indices = @transform_2, window_bounds = array<i64: 1, 512>}, {pipeline_mode = #tpu.pipeline_mode<synchronous>, transform_indices = @transform_3, window_bounds = array<i64: 512, 256>}, {pipeline_mode = #tpu.pipeline_mode<synchronous>, transform_indices = @transform_4, window_bounds = array<i64: 1, 256>}, {transform_indices = @transform_5, window_bounds = array<i64: 1, 4, 256>}]} {
    %c0 = arith.constant 0 : index
    %c0_0 = arith.constant 0 : index
    %c0_1 = arith.constant 0 : index
    %0 = vector.load %arg1[%c0, %c0_0, %c0_1] : memref<1x128x512xbf16, #tpu.memory_space<vmem>>, vector<1x128x512xbf16>
    %1 = vector.shape_cast %0 : vector<1x128x512xbf16> to vector<128x512xbf16>
    %2 = arith.extf %1 : vector<128x512xbf16> to vector<128x512xf32>
    %c0_2 = arith.constant 0 : index
    %c0_3 = arith.constant 0 : index
    %3 = vector.load %arg2[%c0_2, %c0_3] : memref<1x512xf32, #tpu.memory_space<vmem>>, vector<1x512xf32>
    %4 = vector.broadcast %3 : vector<1x512xf32> to vector<128x512xf32>
    %5 = arith.mulf %2, %4 : vector<128x512xf32>
    %c0_4 = arith.constant 0 : index
    %c0_5 = arith.constant 0 : index
    %6 = vector.load %arg3[%c0_4, %c0_5] : memref<1x512xf32, #tpu.memory_space<vmem>>, vector<1x512xf32>
    %7 = vector.broadcast %6 : vector<1x512xf32> to vector<128x512xf32>
    %8 = arith.addf %5, %7 : vector<128x512xf32>
    %cst = arith.constant 0.000000e+00 : f32
    %9 = vector.broadcast %cst : f32 to vector<128x512xf32>
    %10 = arith.maximumf %8, %9 : vector<128x512xf32>
    %11 = arith.truncf %10 : vector<128x512xf32> to vector<128x512xbf16>
    %c0_6 = arith.constant 0 : index
    %c0_7 = arith.constant 0 : index
    %12 = vector.load %arg4[%c0_6, %c0_7] : memref<512x256xbf16, #tpu.memory_space<vmem>>, vector<512x256xbf16>
    %cst_8 = arith.constant dense<0.000000e+00> : vector<128x256xf32>
    %13 = tpu.matmul %11, %12, %cst_8 {dimension_numbers = #tpu.dot_dimension_numbers<[1], [0], [0], [1], [0, 0, 1, 1], [], []>} : vector<128x512xbf16>, vector<512x256xbf16>, vector<128x256xf32> -> vector<128x256xf32>
    %c0_9 = arith.constant 0 : index
    %c0_10 = arith.constant 0 : index
    %14 = vector.load %arg5[%c0_9, %c0_10] : memref<1x256xf32, #tpu.memory_space<vmem>>, vector<1x256xf32>
    %15 = vector.broadcast %14 : vector<1x256xf32> to vector<128x256xf32>
    %16 = arith.addf %13, %15 : vector<128x256xf32>
    %17 = vector.shape_cast %16 : vector<128x256xf32> to vector<4x32x256xf32>
    %cst_11 = arith.constant dense<0xFF800000> : vector<4x256xf32>
    %18 = vector.multi_reduction <maximumf>, %17, %cst_11 [1] : vector<4x32x256xf32> to vector<4x256xf32>
    %19 = vector.shape_cast %18 : vector<4x256xf32> to vector<1x4x256xf32>
    %c0_12 = arith.constant 0 : index
    %c0_13 = arith.constant 0 : index
    %c0_14 = arith.constant 0 : index
    %20 = vector.load %arg6[%c0_12, %c0_13, %c0_14] : memref<1x4x256xf32, #tpu.memory_space<vmem>>, vector<1x4x256xf32>
    tpu.vector_store %arg6[%c0_12, %c0_13, %c0_14], %19 {strides = array<i32>} : memref<1x4x256xf32, #tpu.memory_space<vmem>>, vector<1x4x256xf32>,
    return
  }
  func.func @transform_0(%arg0: i32) -> (i32, i32, i32) {
    %c0_i32 = arith.constant 0 : i32
    %c0_i32_0 = arith.constant 0 : i32
    %c0_i32_1 = arith.constant 0 : i32
    return %arg0, %c0_i32, %c0_i32_0 : i32, i32, i32
  }
  func.func @transform_1(%arg0: i32) -> (i32, i32) {
    %c0_i32 = arith.constant 0 : i32
    %c0_i32_0 = arith.constant 0 : i32
    %c0_i32_1 = arith.constant 0 : i32
    return %c0_i32, %c0_i32_0 : i32, i32
  }
  func.func @transform_2(%arg0: i32) -> (i32, i32) {
    %c0_i32 = arith.constant 0 : i32
    %c0_i32_0 = arith.constant 0 : i32
    %c0_i32_1 = arith.constant 0 : i32
    return %c0_i32, %c0_i32_0 : i32, i32
  }
  func.func @transform_3(%arg0: i32) -> (i32, i32) {
    %c0_i32 = arith.constant 0 : i32
    %c0_i32_0 = arith.constant 0 : i32
    %c0_i32_1 = arith.constant 0 : i32
    return %c0_i32, %c0_i32_0 : i32, i32
  }
  func.func @transform_4(%arg0: i32) -> (i32, i32) {
    %c0_i32 = arith.constant 0 : i32
    %c0_i32_0 = arith.constant 0 : i32
    %c0_i32_1 = arith.constant 0 : i32
    return %c0_i32, %c0_i32_0 : i32, i32
  }
  func.func @transform_5(%arg0: i32) -> (i32, i32, i32) {
    %c0_i32 = arith.constant 0 : i32
    %c0_i32_0 = arith.constant 0 : i32
    %c0_i32_1 = arith.constant 0 : i32
    return %arg0, %c0_i32, %c0_i32_0 : i32, i32, i32
  }
}

</mosaic_0001>

<llo_original>
// kernel: masked_mini_pointnet.3
$region0: #{masked_mini_pointnet.3}
  #allocation0 [shape = 'u32[]', space=smem, size = 0x4, offset = 0x4, fixed_abs, tag = 'smem constant byte address 0x4 - core index']
  #allocation1 [shape = 'u32[144,128]{1,0:T(1,128)}', space=vmem, size = 0x12000, scoped, tag = 'internal scratch']
  %s0 = inlined_call_operand.vmem [shape: bf16[2,128,512], index: 0, kind: input, shape index: {}]
  %s1 = inlined_call_operand.vmem [shape: f32[1,512], index: 1, kind: input, shape index: {}]
  %s2 = inlined_call_operand.vmem [shape: f32[1,512], index: 2, kind: input, shape index: {}]
  %s3 = inlined_call_operand.vmem [shape: bf16[512,256], index: 3, kind: input, shape index: {}]
  %s4 = inlined_call_operand.vmem [shape: f32[1,256], index: 4, kind: input, shape index: {}]
  %s5 = inlined_call_operand.hbm [shape: f32[2,4,256], index: 5, kind: output, shape index: {}]
  %s6 = sld [smem:[#allocation0]]
  $region53: #{masked_mini_pointnet.3} parent=0
    _
  %s8 = ssub.s32 1, %s6
  %s9 = scalar_select 0, %s8, %s6
  $region1: #{masked_mini_pointnet.3} parent=0
    #allocation2 [shape = 'u8[8192]{0}', space=vmem, size = 0x2000, scoped, tag = 'output window, operand 0']
    #allocation3 [shape = 's32[2]{0}', space=sflag, size = 0x8, scoped, tag = 'scoped memory for masked_mini_pointnet.3']
    %10 = vsyncpa [#allocation3], 0
    %s11 = scalar_lea.sflag [#allocation3], 1
    %12 = vsyncpa %s11, 0
    loop: start=0, step=1, limit=4
    $region2: #{masked_mini_pointnet.3} parent=1 // loop_pre_header
      _
    $region3: #{masked_mini_pointnet.3} parent=1 // loop_header
      %s14 = sphi 0, %s18
      %p15 = scmp.ge.s32.totalorder %s14, 4
      %s24 = sphi 0, %s26
      %s27 = sphi 0, %s24
      %s28 = sphi 0, %s27
      %s44 = sphi 0, %s28
      %s48 = sphi 0, %s48
      %s50 = sphi 0, %s48
      %s51 = sphi 0, %s50
      %s65 = sphi 0, %s51
      %s69 = sphi 0, %s69
      %s71 = sphi 0, %s69
      %s72 = sphi 0, %s71
      %s86 = sphi 0, %s72
      %s90 = sphi 0, %s90
      %s92 = sphi 0, %s90
      %s93 = sphi 0, %s92
      %s107 = sphi 0, %s93
      %s111 = sphi 0, %s111
      %s113 = sphi 0, %s111
      %s114 = sphi 0, %s113
      %s128 = sphi 0, %s114
      %s134 = sphi 0, %s136
      %s137 = sphi 0, %s134
      %s138 = sphi 0, %s137
      %s154 = sphi 0, %s138
    $region4: #{masked_mini_pointnet.3} parent=1 // loop_header_branch
      %17 = sbr.rel (%p15) target = $region8
    $region5: #{masked_mini_pointnet.3} parent=1 // loop_body
      %s19 = ssub.s32 %s14, 1
      %s20 = ssub.s32 %s14, 2
      %s21 = sadd.s32 %s14, 1
      %s22 = ssub.s32 %s14, %s21
      %p23 = scmp.eq.s32.totalorder %s22, 0
      %s25 = sadd.s32 %s24, 1
      %s26 = scalar_select %p23, %s24, %s25
      %p29 = pneg %p23
      %p30 = scmp.eq.s32.totalorder %s14, 1
      %p31 = por %p29, %p30
      %p32 = scmp.ne.s32.totalorder %s24, %s27
      %p33 = scmp.eq.s32.totalorder %s14, 0
      %p34 = por %p32, %p33
      %p35 = scmp.ne.s32.totalorder %s24, %s27
      %p36 = scmp.eq.s32.totalorder %s19, 1
      %p37 = por %p35, %p36
      %p38 = scmp.ne.s32.totalorder %s27, %s28
      %p39 = scmp.eq.s32.totalorder %s19, 0
      %p40 = por %p38, %p39
      %p41 = scmp.ne.s32.totalorder %s27, %s28
      %p42 = scmp.eq.s32.totalorder %s20, 1
      %p43 = por %p41, %p42
      %p45 = scmp.ne.s32.totalorder %s28, %s44
      %p46 = scmp.eq.s32.totalorder %s20, 0
      %p47 = por %p45, %p46
      %s49 = sadd.s32 %s48, 1
      %p52 = scmp.eq.s32.totalorder %s14, 1
      %p53 = scmp.ne.s32.totalorder %s48, %s50
      %p54 = scmp.eq.s32.totalorder %s14, 0
      %p55 = por %p53, %p54
      %p56 = scmp.ne.s32.totalorder %s48, %s50
      %p57 = scmp.eq.s32.totalorder %s19, 1
      %p58 = por %p56, %p57
      %p59 = scmp.ne.s32.totalorder %s50, %s51
      %p60 = scmp.eq.s32.totalorder %s19, 0
      %p61 = por %p59, %p60
      %p62 = scmp.ne.s32.totalorder %s50, %s51
      %p63 = scmp.eq.s32.totalorder %s20, 1
      %p64 = por %p62, %p63
      %p66 = scmp.ne.s32.totalorder %s51, %s65
      %p67 = scmp.eq.s32.totalorder %s20, 0
      %p68 = por %p66, %p67
      %s70 = sadd.s32 %s69, 1
      %p73 = scmp.eq.s32.totalorder %s14, 1
      %p74 = scmp.ne.s32.totalorder %s69, %s71
      %p75 = scmp.eq.s32.totalorder %s14, 0
      %p76 = por %p74, %p75
      %p77 = scmp.ne.s32.totalorder %s69, %s71
      %p78 = scmp.eq.s32.totalorder %s19, 1
      %p79 = por %p77, %p78
      %p80 = scmp.ne.s32.totalorder %s71, %s72
      %p81 = scmp.eq.s32.totalorder %s19, 0
      %p82 = por %p80, %p81
      %p83 = scmp.ne.s32.totalorder %s71, %s72
      %p84 = scmp.eq.s32.totalorder %s20, 1
      %p85 = por %p83, %p84
      %p87 = scmp.ne.s32.totalorder %s72, %s86
      %p88 = scmp.eq.s32.totalorder %s20, 0
      %p89 = por %p87, %p88
      %s91 = sadd.s32 %s90, 1
      %p94 = scmp.eq.s32.totalorder %s14, 1
      %p95 = scmp.ne.s32.totalorder %s90, %s92
      %p96 = scmp.eq.s32.totalorder %s14, 0
      %p97 = por %p95, %p96
      %p98 = scmp.ne.s32.totalorder %s90, %s92
      %p99 = scmp.eq.s32.totalorder %s19, 1
      %p100 = por %p98, %p99
      %p101 = scmp.ne.s32.totalorder %s92, %s93
      %p102 = scmp.eq.s32.totalorder %s19, 0
      %p103 = por %p101, %p102
      %p104 = scmp.ne.s32.totalorder %s92, %s93
      %p105 = scmp.eq.s32.totalorder %s20, 1
      %p106 = por %p104, %p105
      %p108 = scmp.ne.s32.totalorder %s93, %s107
      %p109 = scmp.eq.s32.totalorder %s20, 0
      %p110 = por %p108, %p109
      %s112 = sadd.s32 %s111, 1
      %p115 = scmp.eq.s32.totalorder %s14, 1
      %p116 = scmp.ne.s32.totalorder %s111, %s113
      %p117 = scmp.eq.s32.totalorder %s14, 0
      %p118 = por %p116, %p117
      %p119 = scmp.ne.s32.totalorder %s111, %s113
      %p120 = scmp.eq.s32.totalorder %s19, 1
      %p121 = por %p119, %p120
      %p122 = scmp.ne.s32.totalorder %s113, %s114
      %p123 = scmp.eq.s32.totalorder %s19, 0
      %p124 = por %p122, %p123
      %p125 = scmp.ne.s32.totalorder %s113, %s114
      %p126 = scmp.eq.s32.totalorder %s20, 1
      %p127 = por %p125, %p126
      %p129 = scmp.ne.s32.totalorder %s114, %s128
      %p130 = scmp.eq.s32.totalorder %s20, 0
      %p131 = por %p129, %p130
      %s132 = ssub.s32 %s14, %s21
      %p133 = scmp.eq.s32.totalorder %s132, 0
      %s135 = sadd.s32 %s134, 1
      %s136 = scalar_select %p133, %s134, %s135
      %p139 = pneg %p133
      %p140 = scmp.eq.s32.totalorder %s14, 1
      %p141 = por %p139, %p140
      %p142 = scmp.ne.s32.totalorder %s134, %s137
      %p143 = scmp.eq.s32.totalorder %s14, 0
      %p144 = por %p142, %p143
      %p145 = scmp.ne.s32.totalorder %s134, %s137
      %p146 = scmp.eq.s32.totalorder %s19, 1
      %p147 = por %p145, %p146
      %p148 = scmp.ne.s32.totalorder %s137, %s138
      %p149 = scmp.eq.s32.totalorder %s19, 0
      %p150 = por %p148, %p149
      %p151 = scmp.ne.s32.totalorder %s137, %s138
      %p152 = scmp.eq.s32.totalorder %s20, 1
      %p153 = por %p151, %p152
      %p155 = scmp.ne.s32.totalorder %s138, %s154
      %p156 = scmp.eq.s32.totalorder %s20, 0
      %p157 = por %p155, %p156
      %p158 = scmp.le.s32.totalorder 1, %s14
      %p159 = scmp.lt.s32.totalorder %s14, 3
      %p160 = pnand %p158, %p159
      %p161 = pneg %p160
      // Predicated region
      $region9: #{masked_mini_pointnet.3} parent=5 // pred_check
        _
      $region10: #{masked_mini_pointnet.3} parent=5 // pred_check_branch
        %163 = sbr.rel (%p160) target = $region12
      $region11: #{masked_mini_pointnet.3} parent=5 // pred_region
        %s164 = ssub.s32 %s14, 1
        // Predicated region
        $region13: #{masked_mini_pointnet.3} parent=11 // pred_check
          %p165 = pneg %p61
        $region14: #{masked_mini_pointnet.3} parent=11 // pred_check_branch
          %167 = sbr.rel (%p165) target = $region16
        $region15: #{masked_mini_pointnet.3} parent=11 // pred_region
          _
        $region16: #{masked_mini_pointnet.3} parent=11 // pred_fallthru
          _
        // Predicated region
        $region17: #{masked_mini_pointnet.3} parent=11 // pred_check
          %p168 = pneg %p82
        $region18: #{masked_mini_pointnet.3} parent=11 // pred_check_branch
          %170 = sbr.rel (%p168) target = $region20
        $region19: #{masked_mini_pointnet.3} parent=11 // pred_region
          _
        $region20: #{masked_mini_pointnet.3} parent=11 // pred_fallthru
          _
        // Predicated region
        $region21: #{masked_mini_pointnet.3} parent=11 // pred_check
          %p171 = pneg %p103
        $region22: #{masked_mini_pointnet.3} parent=11 // pred_check_branch
          %173 = sbr.rel (%p171) target = $region24
        $region23: #{masked_mini_pointnet.3} parent=11 // pred_region
          _
        $region24: #{masked_mini_pointnet.3} parent=11 // pred_fallthru
          _
        // Predicated region
        $region25: #{masked_mini_pointnet.3} parent=11 // pred_check
          %p174 = pneg %p124
        $region26: #{masked_mini_pointnet.3} parent=11 // pred_check_branch
          %176 = sbr.rel (%p174) target = $region28
        $region27: #{masked_mini_pointnet.3} parent=11 // pred_region
          _
        $region28: #{masked_mini_pointnet.3} parent=11 // pred_fallthru
          _
      $region12: #{masked_mini_pointnet.3} parent=5 // pred_fallthru
        _
      %p177 = scmp.lt.s32.totalorder %s14, 2
      // Predicated region
      $region29: #{masked_mini_pointnet.3} parent=5 // pred_check
        %p178 = pneg %p177
      $region30: #{masked_mini_pointnet.3} parent=5 // pred_check_branch
        %180 = sbr.rel (%p178) target = $region32
      $region31: #{masked_mini_pointnet.3} parent=5 // pred_region
        // Predicated region
        $region33: #{masked_mini_pointnet.3} parent=31 // pred_check
          %p181 = pneg %p34
        $region34: #{masked_mini_pointnet.3} parent=31 // pred_check_branch
          %183 = sbr.rel (%p181) target = $region36
        $region35: #{masked_mini_pointnet.3} parent=31 // pred_region
          %p184 = scmp.lt.s32.totalorder %s14, 1
          %s185 = scalar_select %p184, %s14, 1
          %s186 = smul.addr %s185, 64
          %s187 = smul.addr %s186, 4
          %s188 = scalar_lea.vmem %s0, %s187
        $region36: #{masked_mini_pointnet.3} parent=31 // pred_fallthru
          _
      $region32: #{masked_mini_pointnet.3} parent=5 // pred_fallthru
        _
      %p189 = scmp.le.s32.totalorder 1, %s14
      %p190 = scmp.lt.s32.totalorder %s14, 3
      %p191 = pnand %p189, %p190
      %p192 = pneg %p191
      // Predicated region
      $region37: #{masked_mini_pointnet.3} parent=5 // pred_check
        _
      $region38: #{masked_mini_pointnet.3} parent=5 // pred_check_branch
        %194 = sbr.rel (%p191) target = $region40
      $region39: #{masked_mini_pointnet.3} parent=5 // pred_region
        %s195 = ssub.s32 %s14, 1
        %p196 = scmp.lt.s32.totalorder %s19, 1
        %s197 = scalar_select %p196, %s19, 1
        %s198 = smul.addr %s197, 64
        %s199 = smul.addr %s198, 4
        %s200 = scalar_lea.vmem %s0, %s199
        %p201 = pneg %p40
        %p202 = pneg %p37
        %p203 = pneg %p61
        %p204 = pneg %p58
        %p205 = pneg %p82
        %p206 = pneg %p79
        %p207 = pneg %p103
        %p208 = pneg %p100
        %p209 = pneg %p124
        %p210 = pneg %p121
        %p211 = pneg %p150
        %p212 = pneg %p147
        %s213 = sand.u32 %s137, 1
        %s214 = scalar_lea.sflag [#allocation3], %s213
        %s215 = sand.u32 %s137, 1
        %s216 = smul.addr %s215, 8
        %s217 = scalar_lea.vmem [#allocation2], %s216
        %p218 = scmp.lt.s32.totalorder %s19, 1
        %s219 = scalar_select %p218, %s19, 1
        %s220 = smul.addr %s219, 64
        %s221 = smul.addr %s220, 4
        %s222 = scalar_lea.vmem %s0, %s221
        %v223 = vld [vmem:[%s222] sm:$0xff]
        %v224 = vld [vmem:[%s222 + $0x8] sm:$0xff]
        %v225 = vld [vmem:[%s222 + $0x10] sm:$0xff]
        %v226 = vld [vmem:[%s222 + $0x18] sm:$0xff]
        %v227 = vld [vmem:[%s222 + $0x20] sm:$0xff]
        %v228 = vld [vmem:[%s222 + $0x28] sm:$0xff]
        %v229 = vld [vmem:[%s222 + $0x30] sm:$0xff]
        %v230 = vld [vmem:[%s222 + $0x38] sm:$0xff]
        %v231 = vld [vmem:[%s222 + $0x40] sm:$0xff]
        %v232 = vld [vmem:[%s222 + $0x48] sm:$0xff]
        %v233 = vld [vmem:[%s222 + $0x50] sm:$0xff]
        %v234 = vld [vmem:[%s222 + $0x58] sm:$0xff]
        %v235 = vld [vmem:[%s222 + $0x60] sm:$0xff]
        %v236 = vld [vmem:[%s222 + $0x68] sm:$0xff]
        %v237 = vld [vmem:[%s222 + $0x70] sm:$0xff]
        %v238 = vld [vmem:[%s222 + $0x78] sm:$0xff]
        %v239 = vld [vmem:[%s222 + $0x80] sm:$0xff]
        %v240 = vld [vmem:[%s222 + $0x88] sm:$0xff]
        %v241 = vld [vmem:[%s222 + $0x90] sm:$0xff]
        %v242 = vld [vmem:[%s222 + $0x98] sm:$0xff]
        %v243 = vld [vmem:[%s222 + $0xa0] sm:$0xff]
        %v244 = vld [vmem:[%s222 + $0xa8] sm:$0xff]
        %v245 = vld [vmem:[%s222 + $0xb0] sm:$0xff]
        %v246 = vld [vmem:[%s222 + $0xb8] sm:$0xff]
        %v247 = vld [vmem:[%s222 + $0xc0] sm:$0xff]
        %v248 = vld [vmem:[%s222 + $0xc8] sm:$0xff]
        %v249 = vld [vmem:[%s222 + $0xd0] sm:$0xff]
        %v250 = vld [vmem:[%s222 + $0xd8] sm:$0xff]
        %v251 = vld [vmem:[%s222 + $0xe0] sm:$0xff]
        %v252 = vld [vmem:[%s222 + $0xe8] sm:$0xff]
        %v253 = vld [vmem:[%s222 + $0xf0] sm:$0xff]
        %v254 = vld [vmem:[%s222 + $0xf8] sm:$0xff]
        %v255 = vunpack.c.l.bf16 %v223
        %v256 = vunpack.c.h.bf16 %v223
        %v257 = vunpack.c.l.bf16 %v224
        %v258 = vunpack.c.h.bf16 %v224
        %v259 = vunpack.c.l.bf16 %v225
        %v260 = vunpack.c.h.bf16 %v225
        %v261 = vunpack.c.l.bf16 %v226
        %v262 = vunpack.c.h.bf16 %v226
        %v263 = vunpack.c.l.bf16 %v227
        %v264 = vunpack.c.h.bf16 %v227
        %v265 = vunpack.c.l.bf16 %v228
        %v266 = vunpack.c.h.bf16 %v228
        %v267 = vunpack.c.l.bf16 %v229
        %v268 = vunpack.c.h.bf16 %v229
        %v269 = vunpack.c.l.bf16 %v230
        %v270 = vunpack.c.h.bf16 %v230
        %v271 = vunpack.c.l.bf16 %v231
        %v272 = vunpack.c.h.bf16 %v231
        %v273 = vunpack.c.l.bf16 %v232
        %v274 = vunpack.c.h.bf16 %v232
        %v275 = vunpack.c.l.bf16 %v233
        %v276 = vunpack.c.h.bf16 %v233
        %v277 = vunpack.c.l.bf16 %v234
        %v278 = vunpack.c.h.bf16 %v234
        %v279 = vunpack.c.l.bf16 %v235
        %v280 = vunpack.c.h.bf16 %v235
        %v281 = vunpack.c.l.bf16 %v236
        %v282 = vunpack.c.h.bf16 %v236
        %v283 = vunpack.c.l.bf16 %v237
        %v284 = vunpack.c.h.bf16 %v237
        %v285 = vunpack.c.l.bf16 %v238
        %v286 = vunpack.c.h.bf16 %v238
        %v287 = vunpack.c.l.bf16 %v239
        %v288 = vunpack.c.h.bf16 %v239
        %v289 = vunpack.c.l.bf16 %v240
        %v290 = vunpack.c.h.bf16 %v240
        %v291 = vunpack.c.l.bf16 %v241
        %v292 = vunpack.c.h.bf16 %v241
        %v293 = vunpack.c.l.bf16 %v242
        %v294 = vunpack.c.h.bf16 %v242
        %v295 = vunpack.c.l.bf16 %v243
        %v296 = vunpack.c.h.bf16 %v243
        %v297 = vunpack.c.l.bf16 %v244
        %v298 = vunpack.c.h.bf16 %v244
        %v299 = vunpack.c.l.bf16 %v245
        %v300 = vunpack.c.h.bf16 %v245
        %v301 = vunpack.c.l.bf16 %v246
        %v302 = vunpack.c.h.bf16 %v246
        %v303 = vunpack.c.l.bf16 %v247
        %v304 = vunpack.c.h.bf16 %v247
        %v305 = vunpack.c.l.bf16 %v248
        %v306 = vunpack.c.h.bf16 %v248
        %v307 = vunpack.c.l.bf16 %v249
        %v308 = vunpack.c.h.bf16 %v249
        %v309 = vunpack.c.l.bf16 %v250
        %v310 = vunpack.c.h.bf16 %v250
        %v311 = vunpack.c.l.bf16 %v251
        %v312 = vunpack.c.h.bf16 %v251
        %v313 = vunpack.c.l.bf16 %v252
        %v314 = vunpack.c.h.bf16 %v252
        %v315 = vunpack.c.l.bf16 %v253
        %v316 = vunpack.c.h.bf16 %v253
        %v317 = vunpack.c.l.bf16 %v254
        %v318 = vunpack.c.h.bf16 %v254
        %v319 = vld [vmem:[%s1] sm:$0xf]
        %v321 = vlaneseq
        %v322 = vshrl.u32 %v321, 7
        %v323 = vsub.s32 0, %v322
        %v324 = vrot.slane %v319, %v323
        %v325 = vlaneseq
        %v326 = vshrl.u32 %v325, 7
        %v327 = vsub.s32 1, %v326
        %v328 = vrot.slane %v319, %v327
        %v329 = vlaneseq
        %v330 = vshrl.u32 %v329, 7
        %v331 = vsub.s32 2, %v330
        %v332 = vrot.slane %v319, %v331
        %v333 = vlaneseq
        %v334 = vshrl.u32 %v333, 7
        %v335 = vsub.s32 3, %v334
        %v336 = vrot.slane %v319, %v335
        %v341 = vmul.f32 %v255, %v324
        %v342 = vmul.f32 %v256, %v328
        %v343 = vmul.f32 %v257, %v332
        %v344 = vmul.f32 %v258, %v336
        %v345 = vmul.f32 %v259, %v324
        %v346 = vmul.f32 %v260, %v328
        %v347 = vmul.f32 %v261, %v332
        %v348 = vmul.f32 %v262, %v336
        %v349 = vmul.f32 %v263, %v324
        %v350 = vmul.f32 %v264, %v328
        %v351 = vmul.f32 %v265, %v332
        %v352 = vmul.f32 %v266, %v336
        %v353 = vmul.f32 %v267, %v324
        %v354 = vmul.f32 %v268, %v328
        %v355 = vmul.f32 %v269, %v332
        %v356 = vmul.f32 %v270, %v336
        %v357 = vmul.f32 %v271, %v324
        %v358 = vmul.f32 %v272, %v328
        %v359 = vmul.f32 %v273, %v332
        %v360 = vmul.f32 %v274, %v336
        %v361 = vmul.f32 %v275, %v324
        %v362 = vmul.f32 %v276, %v328
        %v363 = vmul.f32 %v277, %v332
        %v364 = vmul.f32 %v278, %v336
        %v365 = vmul.f32 %v279, %v324
        %v366 = vmul.f32 %v280, %v328
        %v367 = vmul.f32 %v281, %v332
        %v368 = vmul.f32 %v282, %v336
        %v369 = vmul.f32 %v283, %v324
        %v370 = vmul.f32 %v284, %v328
        %v371 = vmul.f32 %v285, %v332
        %v372 = vmul.f32 %v286, %v336
        %v373 = vmul.f32 %v287, %v324
        %v374 = vmul.f32 %v288, %v328
        %v375 = vmul.f32 %v289, %v332
        %v376 = vmul.f32 %v290, %v336
        %v377 = vmul.f32 %v291, %v324
        %v378 = vmul.f32 %v292, %v328
        %v379 = vmul.f32 %v293, %v332
        %v380 = vmul.f32 %v294, %v336
        %v381 = vmul.f32 %v295, %v324
        %v382 = vmul.f32 %v296, %v328
        %v383 = vmul.f32 %v297, %v332
        %v384 = vmul.f32 %v298, %v336
        %v385 = vmul.f32 %v299, %v324
        %v386 = vmul.f32 %v300, %v328
        %v387 = vmul.f32 %v301, %v332
        %v388 = vmul.f32 %v302, %v336
        %v389 = vmul.f32 %v303, %v324
        %v390 = vmul.f32 %v304, %v328
        %v391 = vmul.f32 %v305, %v332
        %v392 = vmul.f32 %v306, %v336
        %v393 = vmul.f32 %v307, %v324
        %v394 = vmul.f32 %v308, %v328
        %v395 = vmul.f32 %v309, %v332
        %v396 = vmul.f32 %v310, %v336
        %v397 = vmul.f32 %v311, %v324
        %v398 = vmul.f32 %v312, %v328
        %v399 = vmul.f32 %v313, %v332
        %v400 = vmul.f32 %v314, %v336
        %v401 = vmul.f32 %v315, %v324
        %v402 = vmul.f32 %v316, %v328
        %v403 = vmul.f32 %v317, %v332
        %v404 = vmul.f32 %v318, %v336
        %v405 = vld [vmem:[%s2] sm:$0xf]
        %v407 = vlaneseq
        %v408 = vshrl.u32 %v407, 7
        %v409 = vsub.s32 0, %v408
        %v410 = vrot.slane %v405, %v409
        %v411 = vlaneseq
        %v412 = vshrl.u32 %v411, 7
        %v413 = vsub.s32 1, %v412
        %v414 = vrot.slane %v405, %v413
        %v415 = vlaneseq
        %v416 = vshrl.u32 %v415, 7
        %v417 = vsub.s32 2, %v416
        %v418 = vrot.slane %v405, %v417
        %v419 = vlaneseq
        %v420 = vshrl.u32 %v419, 7
        %v421 = vsub.s32 3, %v420
        %v422 = vrot.slane %v405, %v421
        %v427 = vadd.f32 %v341, %v410
        %v428 = vadd.f32 %v342, %v414
        %v429 = vadd.f32 %v343, %v418
        %v430 = vadd.f32 %v344, %v422
        %v431 = vadd.f32 %v345, %v410
        %v432 = vadd.f32 %v346, %v414
        %v433 = vadd.f32 %v347, %v418
        %v434 = vadd.f32 %v348, %v422
        %v435 = vadd.f32 %v349, %v410
        %v436 = vadd.f32 %v350, %v414
        %v437 = vadd.f32 %v351, %v418
        %v438 = vadd.f32 %v352, %v422
        %v439 = vadd.f32 %v353, %v410
        %v440 = vadd.f32 %v354, %v414
        %v441 = vadd.f32 %v355, %v418
        %v442 = vadd.f32 %v356, %v422
        %v443 = vadd.f32 %v357, %v410
        %v444 = vadd.f32 %v358, %v414
        %v445 = vadd.f32 %v359, %v418
        %v446 = vadd.f32 %v360, %v422
        %v447 = vadd.f32 %v361, %v410
        %v448 = vadd.f32 %v362, %v414
        %v449 = vadd.f32 %v363, %v418
        %v450 = vadd.f32 %v364, %v422
        %v451 = vadd.f32 %v365, %v410
        %v452 = vadd.f32 %v366, %v414
        %v453 = vadd.f32 %v367, %v418
        %v454 = vadd.f32 %v368, %v422
        %v455 = vadd.f32 %v369, %v410
        %v456 = vadd.f32 %v370, %v414
        %v457 = vadd.f32 %v371, %v418
        %v458 = vadd.f32 %v372, %v422
        %v459 = vadd.f32 %v373, %v410
        %v460 = vadd.f32 %v374, %v414
        %v461 = vadd.f32 %v375, %v418
        %v462 = vadd.f32 %v376, %v422
        %v463 = vadd.f32 %v377, %v410
        %v464 = vadd.f32 %v378, %v414
        %v465 = vadd.f32 %v379, %v418
        %v466 = vadd.f32 %v380, %v422
        %v467 = vadd.f32 %v381, %v410
        %v468 = vadd.f32 %v382, %v414
        %v469 = vadd.f32 %v383, %v418
        %v470 = vadd.f32 %v384, %v422
        %v471 = vadd.f32 %v385, %v410
        %v472 = vadd.f32 %v386, %v414
        %v473 = vadd.f32 %v387, %v418
        %v474 = vadd.f32 %v388, %v422
        %v475 = vadd.f32 %v389, %v410
        %v476 = vadd.f32 %v390, %v414
        %v477 = vadd.f32 %v391, %v418
        %v478 = vadd.f32 %v392, %v422
        %v479 = vadd.f32 %v393, %v410
        %v480 = vadd.f32 %v394, %v414
        %v481 = vadd.f32 %v395, %v418
        %v482 = vadd.f32 %v396, %v422
        %v483 = vadd.f32 %v397, %v410
        %v484 = vadd.f32 %v398, %v414
        %v485 = vadd.f32 %v399, %v418
        %v486 = vadd.f32 %v400, %v422
        %v487 = vadd.f32 %v401, %v410
        %v488 = vadd.f32 %v402, %v414
        %v489 = vadd.f32 %v403, %v418
        %v490 = vadd.f32 %v404, %v422
        %v491 = vmax.f32 %v427, 0.0
        %v492 = vmax.f32 %v428, 0.0
        %v493 = vmax.f32 %v429, 0.0
        %v494 = vmax.f32 %v430, 0.0
        %v495 = vmax.f32 %v431, 0.0
        %v496 = vmax.f32 %v432, 0.0
        %v497 = vmax.f32 %v433, 0.0
        %v498 = vmax.f32 %v434, 0.0
        %v499 = vmax.f32 %v435, 0.0
        %v500 = vmax.f32 %v436, 0.0
        %v501 = vmax.f32 %v437, 0.0
        %v502 = vmax.f32 %v438, 0.0
        %v503 = vmax.f32 %v439, 0.0
        %v504 = vmax.f32 %v440, 0.0
        %v505 = vmax.f32 %v441, 0.0
        %v506 = vmax.f32 %v442, 0.0
        %v507 = vmax.f32 %v443, 0.0
        %v508 = vmax.f32 %v444, 0.0
        %v509 = vmax.f32 %v445, 0.0
        %v510 = vmax.f32 %v446, 0.0
        %v511 = vmax.f32 %v447, 0.0
        %v512 = vmax.f32 %v448, 0.0
        %v513 = vmax.f32 %v449, 0.0
        %v514 = vmax.f32 %v450, 0.0
        %v515 = vmax.f32 %v451, 0.0
        %v516 = vmax.f32 %v452, 0.0
        %v517 = vmax.f32 %v453, 0.0
        %v518 = vmax.f32 %v454, 0.0
        %v519 = vmax.f32 %v455, 0.0
        %v520 = vmax.f32 %v456, 0.0
        %v521 = vmax.f32 %v457, 0.0
        %v522 = vmax.f32 %v458, 0.0
        %v523 = vmax.f32 %v459, 0.0
        %v524 = vmax.f32 %v460, 0.0
        %v525 = vmax.f32 %v461, 0.0
        %v526 = vmax.f32 %v462, 0.0
        %v527 = vmax.f32 %v463, 0.0
        %v528 = vmax.f32 %v464, 0.0
        %v529 = vmax.f32 %v465, 0.0
        %v530 = vmax.f32 %v466, 0.0
        %v531 = vmax.f32 %v467, 0.0
        %v532 = vmax.f32 %v468, 0.0
        %v533 = vmax.f32 %v469, 0.0
        %v534 = vmax.f32 %v470, 0.0
        %v535 = vmax.f32 %v471, 0.0
        %v536 = vmax.f32 %v472, 0.0
        %v537 = vmax.f32 %v473, 0.0
        %v538 = vmax.f32 %v474, 0.0
        %v539 = vmax.f32 %v475, 0.0
        %v540 = vmax.f32 %v476, 0.0
        %v541 = vmax.f32 %v477, 0.0
        %v542 = vmax.f32 %v478, 0.0
        %v543 = vmax.f32 %v479, 0.0
        %v544 = vmax.f32 %v480, 0.0
        %v545 = vmax.f32 %v481, 0.0
        %v546 = vmax.f32 %v482, 0.0
        %v547 = vmax.f32 %v483, 0.0
        %v548 = vmax.f32 %v484, 0.0
        %v549 = vmax.f32 %v485, 0.0
        %v550 = vmax.f32 %v486, 0.0
        %v551 = vmax.f32 %v487, 0.0
        %v552 = vmax.f32 %v488, 0.0
        %v553 = vmax.f32 %v489, 0.0
        %v554 = vmax.f32 %v490, 0.0
        %v555 = vpack.c.bf16 %v495, %v491
        %v556 = vpack.c.bf16 %v496, %v492
        %v557 = vpack.c.bf16 %v497, %v493
        %v558 = vpack.c.bf16 %v498, %v494
        %v559 = vpack.c.bf16 %v503, %v499
        %v560 = vpack.c.bf16 %v504, %v500
        %v561 = vpack.c.bf16 %v505, %v501
        %v562 = vpack.c.bf16 %v506, %v502
        %v563 = vpack.c.bf16 %v511, %v507
        %v564 = vpack.c.bf16 %v512, %v508
        %v565 = vpack.c.bf16 %v513, %v509
        %v566 = vpack.c.bf16 %v514, %v510
        %v567 = vpack.c.bf16 %v519, %v515
        %v568 = vpack.c.bf16 %v520, %v516
        %v569 = vpack.c.bf16 %v521, %v517
        %v570 = vpack.c.bf16 %v522, %v518
        %v571 = vpack.c.bf16 %v527, %v523
        %v572 = vpack.c.bf16 %v528, %v524
        %v573 = vpack.c.bf16 %v529, %v525
        %v574 = vpack.c.bf16 %v530, %v526
        %v575 = vpack.c.bf16 %v535, %v531
        %v576 = vpack.c.bf16 %v536, %v532
        %v577 = vpack.c.bf16 %v537, %v533
        %v578 = vpack.c.bf16 %v538, %v534
        %v579 = vpack.c.bf16 %v543, %v539
        %v580 = vpack.c.bf16 %v544, %v540
        %v581 = vpack.c.bf16 %v545, %v541
        %v582 = vpack.c.bf16 %v546, %v542
        %v583 = vpack.c.bf16 %v551, %v547
        %v584 = vpack.c.bf16 %v552, %v548
        %v585 = vpack.c.bf16 %v553, %v549
        %v586 = vpack.c.bf16 %v554, %v550
        %v587 = vld [vmem:[%s3] sm:$0xff]
        %v588 = vld [vmem:[%s3 + $0x8] sm:$0xff]
        %v589 = vld [vmem:[%s3 + $0x10] sm:$0xff]
        %v590 = vld [vmem:[%s3 + $0x18] sm:$0xff]
        %v591 = vld [vmem:[%s3 + $0x20] sm:$0xff]
        %v592 = vld [vmem:[%s3 + $0x28] sm:$0xff]
        %v593 = vld [vmem:[%s3 + $0x30] sm:$0xff]
        %v594 = vld [vmem:[%s3 + $0x38] sm:$0xff]
        %v595 = vld [vmem:[%s3 + $0x40] sm:$0xff]
        %v596 = vld [vmem:[%s3 + $0x48] sm:$0xff]
        %v597 = vld [vmem:[%s3 + $0x50] sm:$0xff]
        %v598 = vld [vmem:[%s3 + $0x58] sm:$0xff]
        %v599 = vld [vmem:[%s3 + $0x60] sm:$0xff]
        %v600 = vld [vmem:[%s3 + $0x68] sm:$0xff]
        %v601 = vld [vmem:[%s3 + $0x70] sm:$0xff]
        %v602 = vld [vmem:[%s3 + $0x78] sm:$0xff]
        %v603 = vld [vmem:[%s3 + $0x80] sm:$0xff]
        %v604 = vld [vmem:[%s3 + $0x88] sm:$0xff]
        %v605 = vld [vmem:[%s3 + $0x90] sm:$0xff]
        %v606 = vld [vmem:[%s3 + $0x98] sm:$0xff]
        %v607 = vld [vmem:[%s3 + $0xa0] sm:$0xff]
        %v608 = vld [vmem:[%s3 + $0xa8] sm:$0xff]
        %v609 = vld [vmem:[%s3 + $0xb0] sm:$0xff]
        %v610 = vld [vmem:[%s3 + $0xb8] sm:$0xff]
        %v611 = vld [vmem:[%s3 + $0xc0] sm:$0xff]
        %v612 = vld [vmem:[%s3 + $0xc8] sm:$0xff]
        %v613 = vld [vmem:[%s3 + $0xd0] sm:$0xff]
        %v614 = vld [vmem:[%s3 + $0xd8] sm:$0xff]
        %v615 = vld [vmem:[%s3 + $0xe0] sm:$0xff]
        %v616 = vld [vmem:[%s3 + $0xe8] sm:$0xff]
        %v617 = vld [vmem:[%s3 + $0xf0] sm:$0xff]
        %v618 = vld [vmem:[%s3 + $0xf8] sm:$0xff]
        %v619 = vld [vmem:[%s3 + $0x100] sm:$0xff]
        %v620 = vld [vmem:[%s3 + $0x108] sm:$0xff]
        %v621 = vld [vmem:[%s3 + $0x110] sm:$0xff]
        %v622 = vld [vmem:[%s3 + $0x118] sm:$0xff]
        %v623 = vld [vmem:[%s3 + $0x120] sm:$0xff]
        %v624 = vld [vmem:[%s3 + $0x128] sm:$0xff]
        %v625 = vld [vmem:[%s3 + $0x130] sm:$0xff]
        %v626 = vld [vmem:[%s3 + $0x138] sm:$0xff]
        %v627 = vld [vmem:[%s3 + $0x140] sm:$0xff]
        %v628 = vld [vmem:[%s3 + $0x148] sm:$0xff]
        %v629 = vld [vmem:[%s3 + $0x150] sm:$0xff]
        %v630 = vld [vmem:[%s3 + $0x158] sm:$0xff]
        %v631 = vld [vmem:[%s3 + $0x160] sm:$0xff]
        %v632 = vld [vmem:[%s3 + $0x168] sm:$0xff]
        %v633 = vld [vmem:[%s3 + $0x170] sm:$0xff]
        %v634 = vld [vmem:[%s3 + $0x178] sm:$0xff]
        %v635 = vld [vmem:[%s3 + $0x180] sm:$0xff]
        %v636 = vld [vmem:[%s3 + $0x188] sm:$0xff]
        %v637 = vld [vmem:[%s3 + $0x190] sm:$0xff]
        %v638 = vld [vmem:[%s3 + $0x198] sm:$0xff]
        %v639 = vld [vmem:[%s3 + $0x1a0] sm:$0xff]
        %v640 = vld [vmem:[%s3 + $0x1a8] sm:$0xff]
        %v641 = vld [vmem:[%s3 + $0x1b0] sm:$0xff]
        %v642 = vld [vmem:[%s3 + $0x1b8] sm:$0xff]
        %v643 = vld [vmem:[%s3 + $0x1c0] sm:$0xff]
        %v644 = vld [vmem:[%s3 + $0x1c8] sm:$0xff]
        %v645 = vld [vmem:[%s3 + $0x1d0] sm:$0xff]
        %v646 = vld [vmem:[%s3 + $0x1d8] sm:$0xff]
        %v647 = vld [vmem:[%s3 + $0x1e0] sm:$0xff]
        %v648 = vld [vmem:[%s3 + $0x1e8] sm:$0xff]
        %v649 = vld [vmem:[%s3 + $0x1f0] sm:$0xff]
        %v650 = vld [vmem:[%s3 + $0x1f8] sm:$0xff]
        %v651 = vld [vmem:[%s4] sm:$0x3]
        %v653 = vlaneseq
        %v654 = vshrl.u32 %v653, 7
        %v655 = vsub.s32 0, %v654
        %v656 = vrot.slane %v651, %v655
        %v657 = vlaneseq
        %v658 = vshrl.u32 %v657, 7
        %v659 = vsub.s32 1, %v658
        %v660 = vrot.slane %v651, %v659
        %v727 = vunpack.c.l.b16 %v587
        %v728 = vunpack.c.h.b16 %v587
        %v729 = vunpack.c.l.b16 %v588
        %v730 = vunpack.c.h.b16 %v588
        %v731 = vunpack.c.l.b16 %v589
        %v732 = vunpack.c.h.b16 %v589
        %v733 = vunpack.c.l.b16 %v590
        %v734 = vunpack.c.h.b16 %v590
        %v735 = vunpack.c.l.b16 %v591
        %v736 = vunpack.c.h.b16 %v591
        %v737 = vunpack.c.l.b16 %v592
        %v738 = vunpack.c.h.b16 %v592
        %v739 = vunpack.c.l.b16 %v593
        %v740 = vunpack.c.h.b16 %v593
        %v741 = vunpack.c.l.b16 %v594
        %v742 = vunpack.c.h.b16 %v594
        %v743 = vunpack.c.l.b16 %v595
        %v744 = vunpack.c.h.b16 %v595
        %v745 = vunpack.c.l.b16 %v596
        %v746 = vunpack.c.h.b16 %v596
        %v747 = vunpack.c.l.b16 %v597
        %v748 = vunpack.c.h.b16 %v597
        %v749 = vunpack.c.l.b16 %v598
        %v750 = vunpack.c.h.b16 %v598
        %v751 = vunpack.c.l.b16 %v599
        %v752 = vunpack.c.h.b16 %v599
        %v753 = vunpack.c.l.b16 %v600
        %v754 = vunpack.c.h.b16 %v600
        %v755 = vunpack.c.l.b16 %v601
        %v756 = vunpack.c.h.b16 %v601
        %v757 = vunpack.c.l.b16 %v602
        %v758 = vunpack.c.h.b16 %v602
        %v759 = vunpack.c.l.b16 %v603
        %v760 = vunpack.c.h.b16 %v603
        %v761 = vunpack.c.l.b16 %v604
        %v762 = vunpack.c.h.b16 %v604
        %v763 = vunpack.c.l.b16 %v605
        %v764 = vunpack.c.h.b16 %v605
        %v765 = vunpack.c.l.b16 %v606
        %v766 = vunpack.c.h.b16 %v606
        %v767 = vunpack.c.l.b16 %v607
        %v768 = vunpack.c.h.b16 %v607
        %v769 = vunpack.c.l.b16 %v608
        %v770 = vunpack.c.h.b16 %v608
        %v771 = vunpack.c.l.b16 %v609
        %v772 = vunpack.c.h.b16 %v609
        %v773 = vunpack.c.l.b16 %v610
        %v774 = vunpack.c.h.b16 %v610
        %v775 = vunpack.c.l.b16 %v611
        %v776 = vunpack.c.h.b16 %v611
        %v777 = vunpack.c.l.b16 %v612
        %v778 = vunpack.c.h.b16 %v612
        %v779 = vunpack.c.l.b16 %v613
        %v780 = vunpack.c.h.b16 %v613
        %v781 = vunpack.c.l.b16 %v614
        %v782 = vunpack.c.h.b16 %v614
        %v783 = vunpack.c.l.b16 %v615
        %v784 = vunpack.c.h.b16 %v615
        %v785 = vunpack.c.l.b16 %v616
        %v786 = vunpack.c.h.b16 %v616
        %v787 = vunpack.c.l.b16 %v617
        %v788 = vunpack.c.h.b16 %v617
        %v789 = vunpack.c.l.b16 %v618
        %v790 = vunpack.c.h.b16 %v618
        %v791 = vunpack.c.l.b16 %v619
        %v792 = vunpack.c.h.b16 %v619
        %v793 = vunpack.c.l.b16 %v620
        %v794 = vunpack.c.h.b16 %v620
        %v795 = vunpack.c.l.b16 %v621
        %v796 = vunpack.c.h.b16 %v621
        %v797 = vunpack.c.l.b16 %v622
        %v798 = vunpack.c.h.b16 %v622
        %v799 = vunpack.c.l.b16 %v623
        %v800 = vunpack.c.h.b16 %v623
        %v801 = vunpack.c.l.b16 %v624
        %v802 = vunpack.c.h.b16 %v624
        %v803 = vunpack.c.l.b16 %v625
        %v804 = vunpack.c.h.b16 %v625
        %v805 = vunpack.c.l.b16 %v626
        %v806 = vunpack.c.h.b16 %v626
        %v807 = vunpack.c.l.b16 %v627
        %v808 = vunpack.c.h.b16 %v627
        %v809 = vunpack.c.l.b16 %v628
        %v810 = vunpack.c.h.b16 %v628
        %v811 = vunpack.c.l.b16 %v629
        %v812 = vunpack.c.h.b16 %v629
        %v813 = vunpack.c.l.b16 %v630
        %v814 = vunpack.c.h.b16 %v630
        %v815 = vunpack.c.l.b16 %v631
        %v816 = vunpack.c.h.b16 %v631
        %v817 = vunpack.c.l.b16 %v632
        %v818 = vunpack.c.h.b16 %v632
        %v819 = vunpack.c.l.b16 %v633
        %v820 = vunpack.c.h.b16 %v633
        %v821 = vunpack.c.l.b16 %v634
        %v822 = vunpack.c.h.b16 %v634
        %v823 = vunpack.c.l.b16 %v635
        %v824 = vunpack.c.h.b16 %v635
        %v825 = vunpack.c.l.b16 %v636
        %v826 = vunpack.c.h.b16 %v636
        %v827 = vunpack.c.l.b16 %v637
        %v828 = vunpack.c.h.b16 %v637
        %v829 = vunpack.c.l.b16 %v638
        %v830 = vunpack.c.h.b16 %v638
        %v831 = vunpack.c.l.b16 %v639
        %v832 = vunpack.c.h.b16 %v639
        %v833 = vunpack.c.l.b16 %v640
        %v834 = vunpack.c.h.b16 %v640
        %v835 = vunpack.c.l.b16 %v641
        %v836 = vunpack.c.h.b16 %v641
        %v837 = vunpack.c.l.b16 %v642
        %v838 = vunpack.c.h.b16 %v642
        %v839 = vunpack.c.l.b16 %v643
        %v840 = vunpack.c.h.b16 %v643
        %v841 = vunpack.c.l.b16 %v644
        %v842 = vunpack.c.h.b16 %v644
        %v843 = vunpack.c.l.b16 %v645
        %v844 = vunpack.c.h.b16 %v645
        %v845 = vunpack.c.l.b16 %v646
        %v846 = vunpack.c.h.b16 %v646
        %v847 = vunpack.c.l.b16 %v647
        %v848 = vunpack.c.h.b16 %v647
        %v849 = vunpack.c.l.b16 %v648
        %v850 = vunpack.c.h.b16 %v648
        %v851 = vunpack.c.l.b16 %v649
        %v852 = vunpack.c.h.b16 %v649
        %v853 = vunpack.c.l.b16 %v650
        %v854 = vunpack.c.h.b16 %v650
        %v855 = vpack.c.b16 %v729, %v727
        %v856 = vpack.c.b16 %v730, %v728
        %v857 = vpack.c.b16 %v733, %v731
        %v858 = vpack.c.b16 %v734, %v732
        %v859 = vpack.c.b16 %v737, %v735
        %v860 = vpack.c.b16 %v738, %v736
        %v861 = vpack.c.b16 %v741, %v739
        %v862 = vpack.c.b16 %v742, %v740
        %v863 = vpack.c.b16 %v745, %v743
        %v864 = vpack.c.b16 %v746, %v744
        %v865 = vpack.c.b16 %v749, %v747
        %v866 = vpack.c.b16 %v750, %v748
        %v867 = vpack.c.b16 %v753, %v751
        %v868 = vpack.c.b16 %v754, %v752
        %v869 = vpack.c.b16 %v757, %v755
        %v870 = vpack.c.b16 %v758, %v756
        %v871 = vpack.c.b16 %v761, %v759
        %v872 = vpack.c.b16 %v762, %v760
        %v873 = vpack.c.b16 %v765, %v763
        %v874 = vpack.c.b16 %v766, %v764
        %v875 = vpack.c.b16 %v769, %v767
        %v876 = vpack.c.b16 %v770, %v768
        %v877 = vpack.c.b16 %v773, %v771
        %v878 = vpack.c.b16 %v774, %v772
        %v879 = vpack.c.b16 %v777, %v775
        %v880 = vpack.c.b16 %v778, %v776
        %v881 = vpack.c.b16 %v781, %v779
        %v882 = vpack.c.b16 %v782, %v780
        %v883 = vpack.c.b16 %v785, %v783
        %v884 = vpack.c.b16 %v786, %v784
        %v885 = vpack.c.b16 %v789, %v787
        %v886 = vpack.c.b16 %v790, %v788
        %v887 = vpack.c.b16 %v793, %v791
        %v888 = vpack.c.b16 %v794, %v792
        %v889 = vpack.c.b16 %v797, %v795
        %v890 = vpack.c.b16 %v798, %v796
        %v891 = vpack.c.b16 %v801, %v799
        %v892 = vpack.c.b16 %v802, %v800
        %v893 = vpack.c.b16 %v805, %v803
        %v894 = vpack.c.b16 %v806, %v804
        %v895 = vpack.c.b16 %v809, %v807
        %v896 = vpack.c.b16 %v810, %v808
        %v897 = vpack.c.b16 %v813, %v811
        %v898 = vpack.c.b16 %v814, %v812
        %v899 = vpack.c.b16 %v817, %v815
        %v900 = vpack.c.b16 %v818, %v816
        %v901 = vpack.c.b16 %v821, %v819
        %v902 = vpack.c.b16 %v822, %v820
        %v903 = vpack.c.b16 %v825, %v823
        %v904 = vpack.c.b16 %v826, %v824
        %v905 = vpack.c.b16 %v829, %v827
        %v906 = vpack.c.b16 %v830, %v828
        %v907 = vpack.c.b16 %v833, %v831
        %v908 = vpack.c.b16 %v834, %v832
        %v909 = vpack.c.b16 %v837, %v835
        %v910 = vpack.c.b16 %v838, %v836
        %v911 = vpack.c.b16 %v841, %v839
        %v912 = vpack.c.b16 %v842, %v840
        %v913 = vpack.c.b16 %v845, %v843
        %v914 = vpack.c.b16 %v846, %v844
        %v915 = vpack.c.b16 %v849, %v847
        %v916 = vpack.c.b16 %v850, %v848
        %v917 = vpack.c.b16 %v853, %v851
        %v918 = vpack.c.b16 %v854, %v852
        %983 = vmatprep.subr.bf16.mxu0 %v856
        %984 = vmatpush1.bf16.msra.mxu0 %v855
        %985 = vmatprep.subr.bf16.mxu0 %v858
        %986 = vmatpush1.bf16.msra.mxu0 %v857
        %987 = vmatprep.subr.bf16.mxu0 %v860
        %988 = vmatpush1.bf16.msra.mxu0 %v859
        %989 = vmatprep.subr.bf16.mxu0 %v862
        %990 = vmatpush1.bf16.msra.mxu0 %v861
        %991 = vmatprep.subr.bf16.mxu0 %v864
        %992 = vmatpush1.bf16.msra.mxu0 %v863
        %993 = vmatprep.subr.bf16.mxu0 %v866
        %994 = vmatpush1.bf16.msra.mxu0 %v865
        %995 = vmatprep.subr.bf16.mxu0 %v868
        %996 = vmatpush1.bf16.msra.mxu0 %v867
        %997 = vmatprep.subr.bf16.mxu0 %v870
        %998 = vmatpush1.bf16.msra.mxu0 %v869
        %999 = vmatprep.subr.bf16.mxu0 %v872
        %1000 = vmatpush1.bf16.msra.mxu0 %v871
        %1001 = vmatprep.subr.bf16.mxu0 %v874
        %1002 = vmatpush1.bf16.msra.mxu0 %v873
        %1003 = vmatprep.subr.bf16.mxu0 %v876
        %1004 = vmatpush1.bf16.msra.mxu0 %v875
        %1005 = vmatprep.subr.bf16.mxu0 %v878
        %1006 = vmatpush1.bf16.msra.mxu0 %v877
        %1007 = vmatprep.subr.bf16.mxu0 %v880
        %1008 = vmatpush1.bf16.msra.mxu0 %v879
        %1009 = vmatprep.subr.bf16.mxu0 %v882
        %1010 = vmatpush1.bf16.msra.mxu0 %v881
        %1011 = vmatprep.subr.bf16.mxu0 %v884
        %1012 = vmatpush1.bf16.msra.mxu0 %v883
        %1013 = vmatprep.subr.bf16.mxu0 %v886
        %1014 = vmatpush1.bf16.msra.mxu0 %v885
        %1015 = vmatprep.mubr.bf16.mxu0 %v556
        %1016 = vmatmul.mubr.bf16.gmra.mrb[0].mxu0 %v555
        %v1017 = vpop.f32.mrb[0].mxu0
        %v1018 = vadd.f32 %v656, %v1017
        %v1019 = vpop.f32.mrb[0].mxu0
        %v1020 = vadd.f32 %v660, %v1019
        %v1021 = vpop.f32.mrb[0].mxu0
        %v1022 = vadd.f32 %v656, %v1021
        %v1023 = vpop.f32.mrb[0].mxu0
        %v1024 = vadd.f32 %v660, %v1023
        %1025 = vmatprep.mubr.bf16.mxu0 %v560
        %1026 = vmatmul.mubr.bf16.gmra.mrb[0].mxu0 %v559
        %v1027 = vpop.f32.mrb[0].mxu0
        %v1028 = vadd.f32 %v656, %v1027
        %v1029 = vpop.f32.mrb[0].mxu0
        %v1030 = vadd.f32 %v660, %v1029
        %v1031 = vpop.f32.mrb[0].mxu0
        %v1032 = vadd.f32 %v656, %v1031
        %v1033 = vpop.f32.mrb[0].mxu0
        %v1034 = vadd.f32 %v660, %v1033
        %1035 = vmatprep.mubr.bf16.mxu0 %v564
        %1036 = vmatmul.mubr.bf16.gmra.mrb[0].mxu0 %v563
        %v1037 = vpop.f32.mrb[0].mxu0
        %v1038 = vadd.f32 %v656, %v1037
        %v1039 = vpop.f32.mrb[0].mxu0
        %v1040 = vadd.f32 %v660, %v1039
        %v1041 = vpop.f32.mrb[0].mxu0
        %v1042 = vadd.f32 %v656, %v1041
        %v1043 = vpop.f32.mrb[0].mxu0
        %v1044 = vadd.f32 %v660, %v1043
        %1045 = vmatprep.mubr.bf16.mxu0 %v568
        %1046 = vmatmul.mubr.bf16.gmra.mrb[0].mxu0 %v567
        %v1047 = vpop.f32.mrb[0].mxu0
        %v1048 = vadd.f32 %v656, %v1047
        %v1049 = vpop.f32.mrb[0].mxu0
        %v1050 = vadd.f32 %v660, %v1049
        %v1051 = vpop.f32.mrb[0].mxu0
        %v1052 = vadd.f32 %v656, %v1051
        %v1053 = vpop.f32.mrb[0].mxu0
        %v1054 = vadd.f32 %v660, %v1053
        %1055 = vmatprep.mubr.bf16.mxu0 %v572
        %1056 = vmatmul.mubr.bf16.gmra.mrb[0].mxu0 %v571
        %v1057 = vpop.f32.mrb[0].mxu0
        %v1058 = vadd.f32 %v656, %v1057
        %v1059 = vpop.f32.mrb[0].mxu0
        %v1060 = vadd.f32 %v660, %v1059
        %v1061 = vpop.f32.mrb[0].mxu0
        %v1062 = vadd.f32 %v656, %v1061
        %v1063 = vpop.f32.mrb[0].mxu0
        %v1064 = vadd.f32 %v660, %v1063
        %1065 = vmatprep.mubr.bf16.mxu0 %v576
        %1066 = vmatmul.mubr.bf16.gmra.mrb[0].mxu0 %v575
        %v1067 = vpop.f32.mrb[0].mxu0
        %v1068 = vadd.f32 %v656, %v1067
        %v1069 = vpop.f32.mrb[0].mxu0
        %v1070 = vadd.f32 %v660, %v1069
        %v1071 = vpop.f32.mrb[0].mxu0
        %v1072 = vadd.f32 %v656, %v1071
        %v1073 = vpop.f32.mrb[0].mxu0
        %v1074 = vadd.f32 %v660, %v1073
        %1075 = vmatprep.mubr.bf16.mxu0 %v580
        %1076 = vmatmul.mubr.bf16.gmra.mrb[0].mxu0 %v579
        %v1077 = vpop.f32.mrb[0].mxu0
        %v1078 = vadd.f32 %v656, %v1077
        %v1079 = vpop.f32.mrb[0].mxu0
        %v1080 = vadd.f32 %v660, %v1079
        %v1081 = vpop.f32.mrb[0].mxu0
        %v1082 = vadd.f32 %v656, %v1081
        %v1083 = vpop.f32.mrb[0].mxu0
        %v1084 = vadd.f32 %v660, %v1083
        %1085 = vmatprep.mubr.bf16.mxu0 %v584
        %1086 = vmatmul.mubr.bf16.gmra.mrb[0].mxu0 %v583
        %v1087 = vpop.f32.mrb[0].mxu0
        %v1088 = vadd.f32 %v656, %v1087
        %v1089 = vpop.f32.mrb[0].mxu0
        %v1090 = vadd.f32 %v660, %v1089
        %v1091 = vpop.f32.mrb[0].mxu0
        %v1092 = vadd.f32 %v656, %v1091
        %v1093 = vpop.f32.mrb[0].mxu0
        %v1094 = vadd.f32 %v660, %v1093
        %1095 = vdwg.mxu0
        %1096 = vmatprep.subr.bf16.mxu0 %v888
        %1097 = vmatpush1.bf16.msra.mxu0 %v887
        %1098 = vmatprep.subr.bf16.mxu0 %v890
        %1099 = vmatpush1.bf16.msra.mxu0 %v889
        %1100 = vmatprep.subr.bf16.mxu0 %v892
        %1101 = vmatpush1.bf16.msra.mxu0 %v891
        %1102 = vmatprep.subr.bf16.mxu0 %v894
        %1103 = vmatpush1.bf16.msra.mxu0 %v893
        %1104 = vmatprep.subr.bf16.mxu0 %v896
        %1105 = vmatpush1.bf16.msra.mxu0 %v895
        %1106 = vmatprep.subr.bf16.mxu0 %v898
        %1107 = vmatpush1.bf16.msra.mxu0 %v897
        %1108 = vmatprep.subr.bf16.mxu0 %v900
        %1109 = vmatpush1.bf16.msra.mxu0 %v899
        %1110 = vmatprep.subr.bf16.mxu0 %v902
        %1111 = vmatpush1.bf16.msra.mxu0 %v901
        %1112 = vmatprep.subr.bf16.mxu0 %v904
        %1113 = vmatpush1.bf16.msra.mxu0 %v903
        %1114 = vmatprep.subr.bf16.mxu0 %v906
        %1115 = vmatpush1.bf16.msra.mxu0 %v905
        %1116 = vmatprep.subr.bf16.mxu0 %v908
        %1117 = vmatpush1.bf16.msra.mxu0 %v907
        %1118 = vmatprep.subr.bf16.mxu0 %v910
        %1119 = vmatpush1.bf16.msra.mxu0 %v909
        %1120 = vmatprep.subr.bf16.mxu0 %v912
        %1121 = vmatpush1.bf16.msra.mxu0 %v911
        %1122 = vmatprep.subr.bf16.mxu0 %v914
        %1123 = vmatpush1.bf16.msra.mxu0 %v913
        %1124 = vmatprep.subr.bf16.mxu0 %v916
        %1125 = vmatpush1.bf16.msra.mxu0 %v915
        %1126 = vmatprep.subr.bf16.mxu0 %v918
        %1127 = vmatpush1.bf16.msra.mxu0 %v917
        %1128 = vmatprep.mubr.bf16.mxu0 %v558
        %1129 = vmatmul.mubr.bf16.gmra.mrb[0].mxu0 %v557
        %v1130 = vpop.f32.mrb[0].mxu0
        %v1131 = vadd.f32 %v1018, %v1130
        %v1132 = vpop.f32.mrb[0].mxu0
        %v1133 = vadd.f32 %v1020, %v1132
        %v1134 = vpop.f32.mrb[0].mxu0
        %v1135 = vadd.f32 %v1022, %v1134
        %v1136 = vpop.f32.mrb[0].mxu0
        %v1137 = vadd.f32 %v1024, %v1136
        %1138 = vmatprep.mubr.bf16.mxu0 %v562
        %1139 = vmatmul.mubr.bf16.gmra.mrb[0].mxu0 %v561
        %v1140 = vpop.f32.mrb[0].mxu0
        %v1141 = vadd.f32 %v1028, %v1140
        %v1142 = vpop.f32.mrb[0].mxu0
        %v1143 = vadd.f32 %v1030, %v1142
        %v1144 = vpop.f32.mrb[0].mxu0
        %v1145 = vadd.f32 %v1032, %v1144
        %v1146 = vpop.f32.mrb[0].mxu0
        %v1147 = vadd.f32 %v1034, %v1146
        %1148 = vmatprep.mubr.bf16.mxu0 %v566
        %1149 = vmatmul.mubr.bf16.gmra.mrb[0].mxu0 %v565
        %v1150 = vpop.f32.mrb[0].mxu0
        %v1151 = vadd.f32 %v1038, %v1150
        %v1152 = vpop.f32.mrb[0].mxu0
        %v1153 = vadd.f32 %v1040, %v1152
        %v1154 = vpop.f32.mrb[0].mxu0
        %v1155 = vadd.f32 %v1042, %v1154
        %v1156 = vpop.f32.mrb[0].mxu0
        %v1157 = vadd.f32 %v1044, %v1156
        %1158 = vmatprep.mubr.bf16.mxu0 %v570
        %1159 = vmatmul.mubr.bf16.gmra.mrb[0].mxu0 %v569
        %v1160 = vpop.f32.mrb[0].mxu0
        %v1161 = vadd.f32 %v1048, %v1160
        %v1162 = vpop.f32.mrb[0].mxu0
        %v1163 = vadd.f32 %v1050, %v1162
        %v1164 = vpop.f32.mrb[0].mxu0
        %v1165 = vadd.f32 %v1052, %v1164
        %v1166 = vpop.f32.mrb[0].mxu0
        %v1167 = vadd.f32 %v1054, %v1166
        %1168 = vmatprep.mubr.bf16.mxu0 %v574
        %1169 = vmatmul.mubr.bf16.gmra.mrb[0].mxu0 %v573
        %v1170 = vpop.f32.mrb[0].mxu0
        %v1171 = vadd.f32 %v1058, %v1170
        %v1172 = vpop.f32.mrb[0].mxu0
        %v1173 = vadd.f32 %v1060, %v1172
        %v1174 = vpop.f32.mrb[0].mxu0
        %v1175 = vadd.f32 %v1062, %v1174
        %v1176 = vpop.f32.mrb[0].mxu0
        %v1177 = vadd.f32 %v1064, %v1176
        %1178 = vmatprep.mubr.bf16.mxu0 %v578
        %1179 = vmatmul.mubr.bf16.gmra.mrb[0].mxu0 %v577
        %v1180 = vpop.f32.mrb[0].mxu0
        %v1181 = vadd.f32 %v1068, %v1180
        %v1182 = vpop.f32.mrb[0].mxu0
        %v1183 = vadd.f32 %v1070, %v1182
        %v1184 = vpop.f32.mrb[0].mxu0
        %v1185 = vadd.f32 %v1072, %v1184
        %v1186 = vpop.f32.mrb[0].mxu0
        %v1187 = vadd.f32 %v1074, %v1186
        %1188 = vmatprep.mubr.bf16.mxu0 %v582
        %1189 = vmatmul.mubr.bf16.gmra.mrb[0].mxu0 %v581
        %v1190 = vpop.f32.mrb[0].mxu0
        %v1191 = vadd.f32 %v1078, %v1190
        %v1192 = vpop.f32.mrb[0].mxu0
        %v1193 = vadd.f32 %v1080, %v1192
        %v1194 = vpop.f32.mrb[0].mxu0
        %v1195 = vadd.f32 %v1082, %v1194
        %v1196 = vpop.f32.mrb[0].mxu0
        %v1197 = vadd.f32 %v1084, %v1196
        %1198 = vmatprep.mubr.bf16.mxu0 %v586
        %1199 = vmatmul.mubr.bf16.gmra.mrb[0].mxu0 %v585
        %v1200 = vpop.f32.mrb[0].mxu0
        %v1201 = vadd.f32 %v1088, %v1200
        %v1202 = vpop.f32.mrb[0].mxu0
        %v1203 = vadd.f32 %v1090, %v1202
        %v1204 = vpop.f32.mrb[0].mxu0
        %v1205 = vadd.f32 %v1092, %v1204
        %v1206 = vpop.f32.mrb[0].mxu0
        %v1207 = vadd.f32 %v1094, %v1206
        %1208 = vdwg.mxu0
        %v1209 = vmax.f32 %v1131, %v1135
        %v1210 = vmax.f32 %v1209, %v1141
        %v1211 = vmax.f32 %v1210, %v1145
        %v1212 = vrot.slane %v1211, 4
        %v1213 = vmax.f32 %v1211, %v1212
        %v1214 = vrot.slane %v1213, 2
        %v1215 = vmax.f32 %v1213, %v1214
        %v1216 = vrot.slane %v1215, 1
        %v1217 = vmax.f32 %v1215, %v1216
        %v1218 = vmax.f32 %v1133, %v1137
        %v1219 = vmax.f32 %v1218, %v1143
        %v1220 = vmax.f32 %v1219, %v1147
        %v1221 = vrot.slane %v1220, 4
        %v1222 = vmax.f32 %v1220, %v1221
        %v1223 = vrot.slane %v1222, 2
        %v1224 = vmax.f32 %v1222, %v1223
        %v1225 = vrot.slane %v1224, 1
        %v1226 = vmax.f32 %v1224, %v1225
        %v1227 = vmax.f32 %v1151, %v1155
        %v1228 = vmax.f32 %v1227, %v1161
        %v1229 = vmax.f32 %v1228, %v1165
        %v1230 = vrot.slane %v1229, 4
        %v1231 = vmax.f32 %v1229, %v1230
        %v1232 = vrot.slane %v1231, 2
        %v1233 = vmax.f32 %v1231, %v1232
        %v1234 = vrot.slane %v1233, 1
        %v1235 = vmax.f32 %v1233, %v1234
        %v1236 = vmax.f32 %v1153, %v1157
        %v1237 = vmax.f32 %v1236, %v1163
        %v1238 = vmax.f32 %v1237, %v1167
        %v1239 = vrot.slane %v1238, 4
        %v1240 = vmax.f32 %v1238, %v1239
        %v1241 = vrot.slane %v1240, 2
        %v1242 = vmax.f32 %v1240, %v1241
        %v1243 = vrot.slane %v1242, 1
        %v1244 = vmax.f32 %v1242, %v1243
        %v1245 = vmax.f32 %v1171, %v1175
        %v1246 = vmax.f32 %v1245, %v1181
        %v1247 = vmax.f32 %v1246, %v1185
        %v1248 = vrot.slane %v1247, 4
        %v1249 = vmax.f32 %v1247, %v1248
        %v1250 = vrot.slane %v1249, 2
        %v1251 = vmax.f32 %v1249, %v1250
        %v1252 = vrot.slane %v1251, 1
        %v1253 = vmax.f32 %v1251, %v1252
        %v1254 = vmax.f32 %v1173, %v1177
        %v1255 = vmax.f32 %v1254, %v1183
        %v1256 = vmax.f32 %v1255, %v1187
        %v1257 = vrot.slane %v1256, 4
        %v1258 = vmax.f32 %v1256, %v1257
        %v1259 = vrot.slane %v1258, 2
        %v1260 = vmax.f32 %v1258, %v1259
        %v1261 = vrot.slane %v1260, 1
        %v1262 = vmax.f32 %v1260, %v1261
        %v1263 = vmax.f32 %v1191, %v1195
        %v1264 = vmax.f32 %v1263, %v1201
        %v1265 = vmax.f32 %v1264, %v1205
        %v1266 = vrot.slane %v1265, 4
        %v1267 = vmax.f32 %v1265, %v1266
        %v1268 = vrot.slane %v1267, 2
        %v1269 = vmax.f32 %v1267, %v1268
        %v1270 = vrot.slane %v1269, 1
        %v1271 = vmax.f32 %v1269, %v1270
        %v1272 = vmax.f32 %v1193, %v1197
        %v1273 = vmax.f32 %v1272, %v1203
        %v1274 = vmax.f32 %v1273, %v1207
        %v1275 = vrot.slane %v1274, 4
        %v1276 = vmax.f32 %v1274, %v1275
        %v1277 = vrot.slane %v1276, 2
        %v1278 = vmax.f32 %v1276, %v1277
        %v1279 = vrot.slane %v1278, 1
        %v1280 = vmax.f32 %v1278, %v1279
        %v1289 = vcombine.low %v1217, %v1226
        %v1290 = vcombine.low %v1235, %v1244
        %v1291 = vcombine.low %v1253, %v1262
        %v1292 = vcombine.low %v1271, %v1280
        %v1293 = vrot.slane %v1290, 7
        %vm1294 = vcmask 1041409
        %v1295 = vsel %vm1294, %v1293, %v1289
        %vm1296 = vcmask 1045509
        %v1297 = vsel %vm1296, %v1293, %v1295
        %v1298 = vrot.slane %v1291, 6
        %vm1299 = vcmask 1042434
        %v1300 = vsel %vm1299, %v1298, %v1297
        %vm1301 = vcmask 1046534
        %v1302 = vsel %vm1301, %v1298, %v1300
        %v1303 = vrot.slane %v1292, 5
        %vm1304 = vcmask 1043459
        %v1305 = vsel %vm1304, %v1303, %v1302
        %vm1306 = vcmask 1047559
        %v1307 = vsel %vm1306, %v1303, %v1305
        %1309 = vst [vmem:[%s217] sm:$0xff] %v1307
        %s1310 = sand.u32 %s137, 1
        %s1311 = scalar_lea.sflag [#allocation3], %s1310
        %s1312 = sand.u32 %s137, 1
        %s1313 = smul.addr %s1312, 8
        %s1314 = scalar_lea.vmem [#allocation2], %s1313
        // Predicated region
        $region41: #{masked_mini_pointnet.3} parent=39 // pred_check
          %p1315 = pneg %p147
        $region42: #{masked_mini_pointnet.3} parent=39 // pred_check_branch
          %1317 = sbr.rel (%p1315) target = $region44
        $region43: #{masked_mini_pointnet.3} parent=39 // pred_region
          %s1319 = ssub.s32 128, 128
          %1320 = vsyncadd %s1311, %s1319
          %s1321 = smul.addr %s19, 2
          %s1322 = smul.addr %s1321, 64
          %s1323 = scalar_lea.hbm %s5, %s1322
          %s1325 = sshll.u32 %s1314, 4
          %s1326 = int_to_ptr.vmem [resolvable:$true] %s1325
          %1328 = dma.vmem_to_hbm [thread:$0]  %s1326, 128, %s1323, %s1311
        $region44: #{masked_mini_pointnet.3} parent=39 // pred_fallthru
          _
      $region40: #{masked_mini_pointnet.3} parent=5 // pred_fallthru
        _
      %p1329 = scmp.le.s32.totalorder 2, %s14
      // Predicated region
      $region45: #{masked_mini_pointnet.3} parent=5 // pred_check
        %p1330 = pneg %p1329
      $region46: #{masked_mini_pointnet.3} parent=5 // pred_check_branch
        %1332 = sbr.rel (%p1330) target = $region48
      $region47: #{masked_mini_pointnet.3} parent=5 // pred_region
        %s1333 = ssub.s32 %s14, 2
        // Predicated region
        $region49: #{masked_mini_pointnet.3} parent=47 // pred_check
          %p1334 = pneg %p153
        $region50: #{masked_mini_pointnet.3} parent=47 // pred_check_branch
          %1336 = sbr.rel (%p1334) target = $region52
        $region51: #{masked_mini_pointnet.3} parent=47 // pred_region
          %s1337 = sand.u32 %s138, 1
          %s1338 = scalar_lea.sflag [#allocation3], %s1337
          %s1339 = sand.u32 %s138, 1
          %s1340 = smul.addr %s1339, 8
          %s1341 = scalar_lea.vmem [#allocation2], %s1340
          %1342 = dma.done %s1338, 128
        $region52: #{masked_mini_pointnet.3} parent=47 // pred_fallthru
          _
      $region48: #{masked_mini_pointnet.3} parent=5 // pred_fallthru
        _
    $region6: #{masked_mini_pointnet.3} parent=1 // loop_footer
      %s18 = sadd.s32 1, %s14
    $region7: #{masked_mini_pointnet.3} parent=1 // loop_footer_branch
      %13 = sbr.rel target = $region3
    $region8: #{masked_mini_pointnet.3} parent=1 // loop_exit
      _
    %1343 = vsyncpa [#allocation3], 1
    %s1344 = scalar_lea.sflag [#allocation3], 1
    %1345 = vsyncpa %s1344, 1

// kernel: masked_mini_pointnet.2
$region0: #{masked_mini_pointnet.2}
  #allocation0 [shape = 'u32[]', space=smem, size = 0x4, offset = 0x4, fixed_abs, tag = 'smem constant byte address 0x4 - core index']
  #allocation1 [shape = 'u32[144,128]{1,0:T(1,128)}', space=vmem, size = 0x12000, scoped, tag = 'internal scratch']
  %s0 = inlined_call_operand.vmem [shape: f32[2,128,8], index: 0, kind: input, shape index: {}]
  %s1 = inlined_call_operand.vmem [shape: bf16[2,128,1], index: 1, kind: input, shape index: {}]
  %s2 = inlined_call_operand.vmem [shape: f32[8,128], index: 2, kind: input, shape index: {}]
  %s3 = inlined_call_operand.vmem [shape: f32[1,128], index: 3, kind: input, shape index: {}]
  %s4 = inlined_call_operand.vmem [shape: f32[1,128], index: 4, kind: input, shape index: {}]
  %s5 = inlined_call_operand.vmem [shape: bf16[128,256], index: 5, kind: input, shape index: {}]
  %s6 = inlined_call_operand.vmem [shape: f32[1,256], index: 6, kind: input, shape index: {}]
  %s7 = inlined_call_operand.vmem [shape: bf16[256,512], index: 7, kind: input, shape index: {}]
  %s8 = inlined_call_operand.vmem [shape: bf16[256,512], index: 8, kind: input, shape index: {}]
  %s9 = inlined_call_operand.vmem [shape: bf16[2,128,512], index: 9, kind: output, shape index: {0}]
  %s10 = inlined_call_operand.vmem [shape: f32[2,8,512], index: 10, kind: output, shape index: {1}]
  %11 = xla_tuple %s9, %s10
  %s12 = sld [smem:[#allocation0]]
  $region77: #{masked_mini_pointnet.2} parent=0
    _
  %s14 = ssub.s32 1, %s12
  %s15 = scalar_select 0, %s14, %s12
  loop: start=0, step=1, limit=4
  $region2: #{masked_mini_pointnet.2} parent=0 // loop_pre_header
    _
  $region3: #{masked_mini_pointnet.2} parent=0 // loop_header
    %s17 = sphi 0, %s21
    %p18 = scmp.ge.s32.totalorder %s17, 4
    %s27 = sphi 0, %s29
    %s30 = sphi 0, %s27
    %s31 = sphi 0, %s30
    %s47 = sphi 0, %s31
    %s53 = sphi 0, %s55
    %s56 = sphi 0, %s53
    %s57 = sphi 0, %s56
    %s73 = sphi 0, %s57
    %s77 = sphi 0, %s77
    %s79 = sphi 0, %s77
    %s80 = sphi 0, %s79
    %s94 = sphi 0, %s80
    %s98 = sphi 0, %s98
    %s100 = sphi 0, %s98
    %s101 = sphi 0, %s100
    %s115 = sphi 0, %s101
    %s119 = sphi 0, %s119
    %s121 = sphi 0, %s119
    %s122 = sphi 0, %s121
    %s136 = sphi 0, %s122
    %s140 = sphi 0, %s140
    %s142 = sphi 0, %s140
    %s143 = sphi 0, %s142
    %s157 = sphi 0, %s143
    %s161 = sphi 0, %s161
    %s163 = sphi 0, %s161
    %s164 = sphi 0, %s163
    %s178 = sphi 0, %s164
    %s182 = sphi 0, %s182
    %s184 = sphi 0, %s182
    %s185 = sphi 0, %s184
    %s199 = sphi 0, %s185
    %s203 = sphi 0, %s203
    %s205 = sphi 0, %s203
    %s206 = sphi 0, %s205
    %s220 = sphi 0, %s206
    %s226 = sphi 0, %s228
    %s229 = sphi 0, %s226
    %s230 = sphi 0, %s229
    %s246 = sphi 0, %s230
    %s252 = sphi 0, %s254
    %s255 = sphi 0, %s252
    %s256 = sphi 0, %s255
    %s272 = sphi 0, %s256
  $region4: #{masked_mini_pointnet.2} parent=0 // loop_header_branch
    %20 = sbr.rel (%p18) target = $region8
  $region5: #{masked_mini_pointnet.2} parent=0 // loop_body
    %s22 = ssub.s32 %s17, 1
    %s23 = ssub.s32 %s17, 2
    %s24 = sadd.s32 %s17, 1
    %s25 = ssub.s32 %s17, %s24
    %p26 = scmp.eq.s32.totalorder %s25, 0
    %s28 = sadd.s32 %s27, 1
    %s29 = scalar_select %p26, %s27, %s28
    %p32 = pneg %p26
    %p33 = scmp.eq.s32.totalorder %s17, 1
    %p34 = por %p32, %p33
    %p35 = scmp.ne.s32.totalorder %s27, %s30
    %p36 = scmp.eq.s32.totalorder %s17, 0
    %p37 = por %p35, %p36
    %p38 = scmp.ne.s32.totalorder %s27, %s30
    %p39 = scmp.eq.s32.totalorder %s22, 1
    %p40 = por %p38, %p39
    %p41 = scmp.ne.s32.totalorder %s30, %s31
    %p42 = scmp.eq.s32.totalorder %s22, 0
    %p43 = por %p41, %p42
    %p44 = scmp.ne.s32.totalorder %s30, %s31
    %p45 = scmp.eq.s32.totalorder %s23, 1
    %p46 = por %p44, %p45
    %p48 = scmp.ne.s32.totalorder %s31, %s47
    %p49 = scmp.eq.s32.totalorder %s23, 0
    %p50 = por %p48, %p49
    %s51 = ssub.s32 %s17, %s24
    %p52 = scmp.eq.s32.totalorder %s51, 0
    %s54 = sadd.s32 %s53, 1
    %s55 = scalar_select %p52, %s53, %s54
    %p58 = pneg %p52
    %p59 = scmp.eq.s32.totalorder %s17, 1
    %p60 = por %p58, %p59
    %p61 = scmp.ne.s32.totalorder %s53, %s56
    %p62 = scmp.eq.s32.totalorder %s17, 0
    %p63 = por %p61, %p62
    %p64 = scmp.ne.s32.totalorder %s53, %s56
    %p65 = scmp.eq.s32.totalorder %s22, 1
    %p66 = por %p64, %p65
    %p67 = scmp.ne.s32.totalorder %s56, %s57
    %p68 = scmp.eq.s32.totalorder %s22, 0
    %p69 = por %p67, %p68
    %p70 = scmp.ne.s32.totalorder %s56, %s57
    %p71 = scmp.eq.s32.totalorder %s23, 1
    %p72 = por %p70, %p71
    %p74 = scmp.ne.s32.totalorder %s57, %s73
    %p75 = scmp.eq.s32.totalorder %s23, 0
    %p76 = por %p74, %p75
    %s78 = sadd.s32 %s77, 1
    %p81 = scmp.eq.s32.totalorder %s17, 1
    %p82 = scmp.ne.s32.totalorder %s77, %s79
    %p83 = scmp.eq.s32.totalorder %s17, 0
    %p84 = por %p82, %p83
    %p85 = scmp.ne.s32.totalorder %s77, %s79
    %p86 = scmp.eq.s32.totalorder %s22, 1
    %p87 = por %p85, %p86
    %p88 = scmp.ne.s32.totalorder %s79, %s80
    %p89 = scmp.eq.s32.totalorder %s22, 0
    %p90 = por %p88, %p89
    %p91 = scmp.ne.s32.totalorder %s79, %s80
    %p92 = scmp.eq.s32.totalorder %s23, 1
    %p93 = por %p91, %p92
    %p95 = scmp.ne.s32.totalorder %s80, %s94
    %p96 = scmp.eq.s32.totalorder %s23, 0
    %p97 = por %p95, %p96
    %s99 = sadd.s32 %s98, 1
    %p102 = scmp.eq.s32.totalorder %s17, 1
    %p103 = scmp.ne.s32.totalorder %s98, %s100
    %p104 = scmp.eq.s32.totalorder %s17, 0
    %p105 = por %p103, %p104
    %p106 = scmp.ne.s32.totalorder %s98, %s100
    %p107 = scmp.eq.s32.totalorder %s22, 1
    %p108 = por %p106, %p107
    %p109 = scmp.ne.s32.totalorder %s100, %s101
    %p110 = scmp.eq.s32.totalorder %s22, 0
    %p111 = por %p109, %p110
    %p112 = scmp.ne.s32.totalorder %s100, %s101
    %p113 = scmp.eq.s32.totalorder %s23, 1
    %p114 = por %p112, %p113
    %p116 = scmp.ne.s32.totalorder %s101, %s115
    %p117 = scmp.eq.s32.totalorder %s23, 0
    %p118 = por %p116, %p117
    %s120 = sadd.s32 %s119, 1
    %p123 = scmp.eq.s32.totalorder %s17, 1
    %p124 = scmp.ne.s32.totalorder %s119, %s121
    %p125 = scmp.eq.s32.totalorder %s17, 0
    %p126 = por %p124, %p125
    %p127 = scmp.ne.s32.totalorder %s119, %s121
    %p128 = scmp.eq.s32.totalorder %s22, 1
    %p129 = por %p127, %p128
    %p130 = scmp.ne.s32.totalorder %s121, %s122
    %p131 = scmp.eq.s32.totalorder %s22, 0
    %p132 = por %p130, %p131
    %p133 = scmp.ne.s32.totalorder %s121, %s122
    %p134 = scmp.eq.s32.totalorder %s23, 1
    %p135 = por %p133, %p134
    %p137 = scmp.ne.s32.totalorder %s122, %s136
    %p138 = scmp.eq.s32.totalorder %s23, 0
    %p139 = por %p137, %p138
    %s141 = sadd.s32 %s140, 1
    %p144 = scmp.eq.s32.totalorder %s17, 1
    %p145 = scmp.ne.s32.totalorder %s140, %s142
    %p146 = scmp.eq.s32.totalorder %s17, 0
    %p147 = por %p145, %p146
    %p148 = scmp.ne.s32.totalorder %s140, %s142
    %p149 = scmp.eq.s32.totalorder %s22, 1
    %p150 = por %p148, %p149
    %p151 = scmp.ne.s32.totalorder %s142, %s143
    %p152 = scmp.eq.s32.totalorder %s22, 0
    %p153 = por %p151, %p152
    %p154 = scmp.ne.s32.totalorder %s142, %s143
    %p155 = scmp.eq.s32.totalorder %s23, 1
    %p156 = por %p154, %p155
    %p158 = scmp.ne.s32.totalorder %s143, %s157
    %p159 = scmp.eq.s32.totalorder %s23, 0
    %p160 = por %p158, %p159
    %s162 = sadd.s32 %s161, 1
    %p165 = scmp.eq.s32.totalorder %s17, 1
    %p166 = scmp.ne.s32.totalorder %s161, %s163
    %p167 = scmp.eq.s32.totalorder %s17, 0
    %p168 = por %p166, %p167
    %p169 = scmp.ne.s32.totalorder %s161, %s163
    %p170 = scmp.eq.s32.totalorder %s22, 1
    %p171 = por %p169, %p170
    %p172 = scmp.ne.s32.totalorder %s163, %s164
    %p173 = scmp.eq.s32.totalorder %s22, 0
    %p174 = por %p172, %p173
    %p175 = scmp.ne.s32.totalorder %s163, %s164
    %p176 = scmp.eq.s32.totalorder %s23, 1
    %p177 = por %p175, %p176
    %p179 = scmp.ne.s32.totalorder %s164, %s178
    %p180 = scmp.eq.s32.totalorder %s23, 0
    %p181 = por %p179, %p180
    %s183 = sadd.s32 %s182, 1
    %p186 = scmp.eq.s32.totalorder %s17, 1
    %p187 = scmp.ne.s32.totalorder %s182, %s184
    %p188 = scmp.eq.s32.totalorder %s17, 0
    %p189 = por %p187, %p188
    %p190 = scmp.ne.s32.totalorder %s182, %s184
    %p191 = scmp.eq.s32.totalorder %s22, 1
    %p192 = por %p190, %p191
    %p193 = scmp.ne.s32.totalorder %s184, %s185
    %p194 = scmp.eq.s32.totalorder %s22, 0
    %p195 = por %p193, %p194
    %p196 = scmp.ne.s32.totalorder %s184, %s185
    %p197 = scmp.eq.s32.totalorder %s23, 1
    %p198 = por %p196, %p197
    %p200 = scmp.ne.s32.totalorder %s185, %s199
    %p201 = scmp.eq.s32.totalorder %s23, 0
    %p202 = por %p200, %p201
    %s204 = sadd.s32 %s203, 1
    %p207 = scmp.eq.s32.totalorder %s17, 1
    %p208 = scmp.ne.s32.totalorder %s203, %s205
    %p209 = scmp.eq.s32.totalorder %s17, 0
    %p210 = por %p208, %p209
    %p211 = scmp.ne.s32.totalorder %s203, %s205
    %p212 = scmp.eq.s32.totalorder %s22, 1
    %p213 = por %p211, %p212
    %p214 = scmp.ne.s32.totalorder %s205, %s206
    %p215 = scmp.eq.s32.totalorder %s22, 0
    %p216 = por %p214, %p215
    %p217 = scmp.ne.s32.totalorder %s205, %s206
    %p218 = scmp.eq.s32.totalorder %s23, 1
    %p219 = por %p217, %p218
    %p221 = scmp.ne.s32.totalorder %s206, %s220
    %p222 = scmp.eq.s32.totalorder %s23, 0
    %p223 = por %p221, %p222
    %s224 = ssub.s32 %s17, %s24
    %p225 = scmp.eq.s32.totalorder %s224, 0
    %s227 = sadd.s32 %s226, 1
    %s228 = scalar_select %p225, %s226, %s227
    %p231 = pneg %p225
    %p232 = scmp.eq.s32.totalorder %s17, 1
    %p233 = por %p231, %p232
    %p234 = scmp.ne.s32.totalorder %s226, %s229
    %p235 = scmp.eq.s32.totalorder %s17, 0
    %p236 = por %p234, %p235
    %p237 = scmp.ne.s32.totalorder %s226, %s229
    %p238 = scmp.eq.s32.totalorder %s22, 1
    %p239 = por %p237, %p238
    %p240 = scmp.ne.s32.totalorder %s229, %s230
    %p241 = scmp.eq.s32.totalorder %s22, 0
    %p242 = por %p240, %p241
    %p243 = scmp.ne.s32.totalorder %s229, %s230
    %p244 = scmp.eq.s32.totalorder %s23, 1
    %p245 = por %p243, %p244
    %p247 = scmp.ne.s32.totalorder %s230, %s246
    %p248 = scmp.eq.s32.totalorder %s23, 0
    %p249 = por %p247, %p248
    %s250 = ssub.s32 %s17, %s24
    %p251 = scmp.eq.s32.totalorder %s250, 0
    %s253 = sadd.s32 %s252, 1
    %s254 = scalar_select %p251, %s252, %s253
    %p257 = pneg %p251
    %p258 = scmp.eq.s32.totalorder %s17, 1
    %p259 = por %p257, %p258
    %p260 = scmp.ne.s32.totalorder %s252, %s255
    %p261 = scmp.eq.s32.totalorder %s17, 0
    %p262 = por %p260, %p261
    %p263 = scmp.ne.s32.totalorder %s252, %s255
    %p264 = scmp.eq.s32.totalorder %s22, 1
    %p265 = por %p263, %p264
    %p266 = scmp.ne.s32.totalorder %s255, %s256
    %p267 = scmp.eq.s32.totalorder %s22, 0
    %p268 = por %p266, %p267
    %p269 = scmp.ne.s32.totalorder %s255, %s256
    %p270 = scmp.eq.s32.totalorder %s23, 1
    %p271 = por %p269, %p270
    %p273 = scmp.ne.s32.totalorder %s256, %s272
    %p274 = scmp.eq.s32.totalorder %s23, 0
    %p275 = por %p273, %p274
    %p276 = scmp.le.s32.totalorder 1, %s17
    %p277 = scmp.lt.s32.totalorder %s17, 3
    %p278 = pnand %p276, %p277
    %p279 = pneg %p278
    // Predicated region
    $region9: #{masked_mini_pointnet.2} parent=5 // pred_check
      _
    $region10: #{masked_mini_pointnet.2} parent=5 // pred_check_branch
      %281 = sbr.rel (%p278) target = $region12
    $region11: #{masked_mini_pointnet.2} parent=5 // pred_region
      %s282 = ssub.s32 %s17, 1
      // Predicated region
      $region13: #{masked_mini_pointnet.2} parent=11 // pred_check
        %p283 = pneg %p90
      $region14: #{masked_mini_pointnet.2} parent=11 // pred_check_branch
        %285 = sbr.rel (%p283) target = $region16
      $region15: #{masked_mini_pointnet.2} parent=11 // pred_region
        _
      $region16: #{masked_mini_pointnet.2} parent=11 // pred_fallthru
        _
      // Predicated region
      $region17: #{masked_mini_pointnet.2} parent=11 // pred_check
        %p286 = pneg %p111
      $region18: #{masked_mini_pointnet.2} parent=11 // pred_check_branch
        %288 = sbr.rel (%p286) target = $region20
      $region19: #{masked_mini_pointnet.2} parent=11 // pred_region
        _
      $region20: #{masked_mini_pointnet.2} parent=11 // pred_fallthru
        _
      // Predicated region
      $region21: #{masked_mini_pointnet.2} parent=11 // pred_check
        %p289 = pneg %p132
      $region22: #{masked_mini_pointnet.2} parent=11 // pred_check_branch
        %291 = sbr.rel (%p289) target = $region24
      $region23: #{masked_mini_pointnet.2} parent=11 // pred_region
        _
      $region24: #{masked_mini_pointnet.2} parent=11 // pred_fallthru
        _
      // Predicated region
      $region25: #{masked_mini_pointnet.2} parent=11 // pred_check
        %p292 = pneg %p153
      $region26: #{masked_mini_pointnet.2} parent=11 // pred_check_branch
        %294 = sbr.rel (%p292) target = $region28
      $region27: #{masked_mini_pointnet.2} parent=11 // pred_region
        _
      $region28: #{masked_mini_pointnet.2} parent=11 // pred_fallthru
        _
      // Predicated region
      $region29: #{masked_mini_pointnet.2} parent=11 // pred_check
        %p295 = pneg %p174
      $region30: #{masked_mini_pointnet.2} parent=11 // pred_check_branch
        %297 = sbr.rel (%p295) target = $region32
      $region31: #{masked_mini_pointnet.2} parent=11 // pred_region
        _
      $region32: #{masked_mini_pointnet.2} parent=11 // pred_fallthru
        _
      // Predicated region
      $region33: #{masked_mini_pointnet.2} parent=11 // pred_check
        %p298 = pneg %p195
      $region34: #{masked_mini_pointnet.2} parent=11 // pred_check_branch
        %300 = sbr.rel (%p298) target = $region36
      $region35: #{masked_mini_pointnet.2} parent=11 // pred_region
        _
      $region36: #{masked_mini_pointnet.2} parent=11 // pred_fallthru
        _
      // Predicated region
      $region37: #{masked_mini_pointnet.2} parent=11 // pred_check
        %p301 = pneg %p216
      $region38: #{masked_mini_pointnet.2} parent=11 // pred_check_branch
        %303 = sbr.rel (%p301) target = $region40
      $region39: #{masked_mini_pointnet.2} parent=11 // pred_region
        _
      $region40: #{masked_mini_pointnet.2} parent=11 // pred_fallthru
        _
    $region12: #{masked_mini_pointnet.2} parent=5 // pred_fallthru
      _
    %p304 = scmp.lt.s32.totalorder %s17, 2
    // Predicated region
    $region41: #{masked_mini_pointnet.2} parent=5 // pred_check
      %p305 = pneg %p304
    $region42: #{masked_mini_pointnet.2} parent=5 // pred_check_branch
      %307 = sbr.rel (%p305) target = $region44
    $region43: #{masked_mini_pointnet.2} parent=5 // pred_region
      // Predicated region
      $region45: #{masked_mini_pointnet.2} parent=43 // pred_check
        %p308 = pneg %p37
      $region46: #{masked_mini_pointnet.2} parent=43 // pred_check_branch
        %310 = sbr.rel (%p308) target = $region48
      $region47: #{masked_mini_pointnet.2} parent=43 // pred_region
        %p311 = scmp.lt.s32.totalorder %s17, 1
        %s312 = scalar_select %p311, %s17, 1
        %s313 = smul.addr %s312, 16
        %s314 = smul.addr %s313, 8
        %s315 = scalar_lea.vmem %s0, %s314
      $region48: #{masked_mini_pointnet.2} parent=43 // pred_fallthru
        _
      // Predicated region
      $region49: #{masked_mini_pointnet.2} parent=43 // pred_check
        %p316 = pneg %p63
      $region50: #{masked_mini_pointnet.2} parent=43 // pred_check_branch
        %318 = sbr.rel (%p316) target = $region52
      $region51: #{masked_mini_pointnet.2} parent=43 // pred_region
        %p319 = scmp.lt.s32.totalorder %s17, 1
        %s320 = scalar_select %p319, %s17, 1
        %s321 = smul.addr %s320, 16
        %s322 = smul.addr %s321, 4
        %s323 = scalar_lea.vmem %s1, %s322
      $region52: #{masked_mini_pointnet.2} parent=43 // pred_fallthru
        _
    $region44: #{masked_mini_pointnet.2} parent=5 // pred_fallthru
      _
    %p324 = scmp.le.s32.totalorder 1, %s17
    %p325 = scmp.lt.s32.totalorder %s17, 3
    %p326 = pnand %p324, %p325
    %p327 = pneg %p326
    // Predicated region
    $region53: #{masked_mini_pointnet.2} parent=5 // pred_check
      _
    $region54: #{masked_mini_pointnet.2} parent=5 // pred_check_branch
      %329 = sbr.rel (%p326) target = $region56
    $region55: #{masked_mini_pointnet.2} parent=5 // pred_region
      %s330 = ssub.s32 %s17, 1
      %p331 = scmp.lt.s32.totalorder %s22, 1
      %s332 = scalar_select %p331, %s22, 1
      %s333 = smul.addr %s332, 16
      %s334 = smul.addr %s333, 8
      %s335 = scalar_lea.vmem %s0, %s334
      %p336 = pneg %p43
      %p337 = pneg %p40
      %p338 = scmp.lt.s32.totalorder %s22, 1
      %s339 = scalar_select %p338, %s22, 1
      %s340 = smul.addr %s339, 16
      %s341 = smul.addr %s340, 4
      %s342 = scalar_lea.vmem %s1, %s341
      %p343 = pneg %p69
      %p344 = pneg %p66
      %p345 = pneg %p90
      %p346 = pneg %p87
      %p347 = pneg %p111
      %p348 = pneg %p108
      %p349 = pneg %p132
      %p350 = pneg %p129
      %p351 = pneg %p153
      %p352 = pneg %p150
      %p353 = pneg %p174
      %p354 = pneg %p171
      %p355 = pneg %p195
      %p356 = pneg %p192
      %p357 = pneg %p216
      %p358 = pneg %p213
      %p359 = pneg %p242
      %p360 = pneg %p239
      %p361 = scmp.lt.s32.totalorder %s22, 1
      %s362 = scalar_select %p361, %s22, 1
      %s363 = smul.addr %s362, 64
      %s364 = smul.addr %s363, 4
      %s365 = scalar_lea.vmem %s9, %s364
      %p366 = pneg %p268
      %p367 = pneg %p265
      %p368 = scmp.lt.s32.totalorder %s22, 1
      %s369 = scalar_select %p368, %s22, 1
      %s370 = smul.addr %s369, 4
      %s371 = smul.addr %s370, 8
      %s372 = scalar_lea.vmem %s10, %s371
      %p373 = scmp.lt.s32.totalorder %s22, 1
      %s374 = scalar_select %p373, %s22, 1
      %s375 = smul.addr %s374, 16
      %s376 = smul.addr %s375, 8
      %s377 = scalar_lea.vmem %s0, %s376
      %p378 = scmp.lt.s32.totalorder %s22, 1
      %s379 = scalar_select %p378, %s22, 1
      %s380 = smul.addr %s379, 16
      %s381 = smul.addr %s380, 4
      %s382 = scalar_lea.vmem %s1, %s381
      %p383 = scmp.lt.s32.totalorder %s22, 1
      %s384 = scalar_select %p383, %s22, 1
      %s385 = smul.addr %s384, 64
      %s386 = smul.addr %s385, 4
      %s387 = scalar_lea.vmem %s9, %s386
      %p388 = scmp.lt.s32.totalorder %s22, 1
      %s389 = scalar_select %p388, %s22, 1
      %s390 = smul.addr %s389, 4
      %s391 = smul.addr %s390, 8
      %s392 = scalar_lea.vmem %s10, %s391
      %v394 = vld [vmem:[%s377] sm:$0xff]
      %v395 = vld [vmem:[%s377 + $0x8] sm:$0xff]
      %v396 = vld [vmem:[%s377 + $0x10] sm:$0xff]
      %v397 = vld [vmem:[%s377 + $0x18] sm:$0xff]
      %v398 = vld [vmem:[%s377 + $0x20] sm:$0xff]
      %v399 = vld [vmem:[%s377 + $0x28] sm:$0xff]
      %v400 = vld [vmem:[%s377 + $0x30] sm:$0xff]
      %v401 = vld [vmem:[%s377 + $0x38] sm:$0xff]
      %v402 = vld [vmem:[%s377 + $0x40] sm:$0xff]
      %v403 = vld [vmem:[%s377 + $0x48] sm:$0xff]
      %v404 = vld [vmem:[%s377 + $0x50] sm:$0xff]
      %v405 = vld [vmem:[%s377 + $0x58] sm:$0xff]
      %v406 = vld [vmem:[%s377 + $0x60] sm:$0xff]
      %v407 = vld [vmem:[%s377 + $0x68] sm:$0xff]
      %v408 = vld [vmem:[%s377 + $0x70] sm:$0xff]
      %v409 = vld [vmem:[%s377 + $0x78] sm:$0xff]
      %v410 = vld [vmem:[%s2] sm:$0xff]
      %vm411 = vcmask 64512
      %v413 = vsel %vm411, %v394, 0
      %v416 = vsel %vm411, %v395, 0
      %v419 = vsel %vm411, %v396, 0
      %v422 = vsel %vm411, %v397, 0
      %v425 = vsel %vm411, %v398, 0
      %v428 = vsel %vm411, %v399, 0
      %v431 = vsel %vm411, %v400, 0
      %v434 = vsel %vm411, %v401, 0
      %v437 = vsel %vm411, %v402, 0
      %v440 = vsel %vm411, %v403, 0
      %v443 = vsel %vm411, %v404, 0
      %v446 = vsel %vm411, %v405, 0
      %v449 = vsel %vm411, %v406, 0
      %v452 = vsel %vm411, %v407, 0
      %v455 = vsel %vm411, %v408, 0
      %v458 = vsel %vm411, %v409, 0
      %460 = vmatprep.subr.mxu0 0.0
      %461 = vmatpush1.msra.mxu0 %v410
      %462 = vmatprep.subr.mxu0 0.0
      %463 = vmatpush1.msra.mxu0 0.0
      %464 = vmatprep.subr.mxu0 0.0
      %465 = vmatpush1.msra.mxu0 0.0
      %466 = vmatprep.subr.mxu0 0.0
      %467 = vmatpush1.msra.mxu0 0.0
      %468 = vmatprep.subr.mxu0 0.0
      %469 = vmatpush1.msra.mxu0 0.0
      %470 = vmatprep.subr.mxu0 0.0
      %471 = vmatpush1.msra.mxu0 0.0
      %472 = vmatprep.subr.mxu0 0.0
      %473 = vmatpush1.msra.mxu0 0.0
      %474 = vmatprep.subr.mxu0 0.0
      %475 = vmatpush1.msra.mxu0 0.0
      %476 = vmatprep.subr.mxu0 0.0
      %477 = vmatpush1.msra.mxu0 0.0
      %478 = vmatprep.subr.mxu0 0.0
      %479 = vmatpush1.msra.mxu0 0.0
      %480 = vmatprep.subr.mxu0 0.0
      %481 = vmatpush1.msra.mxu0 0.0
      %482 = vmatprep.subr.mxu0 0.0
      %483 = vmatpush1.msra.mxu0 0.0
      %484 = vmatprep.subr.mxu0 0.0
      %485 = vmatpush1.msra.mxu0 0.0
      %486 = vmatprep.subr.mxu0 0.0
      %487 = vmatpush1.msra.mxu0 0.0
      %488 = vmatprep.subr.mxu0 0.0
      %489 = vmatpush1.msra.mxu0 0.0
      %490 = vmatprep.subr.mxu0 0.0
      %491 = vmatpush1.msra.mxu0 0.0
      %492 = vmatprep.subr.mxu0 0.0
      %493 = vmatpush1.msra.mxu0 0.0
      %494 = vmatprep.subr.mxu0 0.0
      %495 = vmatpush1.msra.mxu0 0.0
      %496 = vmatprep.subr.mxu0 0.0
      %497 = vmatpush1.msra.mxu0 0.0
      %498 = vmatprep.subr.mxu0 0.0
      %499 = vmatpush1.msra.mxu0 0.0
      %500 = vmatprep.subr.mxu0 0.0
      %501 = vmatpush1.msra.mxu0 0.0
      %502 = vmatprep.subr.mxu0 0.0
      %503 = vmatpush1.msra.mxu0 0.0
      %504 = vmatprep.subr.mxu0 0.0
      %505 = vmatpush1.msra.mxu0 0.0
      %506 = vmatprep.subr.mxu0 0.0
      %507 = vmatpush1.msra.mxu0 0.0
      %508 = vmatprep.subr.mxu0 0.0
      %509 = vmatpush1.msra.mxu0 0.0
      %510 = vmatprep.subr.mxu0 0.0
      %511 = vmatpush1.msra.mxu0 0.0
      %512 = vmatprep.subr.mxu0 0.0
      %513 = vmatpush1.msra.mxu0 0.0
      %514 = vmatprep.subr.mxu0 0.0
      %515 = vmatpush1.msra.mxu0 0.0
      %516 = vmatprep.subr.mxu0 0.0
      %517 = vmatpush1.msra.mxu0 0.0
      %518 = vmatprep.subr.mxu0 0.0
      %519 = vmatpush1.msra.mxu0 0.0
      %520 = vmatprep.subr.mxu0 0.0
      %521 = vmatpush1.msra.mxu0 0.0
      %522 = vmatprep.subr.mxu0 0.0
      %523 = vmatpush1.msra.mxu0 0.0
      %524 = vmatprep.mubr.f32.mxu0 0.0
      %525 = vmatmul.mubr.f32.gmra.mrb[0].mxu0 %v413
      %v526 = vpop.f32.mrb[0].mxu0
      %v527 = vadd.f32 0.0, %v526
      %v528 = vpop.f32.mrb[0].mxu0
      %529 = vmatprep.mubr.f32.mxu0 0.0
      %530 = vmatmul.mubr.f32.gmra.mrb[0].mxu0 %v416
      %v531 = vpop.f32.mrb[0].mxu0
      %v532 = vadd.f32 0.0, %v531
      %v533 = vpop.f32.mrb[0].mxu0
      %534 = vmatprep.mubr.f32.mxu0 0.0
      %535 = vmatmul.mubr.f32.gmra.mrb[0].mxu0 %v419
      %v536 = vpop.f32.mrb[0].mxu0
      %v537 = vadd.f32 0.0, %v536
      %v538 = vpop.f32.mrb[0].mxu0
      %539 = vmatprep.mubr.f32.mxu0 0.0
      %540 = vmatmul.mubr.f32.gmra.mrb[0].mxu0 %v422
      %v541 = vpop.f32.mrb[0].mxu0
      %v542 = vadd.f32 0.0, %v541
      %v543 = vpop.f32.mrb[0].mxu0
      %544 = vmatprep.mubr.f32.mxu0 0.0
      %545 = vmatmul.mubr.f32.gmra.mrb[0].mxu0 %v425
      %v546 = vpop.f32.mrb[0].mxu0
      %v547 = vadd.f32 0.0, %v546
      %v548 = vpop.f32.mrb[0].mxu0
      %549 = vmatprep.mubr.f32.mxu0 0.0
      %550 = vmatmul.mubr.f32.gmra.mrb[0].mxu0 %v428
      %v551 = vpop.f32.mrb[0].mxu0
      %v552 = vadd.f32 0.0, %v551
      %v553 = vpop.f32.mrb[0].mxu0
      %554 = vmatprep.mubr.f32.mxu0 0.0
      %555 = vmatmul.mubr.f32.gmra.mrb[0].mxu0 %v431
      %v556 = vpop.f32.mrb[0].mxu0
      %v557 = vadd.f32 0.0, %v556
      %v558 = vpop.f32.mrb[0].mxu0
      %559 = vmatprep.mubr.f32.mxu0 0.0
      %560 = vmatmul.mubr.f32.gmra.mrb[0].mxu0 %v434
      %v561 = vpop.f32.mrb[0].mxu0
      %v562 = vadd.f32 0.0, %v561
      %v563 = vpop.f32.mrb[0].mxu0
      %564 = vmatprep.mubr.f32.mxu0 0.0
      %565 = vmatmul.mubr.f32.gmra.mrb[0].mxu0 %v437
      %v566 = vpop.f32.mrb[0].mxu0
      %v567 = vadd.f32 0.0, %v566
      %v568 = vpop.f32.mrb[0].mxu0
      %569 = vmatprep.mubr.f32.mxu0 0.0
      %570 = vmatmul.mubr.f32.gmra.mrb[0].mxu0 %v440
      %v571 = vpop.f32.mrb[0].mxu0
      %v572 = vadd.f32 0.0, %v571
      %v573 = vpop.f32.mrb[0].mxu0
      %574 = vmatprep.mubr.f32.mxu0 0.0
      %575 = vmatmul.mubr.f32.gmra.mrb[0].mxu0 %v443
      %v576 = vpop.f32.mrb[0].mxu0
      %v577 = vadd.f32 0.0, %v576
      %v578 = vpop.f32.mrb[0].mxu0
      %579 = vmatprep.mubr.f32.mxu0 0.0
      %580 = vmatmul.mubr.f32.gmra.mrb[0].mxu0 %v446
      %v581 = vpop.f32.mrb[0].mxu0
      %v582 = vadd.f32 0.0, %v581
      %v583 = vpop.f32.mrb[0].mxu0
      %584 = vmatprep.mubr.f32.mxu0 0.0
      %585 = vmatmul.mubr.f32.gmra.mrb[0].mxu0 %v449
      %v586 = vpop.f32.mrb[0].mxu0
      %v587 = vadd.f32 0.0, %v586
      %v588 = vpop.f32.mrb[0].mxu0
      %589 = vmatprep.mubr.f32.mxu0 0.0
      %590 = vmatmul.mubr.f32.gmra.mrb[0].mxu0 %v452
      %v591 = vpop.f32.mrb[0].mxu0
      %v592 = vadd.f32 0.0, %v591
      %v593 = vpop.f32.mrb[0].mxu0
      %594 = vmatprep.mubr.f32.mxu0 0.0
      %595 = vmatmul.mubr.f32.gmra.mrb[0].mxu0 %v455
      %v596 = vpop.f32.mrb[0].mxu0
      %v597 = vadd.f32 0.0, %v596
      %v598 = vpop.f32.mrb[0].mxu0
      %599 = vmatprep.mubr.f32.mxu0 0.0
      %600 = vmatmul.mubr.f32.gmra.mrb[0].mxu0 %v458
      %v601 = vpop.f32.mrb[0].mxu0
      %v602 = vadd.f32 0.0, %v601
      %v603 = vpop.f32.mrb[0].mxu0
      %604 = vdwg.mxu0
      %v605 = vld [vmem:[%s3] sm:$0x1]
      %v607 = vlaneseq
      %v608 = vshrl.u32 %v607, 7
      %v609 = vsub.s32 0, %v608
      %v610 = vrot.slane %v605, %v609
      %v612 = vmul.f32 %v527, %v610
      %v613 = vmul.f32 %v532, %v610
      %v614 = vmul.f32 %v537, %v610
      %v615 = vmul.f32 %v542, %v610
      %v616 = vmul.f32 %v547, %v610
      %v617 = vmul.f32 %v552, %v610
      %v618 = vmul.f32 %v557, %v610
      %v619 = vmul.f32 %v562, %v610
      %v620 = vmul.f32 %v567, %v610
      %v621 = vmul.f32 %v572, %v610
      %v622 = vmul.f32 %v577, %v610
      %v623 = vmul.f32 %v582, %v610
      %v624 = vmul.f32 %v587, %v610
      %v625 = vmul.f32 %v592, %v610
      %v626 = vmul.f32 %v597, %v610
      %v627 = vmul.f32 %v602, %v610
      %v628 = vld [vmem:[%s4] sm:$0x1]
      %v630 = vlaneseq
      %v631 = vshrl.u32 %v630, 7
      %v632 = vsub.s32 0, %v631
      %v633 = vrot.slane %v628, %v632
      %v635 = vadd.f32 %v612, %v633
      %v636 = vadd.f32 %v613, %v633
      %v637 = vadd.f32 %v614, %v633
      %v638 = vadd.f32 %v615, %v633
      %v639 = vadd.f32 %v616, %v633
      %v640 = vadd.f32 %v617, %v633
      %v641 = vadd.f32 %v618, %v633
      %v642 = vadd.f32 %v619, %v633
      %v643 = vadd.f32 %v620, %v633
      %v644 = vadd.f32 %v621, %v633
      %v645 = vadd.f32 %v622, %v633
      %v646 = vadd.f32 %v623, %v633
      %v647 = vadd.f32 %v624, %v633
      %v648 = vadd.f32 %v625, %v633
      %v649 = vadd.f32 %v626, %v633
      %v650 = vadd.f32 %v627, %v633
      %v651 = vmax.f32 %v635, 0.0
      %v652 = vmax.f32 %v636, 0.0
      %v653 = vmax.f32 %v637, 0.0
      %v654 = vmax.f32 %v638, 0.0
      %v655 = vmax.f32 %v639, 0.0
      %v656 = vmax.f32 %v640, 0.0
      %v657 = vmax.f32 %v641, 0.0
      %v658 = vmax.f32 %v642, 0.0
      %v659 = vmax.f32 %v643, 0.0
      %v660 = vmax.f32 %v644, 0.0
      %v661 = vmax.f32 %v645, 0.0
      %v662 = vmax.f32 %v646, 0.0
      %v663 = vmax.f32 %v647, 0.0
      %v664 = vmax.f32 %v648, 0.0
      %v665 = vmax.f32 %v649, 0.0
      %v666 = vmax.f32 %v650, 0.0
      %v667 = vpack.c.bf16 %v652, %v651
      %v668 = vpack.c.bf16 %v654, %v653
      %v669 = vpack.c.bf16 %v656, %v655
      %v670 = vpack.c.bf16 %v658, %v657
      %v671 = vpack.c.bf16 %v660, %v659
      %v672 = vpack.c.bf16 %v662, %v661
      %v673 = vpack.c.bf16 %v664, %v663
      %v674 = vpack.c.bf16 %v666, %v665
      %v675 = vld [vmem:[%s5] sm:$0xff]
      %v676 = vld [vmem:[%s5 + $0x8] sm:$0xff]
      %v677 = vld [vmem:[%s5 + $0x10] sm:$0xff]
      %v678 = vld [vmem:[%s5 + $0x18] sm:$0xff]
      %v679 = vld [vmem:[%s5 + $0x20] sm:$0xff]
      %v680 = vld [vmem:[%s5 + $0x28] sm:$0xff]
      %v681 = vld [vmem:[%s5 + $0x30] sm:$0xff]
      %v682 = vld [vmem:[%s5 + $0x38] sm:$0xff]
      %v683 = vld [vmem:[%s5 + $0x40] sm:$0xff]
      %v684 = vld [vmem:[%s5 + $0x48] sm:$0xff]
      %v685 = vld [vmem:[%s5 + $0x50] sm:$0xff]
      %v686 = vld [vmem:[%s5 + $0x58] sm:$0xff]
      %v687 = vld [vmem:[%s5 + $0x60] sm:$0xff]
      %v688 = vld [vmem:[%s5 + $0x68] sm:$0xff]
      %v689 = vld [vmem:[%s5 + $0x70] sm:$0xff]
      %v690 = vld [vmem:[%s5 + $0x78] sm:$0xff]
      %v691 = vld [vmem:[%s6] sm:$0x3]
      %v693 = vlaneseq
      %v694 = vshrl.u32 %v693, 7
      %v695 = vsub.s32 0, %v694
      %v696 = vrot.slane %v691, %v695
      %v697 = vlaneseq
      %v698 = vshrl.u32 %v697, 7
      %v699 = vsub.s32 1, %v698
      %v700 = vrot.slane %v691, %v699
      %v719 = vunpack.c.l.b16 %v675
      %v720 = vunpack.c.h.b16 %v675
      %v721 = vunpack.c.l.b16 %v676
      %v722 = vunpack.c.h.b16 %v676
      %v723 = vunpack.c.l.b16 %v677
      %v724 = vunpack.c.h.b16 %v677
      %v725 = vunpack.c.l.b16 %v678
      %v726 = vunpack.c.h.b16 %v678
      %v727 = vunpack.c.l.b16 %v679
      %v728 = vunpack.c.h.b16 %v679
      %v729 = vunpack.c.l.b16 %v680
      %v730 = vunpack.c.h.b16 %v680
      %v731 = vunpack.c.l.b16 %v681
      %v732 = vunpack.c.h.b16 %v681
      %v733 = vunpack.c.l.b16 %v682
      %v734 = vunpack.c.h.b16 %v682
      %v735 = vunpack.c.l.b16 %v683
      %v736 = vunpack.c.h.b16 %v683
      %v737 = vunpack.c.l.b16 %v684
      %v738 = vunpack.c.h.b16 %v684
      %v739 = vunpack.c.l.b16 %v685
      %v740 = vunpack.c.h.b16 %v685
      %v741 = vunpack.c.l.b16 %v686
      %v742 = vunpack.c.h.b16 %v686
      %v743 = vunpack.c.l.b16 %v687
      %v744 = vunpack.c.h.b16 %v687
      %v745 = vunpack.c.l.b16 %v688
      %v746 = vunpack.c.h.b16 %v688
      %v747 = vunpack.c.l.b16 %v689
      %v748 = vunpack.c.h.b16 %v689
      %v749 = vunpack.c.l.b16 %v690
      %v750 = vunpack.c.h.b16 %v690
      %v751 = vpack.c.b16 %v721, %v719
      %v752 = vpack.c.b16 %v722, %v720
      %v753 = vpack.c.b16 %v725, %v723
      %v754 = vpack.c.b16 %v726, %v724
      %v755 = vpack.c.b16 %v729, %v727
      %v756 = vpack.c.b16 %v730, %v728
      %v757 = vpack.c.b16 %v733, %v731
      %v758 = vpack.c.b16 %v734, %v732
      %v759 = vpack.c.b16 %v737, %v735
      %v760 = vpack.c.b16 %v738, %v736
      %v761 = vpack.c.b16 %v741, %v739
      %v762 = vpack.c.b16 %v742, %v740
      %v763 = vpack.c.b16 %v745, %v743
      %v764 = vpack.c.b16 %v746, %v744
      %v765 = vpack.c.b16 %v749, %v747
      %v766 = vpack.c.b16 %v750, %v748
      %783 = vmatprep.subr.bf16.mxu0 %v752
      %784 = vmatpush1.bf16.msra.mxu0 %v751
      %785 = vmatprep.subr.bf16.mxu0 %v754
      %786 = vmatpush1.bf16.msra.mxu0 %v753
      %787 = vmatprep.subr.bf16.mxu0 %v756
      %788 = vmatpush1.bf16.msra.mxu0 %v755
      %789 = vmatprep.subr.bf16.mxu0 %v758
      %790 = vmatpush1.bf16.msra.mxu0 %v757
      %791 = vmatprep.subr.bf16.mxu0 %v760
      %792 = vmatpush1.bf16.msra.mxu0 %v759
      %793 = vmatprep.subr.bf16.mxu0 %v762
      %794 = vmatpush1.bf16.msra.mxu0 %v761
      %795 = vmatprep.subr.bf16.mxu0 %v764
      %796 = vmatpush1.bf16.msra.mxu0 %v763
      %797 = vmatprep.subr.bf16.mxu0 %v766
      %798 = vmatpush1.bf16.msra.mxu0 %v765
      %799 = vmatprep.subr.bf16.mxu0 0
      %800 = vmatpush1.bf16.msra.mxu0 0
      %801 = vmatprep.subr.bf16.mxu0 0
      %802 = vmatpush1.bf16.msra.mxu0 0
      %803 = vmatprep.subr.bf16.mxu0 0
      %804 = vmatpush1.bf16.msra.mxu0 0
      %805 = vmatprep.subr.bf16.mxu0 0
      %806 = vmatpush1.bf16.msra.mxu0 0
      %807 = vmatprep.subr.bf16.mxu0 0
      %808 = vmatpush1.bf16.msra.mxu0 0
      %809 = vmatprep.subr.bf16.mxu0 0
      %810 = vmatpush1.bf16.msra.mxu0 0
      %811 = vmatprep.subr.bf16.mxu0 0
      %812 = vmatpush1.bf16.msra.mxu0 0
      %813 = vmatprep.subr.bf16.mxu0 0
      %814 = vmatpush1.bf16.msra.mxu0 0
      %815 = vmatprep.mubr.bf16.mxu0 0
      %816 = vmatmul.mubr.bf16.gmra.mrb[0].mxu0 %v667
      %v817 = vpop.f32.mrb[0].mxu0
      %v818 = vadd.f32 %v696, %v817
      %v819 = vpop.f32.mrb[0].mxu0
      %v820 = vadd.f32 %v700, %v819
      %v821 = vpop.f32.mrb[0].mxu0
      %v822 = vadd.f32 %v696, %v821
      %v823 = vpop.f32.mrb[0].mxu0
      %v824 = vadd.f32 %v700, %v823
      %825 = vmatprep.mubr.bf16.mxu0 0
      %826 = vmatmul.mubr.bf16.gmra.mrb[0].mxu0 %v668
      %v827 = vpop.f32.mrb[0].mxu0
      %v828 = vadd.f32 %v696, %v827
      %v829 = vpop.f32.mrb[0].mxu0
      %v830 = vadd.f32 %v700, %v829
      %v831 = vpop.f32.mrb[0].mxu0
      %v832 = vadd.f32 %v696, %v831
      %v833 = vpop.f32.mrb[0].mxu0
      %v834 = vadd.f32 %v700, %v833
      %835 = vmatprep.mubr.bf16.mxu0 0
      %836 = vmatmul.mubr.bf16.gmra.mrb[0].mxu0 %v669
      %v837 = vpop.f32.mrb[0].mxu0
      %v838 = vadd.f32 %v696, %v837
      %v839 = vpop.f32.mrb[0].mxu0
      %v840 = vadd.f32 %v700, %v839
      %v841 = vpop.f32.mrb[0].mxu0
      %v842 = vadd.f32 %v696, %v841
      %v843 = vpop.f32.mrb[0].mxu0
      %v844 = vadd.f32 %v700, %v843
      %845 = vmatprep.mubr.bf16.mxu0 0
      %846 = vmatmul.mubr.bf16.gmra.mrb[0].mxu0 %v670
      %v847 = vpop.f32.mrb[0].mxu0
      %v848 = vadd.f32 %v696, %v847
      %v849 = vpop.f32.mrb[0].mxu0
      %v850 = vadd.f32 %v700, %v849
      %v851 = vpop.f32.mrb[0].mxu0
      %v852 = vadd.f32 %v696, %v851
      %v853 = vpop.f32.mrb[0].mxu0
      %v854 = vadd.f32 %v700, %v853
      %855 = vmatprep.mubr.bf16.mxu0 0
      %856 = vmatmul.mubr.bf16.gmra.mrb[0].mxu0 %v671
      %v857 = vpop.f32.mrb[0].mxu0
      %v858 = vadd.f32 %v696, %v857
      %v859 = vpop.f32.mrb[0].mxu0
      %v860 = vadd.f32 %v700, %v859
      %v861 = vpop.f32.mrb[0].mxu0
      %v862 = vadd.f32 %v696, %v861
      %v863 = vpop.f32.mrb[0].mxu0
      %v864 = vadd.f32 %v700, %v863
      %865 = vmatprep.mubr.bf16.mxu0 0
      %866 = vmatmul.mubr.bf16.gmra.mrb[0].mxu0 %v672
      %v867 = vpop.f32.mrb[0].mxu0
      %v868 = vadd.f32 %v696, %v867
      %v869 = vpop.f32.mrb[0].mxu0
      %v870 = vadd.f32 %v700, %v869
      %v871 = vpop.f32.mrb[0].mxu0
      %v872 = vadd.f32 %v696, %v871
      %v873 = vpop.f32.mrb[0].mxu0
      %v874 = vadd.f32 %v700, %v873
      %875 = vmatprep.mubr.bf16.mxu0 0
      %876 = vmatmul.mubr.bf16.gmra.mrb[0].mxu0 %v673
      %v877 = vpop.f32.mrb[0].mxu0
      %v878 = vadd.f32 %v696, %v877
      %v879 = vpop.f32.mrb[0].mxu0
      %v880 = vadd.f32 %v700, %v879
      %v881 = vpop.f32.mrb[0].mxu0
      %v882 = vadd.f32 %v696, %v881
      %v883 = vpop.f32.mrb[0].mxu0
      %v884 = vadd.f32 %v700, %v883
      %885 = vmatprep.mubr.bf16.mxu0 0
      %886 = vmatmul.mubr.bf16.gmra.mrb[0].mxu0 %v674
      %v887 = vpop.f32.mrb[0].mxu0
      %v888 = vadd.f32 %v696, %v887
      %v889 = vpop.f32.mrb[0].mxu0
      %v890 = vadd.f32 %v700, %v889
      %v891 = vpop.f32.mrb[0].mxu0
      %v892 = vadd.f32 %v696, %v891
      %v893 = vpop.f32.mrb[0].mxu0
      %v894 = vadd.f32 %v700, %v893
      %895 = vdwg.mxu0
      %v896 = vmax.f32 %v818, %v822
      %v897 = vmax.f32 %v896, %v828
      %v898 = vmax.f32 %v897, %v832
      %v899 = vrot.slane %v898, 4
      %v900 = vmax.f32 %v898, %v899
      %v901 = vrot.slane %v900, 2
      %v902 = vmax.f32 %v900, %v901
      %v903 = vrot.slane %v902, 1
      %v904 = vmax.f32 %v902, %v903
      %v905 = vmax.f32 %v820, %v824
      %v906 = vmax.f32 %v905, %v830
      %v907 = vmax.f32 %v906, %v834
      %v908 = vrot.slane %v907, 4
      %v909 = vmax.f32 %v907, %v908
      %v910 = vrot.slane %v909, 2
      %v911 = vmax.f32 %v909, %v910
      %v912 = vrot.slane %v911, 1
      %v913 = vmax.f32 %v911, %v912
      %v914 = vmax.f32 %v838, %v842
      %v915 = vmax.f32 %v914, %v848
      %v916 = vmax.f32 %v915, %v852
      %v917 = vrot.slane %v916, 4
      %v918 = vmax.f32 %v916, %v917
      %v919 = vrot.slane %v918, 2
      %v920 = vmax.f32 %v918, %v919
      %v921 = vrot.slane %v920, 1
      %v922 = vmax.f32 %v920, %v921
      %v923 = vmax.f32 %v840, %v844
      %v924 = vmax.f32 %v923, %v850
      %v925 = vmax.f32 %v924, %v854
      %v926 = vrot.slane %v925, 4
      %v927 = vmax.f32 %v925, %v926
      %v928 = vrot.slane %v927, 2
      %v929 = vmax.f32 %v927, %v928
      %v930 = vrot.slane %v929, 1
      %v931 = vmax.f32 %v929, %v930
      %v932 = vmax.f32 %v858, %v862
      %v933 = vmax.f32 %v932, %v868
      %v934 = vmax.f32 %v933, %v872
      %v935 = vrot.slane %v934, 4
      %v936 = vmax.f32 %v934, %v935
      %v937 = vrot.slane %v936, 2
      %v938 = vmax.f32 %v936, %v937
      %v939 = vrot.slane %v938, 1
      %v940 = vmax.f32 %v938, %v939
      %v941 = vmax.f32 %v860, %v864
      %v942 = vmax.f32 %v941, %v870
      %v943 = vmax.f32 %v942, %v874
      %v944 = vrot.slane %v943, 4
      %v945 = vmax.f32 %v943, %v944
      %v946 = vrot.slane %v945, 2
      %v947 = vmax.f32 %v945, %v946
      %v948 = vrot.slane %v947, 1
      %v949 = vmax.f32 %v947, %v948
      %v950 = vmax.f32 %v878, %v882
      %v951 = vmax.f32 %v950, %v888
      %v952 = vmax.f32 %v951, %v892
      %v953 = vrot.slane %v952, 4
      %v954 = vmax.f32 %v952, %v953
      %v955 = vrot.slane %v954, 2
      %v956 = vmax.f32 %v954, %v955
      %v957 = vrot.slane %v956, 1
      %v958 = vmax.f32 %v956, %v957
      %v959 = vmax.f32 %v880, %v884
      %v960 = vmax.f32 %v959, %v890
      %v961 = vmax.f32 %v960, %v894
      %v962 = vrot.slane %v961, 4
      %v963 = vmax.f32 %v961, %v962
      %v964 = vrot.slane %v963, 2
      %v965 = vmax.f32 %v963, %v964
      %v966 = vrot.slane %v965, 1
      %v967 = vmax.f32 %v965, %v966
      %v968 = vpack.c.bf16 %v822, %v818
      %v969 = vpack.c.bf16 %v824, %v820
      %v970 = vpack.c.bf16 %v832, %v828
      %v971 = vpack.c.bf16 %v834, %v830
      %v972 = vpack.c.bf16 %v842, %v838
      %v973 = vpack.c.bf16 %v844, %v840
      %v974 = vpack.c.bf16 %v852, %v848
      %v975 = vpack.c.bf16 %v854, %v850
      %v976 = vpack.c.bf16 %v862, %v858
      %v977 = vpack.c.bf16 %v864, %v860
      %v978 = vpack.c.bf16 %v872, %v868
      %v979 = vpack.c.bf16 %v874, %v870
      %v980 = vpack.c.bf16 %v882, %v878
      %v981 = vpack.c.bf16 %v884, %v880
      %v982 = vpack.c.bf16 %v892, %v888
      %v983 = vpack.c.bf16 %v894, %v890
      %v984 = vld [vmem:[%s8] sm:$0xff]
      %v985 = vld [vmem:[%s8 + $0x8] sm:$0xff]
      %v986 = vld [vmem:[%s8 + $0x10] sm:$0xff]
      %v987 = vld [vmem:[%s8 + $0x18] sm:$0xff]
      %v988 = vld [vmem:[%s8 + $0x20] sm:$0xff]
      %v989 = vld [vmem:[%s8 + $0x28] sm:$0xff]
      %v990 = vld [vmem:[%s8 + $0x30] sm:$0xff]
      %v991 = vld [vmem:[%s8 + $0x38] sm:$0xff]
      %v992 = vld [vmem:[%s8 + $0x40] sm:$0xff]
      %v993 = vld [vmem:[%s8 + $0x48] sm:$0xff]
      %v994 = vld [vmem:[%s8 + $0x50] sm:$0xff]
      %v995 = vld [vmem:[%s8 + $0x58] sm:$0xff]
      %v996 = vld [vmem:[%s8 + $0x60] sm:$0xff]
      %v997 = vld [vmem:[%s8 + $0x68] sm:$0xff]
      %v998 = vld [vmem:[%s8 + $0x70] sm:$0xff]
      %v999 = vld [vmem:[%s8 + $0x78] sm:$0xff]
      %v1000 = vld [vmem:[%s8 + $0x80] sm:$0xff]
      %v1001 = vld [vmem:[%s8 + $0x88] sm:$0xff]
      %v1002 = vld [vmem:[%s8 + $0x90] sm:$0xff]
      %v1003 = vld [vmem:[%s8 + $0x98] sm:$0xff]
      %v1004 = vld [vmem:[%s8 + $0xa0] sm:$0xff]
      %v1005 = vld [vmem:[%s8 + $0xa8] sm:$0xff]
      %v1006 = vld [vmem:[%s8 + $0xb0] sm:$0xff]
      %v1007 = vld [vmem:[%s8 + $0xb8] sm:$0xff]
      %v1008 = vld [vmem:[%s8 + $0xc0] sm:$0xff]
      %v1009 = vld [vmem:[%s8 + $0xc8] sm:$0xff]
      %v1010 = vld [vmem:[%s8 + $0xd0] sm:$0xff]
      %v1011 = vld [vmem:[%s8 + $0xd8] sm:$0xff]
      %v1012 = vld [vmem:[%s8 + $0xe0] sm:$0xff]
      %v1013 = vld [vmem:[%s8 + $0xe8] sm:$0xff]
      %v1014 = vld [vmem:[%s8 + $0xf0] sm:$0xff]
      %v1015 = vld [vmem:[%s8 + $0xf8] sm:$0xff]
      %v1016 = vld [vmem:[%s8 + $0x100] sm:$0xff]
      %v1017 = vld [vmem:[%s8 + $0x108] sm:$0xff]
      %v1018 = vld [vmem:[%s8 + $0x110] sm:$0xff]
      %v1019 = vld [vmem:[%s8 + $0x118] sm:$0xff]
      %v1020 = vld [vmem:[%s8 + $0x120] sm:$0xff]
      %v1021 = vld [vmem:[%s8 + $0x128] sm:$0xff]
      %v1022 = vld [vmem:[%s8 + $0x130] sm:$0xff]
      %v1023 = vld [vmem:[%s8 + $0x138] sm:$0xff]
      %v1024 = vld [vmem:[%s8 + $0x140] sm:$0xff]
      %v1025 = vld [vmem:[%s8 + $0x148] sm:$0xff]
      %v1026 = vld [vmem:[%s8 + $0x150] sm:$0xff]
      %v1027 = vld [vmem:[%s8 + $0x158] sm:$0xff]
      %v1028 = vld [vmem:[%s8 + $0x160] sm:$0xff]
      %v1029 = vld [vmem:[%s8 + $0x168] sm:$0xff]
      %v1030 = vld [vmem:[%s8 + $0x170] sm:$0xff]
      %v1031 = vld [vmem:[%s8 + $0x178] sm:$0xff]
      %v1032 = vld [vmem:[%s8 + $0x180] sm:$0xff]
      %v1033 = vld [vmem:[%s8 + $0x188] sm:$0xff]
      %v1034 = vld [vmem:[%s8 + $0x190] sm:$0xff]
      %v1035 = vld [vmem:[%s8 + $0x198] sm:$0xff]
      %v1036 = vld [vmem:[%s8 + $0x1a0] sm:$0xff]
      %v1037 = vld [vmem:[%s8 + $0x1a8] sm:$0xff]
      %v1038 = vld [vmem:[%s8 + $0x1b0] sm:$0xff]
      %v1039 = vld [vmem:[%s8 + $0x1b8] sm:$0xff]
      %v1040 = vld [vmem:[%s8 + $0x1c0] sm:$0xff]
      %v1041 = vld [vmem:[%s8 + $0x1c8] sm:$0xff]
      %v1042 = vld [vmem:[%s8 + $0x1d0] sm:$0xff]
      %v1043 = vld [vmem:[%s8 + $0x1d8] sm:$0xff]
      %v1044 = vld [vmem:[%s8 + $0x1e0] sm:$0xff]
      %v1045 = vld [vmem:[%s8 + $0x1e8] sm:$0xff]
      %v1046 = vld [vmem:[%s8 + $0x1f0] sm:$0xff]
      %v1047 = vld [vmem:[%s8 + $0x1f8] sm:$0xff]
      %v1112 = vunpack.c.l.b16 %v984
      %v1113 = vunpack.c.h.b16 %v984
      %v1114 = vunpack.c.l.b16 %v985
      %v1115 = vunpack.c.h.b16 %v985
      %v1116 = vunpack.c.l.b16 %v986
      %v1117 = vunpack.c.h.b16 %v986
      %v1118 = vunpack.c.l.b16 %v987
      %v1119 = vunpack.c.h.b16 %v987
      %v1120 = vunpack.c.l.b16 %v988
      %v1121 = vunpack.c.h.b16 %v988
      %v1122 = vunpack.c.l.b16 %v989
      %v1123 = vunpack.c.h.b16 %v989
      %v1124 = vunpack.c.l.b16 %v990
      %v1125 = vunpack.c.h.b16 %v990
      %v1126 = vunpack.c.l.b16 %v991
      %v1127 = vunpack.c.h.b16 %v991
      %v1128 = vunpack.c.l.b16 %v992
      %v1129 = vunpack.c.h.b16 %v992
      %v1130 = vunpack.c.l.b16 %v993
      %v1131 = vunpack.c.h.b16 %v993
      %v1132 = vunpack.c.l.b16 %v994
      %v1133 = vunpack.c.h.b16 %v994
      %v1134 = vunpack.c.l.b16 %v995
      %v1135 = vunpack.c.h.b16 %v995
      %v1136 = vunpack.c.l.b16 %v996
      %v1137 = vunpack.c.h.b16 %v996
      %v1138 = vunpack.c.l.b16 %v997
      %v1139 = vunpack.c.h.b16 %v997
      %v1140 = vunpack.c.l.b16 %v998
      %v1141 = vunpack.c.h.b16 %v998
      %v1142 = vunpack.c.l.b16 %v999
      %v1143 = vunpack.c.h.b16 %v999
      %v1144 = vunpack.c.l.b16 %v1000
      %v1145 = vunpack.c.h.b16 %v1000
      %v1146 = vunpack.c.l.b16 %v1001
      %v1147 = vunpack.c.h.b16 %v1001
      %v1148 = vunpack.c.l.b16 %v1002
      %v1149 = vunpack.c.h.b16 %v1002
      %v1150 = vunpack.c.l.b16 %v1003
      %v1151 = vunpack.c.h.b16 %v1003
      %v1152 = vunpack.c.l.b16 %v1004
      %v1153 = vunpack.c.h.b16 %v1004
      %v1154 = vunpack.c.l.b16 %v1005
      %v1155 = vunpack.c.h.b16 %v1005
      %v1156 = vunpack.c.l.b16 %v1006
      %v1157 = vunpack.c.h.b16 %v1006
      %v1158 = vunpack.c.l.b16 %v1007
      %v1159 = vunpack.c.h.b16 %v1007
      %v1160 = vunpack.c.l.b16 %v1008
      %v1161 = vunpack.c.h.b16 %v1008
      %v1162 = vunpack.c.l.b16 %v1009
      %v1163 = vunpack.c.h.b16 %v1009
      %v1164 = vunpack.c.l.b16 %v1010
      %v1165 = vunpack.c.h.b16 %v1010
      %v1166 = vunpack.c.l.b16 %v1011
      %v1167 = vunpack.c.h.b16 %v1011
      %v1168 = vunpack.c.l.b16 %v1012
      %v1169 = vunpack.c.h.b16 %v1012
      %v1170 = vunpack.c.l.b16 %v1013
      %v1171 = vunpack.c.h.b16 %v1013
      %v1172 = vunpack.c.l.b16 %v1014
      %v1173 = vunpack.c.h.b16 %v1014
      %v1174 = vunpack.c.l.b16 %v1015
      %v1175 = vunpack.c.h.b16 %v1015
      %v1176 = vunpack.c.l.b16 %v1016
      %v1177 = vunpack.c.h.b16 %v1016
      %v1178 = vunpack.c.l.b16 %v1017
      %v1179 = vunpack.c.h.b16 %v1017
      %v1180 = vunpack.c.l.b16 %v1018
      %v1181 = vunpack.c.h.b16 %v1018
      %v1182 = vunpack.c.l.b16 %v1019
      %v1183 = vunpack.c.h.b16 %v1019
      %v1184 = vunpack.c.l.b16 %v1020
      %v1185 = vunpack.c.h.b16 %v1020
      %v1186 = vunpack.c.l.b16 %v1021
      %v1187 = vunpack.c.h.b16 %v1021
      %v1188 = vunpack.c.l.b16 %v1022
      %v1189 = vunpack.c.h.b16 %v1022
      %v1190 = vunpack.c.l.b16 %v1023
      %v1191 = vunpack.c.h.b16 %v1023
      %v1192 = vunpack.c.l.b16 %v1024
      %v1193 = vunpack.c.h.b16 %v1024
      %v1194 = vunpack.c.l.b16 %v1025
      %v1195 = vunpack.c.h.b16 %v1025
      %v1196 = vunpack.c.l.b16 %v1026
      %v1197 = vunpack.c.h.b16 %v1026
      %v1198 = vunpack.c.l.b16 %v1027
      %v1199 = vunpack.c.h.b16 %v1027
      %v1200 = vunpack.c.l.b16 %v1028
      %v1201 = vunpack.c.h.b16 %v1028
      %v1202 = vunpack.c.l.b16 %v1029
      %v1203 = vunpack.c.h.b16 %v1029
      %v1204 = vunpack.c.l.b16 %v1030
      %v1205 = vunpack.c.h.b16 %v1030
      %v1206 = vunpack.c.l.b16 %v1031
      %v1207 = vunpack.c.h.b16 %v1031
      %v1208 = vunpack.c.l.b16 %v1032
      %v1209 = vunpack.c.h.b16 %v1032
      %v1210 = vunpack.c.l.b16 %v1033
      %v1211 = vunpack.c.h.b16 %v1033
      %v1212 = vunpack.c.l.b16 %v1034
      %v1213 = vunpack.c.h.b16 %v1034
      %v1214 = vunpack.c.l.b16 %v1035
      %v1215 = vunpack.c.h.b16 %v1035
      %v1216 = vunpack.c.l.b16 %v1036
      %v1217 = vunpack.c.h.b16 %v1036
      %v1218 = vunpack.c.l.b16 %v1037
      %v1219 = vunpack.c.h.b16 %v1037
      %v1220 = vunpack.c.l.b16 %v1038
      %v1221 = vunpack.c.h.b16 %v1038
      %v1222 = vunpack.c.l.b16 %v1039
      %v1223 = vunpack.c.h.b16 %v1039
      %v1224 = vunpack.c.l.b16 %v1040
      %v1225 = vunpack.c.h.b16 %v1040
      %v1226 = vunpack.c.l.b16 %v1041
      %v1227 = vunpack.c.h.b16 %v1041
      %v1228 = vunpack.c.l.b16 %v1042
      %v1229 = vunpack.c.h.b16 %v1042
      %v1230 = vunpack.c.l.b16 %v1043
      %v1231 = vunpack.c.h.b16 %v1043
      %v1232 = vunpack.c.l.b16 %v1044
      %v1233 = vunpack.c.h.b16 %v1044
      %v1234 = vunpack.c.l.b16 %v1045
      %v1235 = vunpack.c.h.b16 %v1045
      %v1236 = vunpack.c.l.b16 %v1046
      %v1237 = vunpack.c.h.b16 %v1046
      %v1238 = vunpack.c.l.b16 %v1047
      %v1239 = vunpack.c.h.b16 %v1047
      %v1240 = vpack.c.b16 %v1116, %v1112
      %v1241 = vpack.c.b16 %v1117, %v1113
      %v1242 = vpack.c.b16 %v1118, %v1114
      %v1243 = vpack.c.b16 %v1119, %v1115
      %v1244 = vpack.c.b16 %v1124, %v1120
      %v1245 = vpack.c.b16 %v1125, %v1121
      %v1246 = vpack.c.b16 %v1126, %v1122
      %v1247 = vpack.c.b16 %v1127, %v1123
      %v1248 = vpack.c.b16 %v1132, %v1128
      %v1249 = vpack.c.b16 %v1133, %v1129
      %v1250 = vpack.c.b16 %v1134, %v1130
      %v1251 = vpack.c.b16 %v1135, %v1131
      %v1252 = vpack.c.b16 %v1140, %v1136
      %v1253 = vpack.c.b16 %v1141, %v1137
      %v1254 = vpack.c.b16 %v1142, %v1138
      %v1255 = vpack.c.b16 %v1143, %v1139
      %v1256 = vpack.c.b16 %v1148, %v1144
      %v1257 = vpack.c.b16 %v1149, %v1145
      %v1258 = vpack.c.b16 %v1150, %v1146
      %v1259 = vpack.c.b16 %v1151, %v1147
      %v1260 = vpack.c.b16 %v1156, %v1152
      %v1261 = vpack.c.b16 %v1157, %v1153
      %v1262 = vpack.c.b16 %v1158, %v1154
      %v1263 = vpack.c.b16 %v1159, %v1155
      %v1264 = vpack.c.b16 %v1164, %v1160
      %v1265 = vpack.c.b16 %v1165, %v1161
      %v1266 = vpack.c.b16 %v1166, %v1162
      %v1267 = vpack.c.b16 %v1167, %v1163
      %v1268 = vpack.c.b16 %v1172, %v1168
      %v1269 = vpack.c.b16 %v1173, %v1169
      %v1270 = vpack.c.b16 %v1174, %v1170
      %v1271 = vpack.c.b16 %v1175, %v1171
      %v1272 = vpack.c.b16 %v1180, %v1176
      %v1273 = vpack.c.b16 %v1181, %v1177
      %v1274 = vpack.c.b16 %v1182, %v1178
      %v1275 = vpack.c.b16 %v1183, %v1179
      %v1276 = vpack.c.b16 %v1188, %v1184
      %v1277 = vpack.c.b16 %v1189, %v1185
      %v1278 = vpack.c.b16 %v1190, %v1186
      %v1279 = vpack.c.b16 %v1191, %v1187
      %v1280 = vpack.c.b16 %v1196, %v1192
      %v1281 = vpack.c.b16 %v1197, %v1193
      %v1282 = vpack.c.b16 %v1198, %v1194
      %v1283 = vpack.c.b16 %v1199, %v1195
      %v1284 = vpack.c.b16 %v1204, %v1200
      %v1285 = vpack.c.b16 %v1205, %v1201
      %v1286 = vpack.c.b16 %v1206, %v1202
      %v1287 = vpack.c.b16 %v1207, %v1203
      %v1288 = vpack.c.b16 %v1212, %v1208
      %v1289 = vpack.c.b16 %v1213, %v1209
      %v1290 = vpack.c.b16 %v1214, %v1210
      %v1291 = vpack.c.b16 %v1215, %v1211
      %v1292 = vpack.c.b16 %v1220, %v1216
      %v1293 = vpack.c.b16 %v1221, %v1217
      %v1294 = vpack.c.b16 %v1222, %v1218
      %v1295 = vpack.c.b16 %v1223, %v1219
      %v1296 = vpack.c.b16 %v1228, %v1224
      %v1297 = vpack.c.b16 %v1229, %v1225
      %v1298 = vpack.c.b16 %v1230, %v1226
      %v1299 = vpack.c.b16 %v1231, %v1227
      %v1300 = vpack.c.b16 %v1236, %v1232
      %v1301 = vpack.c.b16 %v1237, %v1233
      %v1302 = vpack.c.b16 %v1238, %v1234
      %v1303 = vpack.c.b16 %v1239, %v1235
      %1368 = vmatprep.subr.bf16.mxu0 %v1241
      %1369 = vmatpush1.bf16.msra.mxu0 %v1240
      %1370 = vmatprep.subr.bf16.mxu0 %v1245
      %1371 = vmatpush1.bf16.msra.mxu0 %v1244
      %1372 = vmatprep.subr.bf16.mxu0 %v1249
      %1373 = vmatpush1.bf16.msra.mxu0 %v1248
      %1374 = vmatprep.subr.bf16.mxu0 %v1253
      %1375 = vmatpush1.bf16.msra.mxu0 %v1252
      %1376 = vmatprep.subr.bf16.mxu0 %v1257
      %1377 = vmatpush1.bf16.msra.mxu0 %v1256
      %1378 = vmatprep.subr.bf16.mxu0 %v1261
      %1379 = vmatpush1.bf16.msra.mxu0 %v1260
      %1380 = vmatprep.subr.bf16.mxu0 %v1265
      %1381 = vmatpush1.bf16.msra.mxu0 %v1264
      %1382 = vmatprep.subr.bf16.mxu0 %v1269
      %1383 = vmatpush1.bf16.msra.mxu0 %v1268
      %1384 = vmatprep.subr.bf16.mxu0 %v1273
      %1385 = vmatpush1.bf16.msra.mxu0 %v1272
      %1386 = vmatprep.subr.bf16.mxu0 %v1277
      %1387 = vmatpush1.bf16.msra.mxu0 %v1276
      %1388 = vmatprep.subr.bf16.mxu0 %v1281
      %1389 = vmatpush1.bf16.msra.mxu0 %v1280
      %1390 = vmatprep.subr.bf16.mxu0 %v1285
      %1391 = vmatpush1.bf16.msra.mxu0 %v1284
      %1392 = vmatprep.subr.bf16.mxu0 %v1289
      %1393 = vmatpush1.bf16.msra.mxu0 %v1288
      %1394 = vmatprep.subr.bf16.mxu0 %v1293
      %1395 = vmatpush1.bf16.msra.mxu0 %v1292
      %1396 = vmatprep.subr.bf16.mxu0 %v1297
      %1397 = vmatpush1.bf16.msra.mxu0 %v1296
      %1398 = vmatprep.subr.bf16.mxu0 %v1301
      %1399 = vmatpush1.bf16.msra.mxu0 %v1300
      %1400 = vmatprep.mubr.bf16.mxu0 %v969
      %1401 = vmatmul.mubr.bf16.gmra.mrb[0].mxu0 %v968
      %v1402 = vpop.f32.mrb[0].mxu0
      %v1403 = vadd.f32 0.0, %v1402
      %v1404 = vpop.f32.mrb[0].mxu0
      %v1405 = vadd.f32 0.0, %v1404
      %v1406 = vpop.f32.mrb[0].mxu0
      %v1407 = vadd.f32 0.0, %v1406
      %v1408 = vpop.f32.mrb[0].mxu0
      %v1409 = vadd.f32 0.0, %v1408
      %1410 = vmatprep.mubr.bf16.mxu0 %v971
      %1411 = vmatmul.mubr.bf16.gmra.mrb[0].mxu0 %v970
      %v1412 = vpop.f32.mrb[0].mxu0
      %v1413 = vadd.f32 0.0, %v1412
      %v1414 = vpop.f32.mrb[0].mxu0
      %v1415 = vadd.f32 0.0, %v1414
      %v1416 = vpop.f32.mrb[0].mxu0
      %v1417 = vadd.f32 0.0, %v1416
      %v1418 = vpop.f32.mrb[0].mxu0
      %v1419 = vadd.f32 0.0, %v1418
      %1420 = vmatprep.mubr.bf16.mxu0 %v973
      %1421 = vmatmul.mubr.bf16.gmra.mrb[0].mxu0 %v972
      %v1422 = vpop.f32.mrb[0].mxu0
      %v1423 = vadd.f32 0.0, %v1422
      %v1424 = vpop.f32.mrb[0].mxu0
      %v1425 = vadd.f32 0.0, %v1424
      %v1426 = vpop.f32.mrb[0].mxu0
      %v1427 = vadd.f32 0.0, %v1426
      %v1428 = vpop.f32.mrb[0].mxu0
      %v1429 = vadd.f32 0.0, %v1428
      %1430 = vmatprep.mubr.bf16.mxu0 %v975
      %1431 = vmatmul.mubr.bf16.gmra.mrb[0].mxu0 %v974
      %v1432 = vpop.f32.mrb[0].mxu0
      %v1433 = vadd.f32 0.0, %v1432
      %v1434 = vpop.f32.mrb[0].mxu0
      %v1435 = vadd.f32 0.0, %v1434
      %v1436 = vpop.f32.mrb[0].mxu0
      %v1437 = vadd.f32 0.0, %v1436
      %v1438 = vpop.f32.mrb[0].mxu0
      %v1439 = vadd.f32 0.0, %v1438
      %1440 = vmatprep.mubr.bf16.mxu0 %v977
      %1441 = vmatmul.mubr.bf16.gmra.mrb[0].mxu0 %v976
      %v1442 = vpop.f32.mrb[0].mxu0
      %v1443 = vadd.f32 0.0, %v1442
      %v1444 = vpop.f32.mrb[0].mxu0
      %v1445 = vadd.f32 0.0, %v1444
      %v1446 = vpop.f32.mrb[0].mxu0
      %v1447 = vadd.f32 0.0, %v1446
      %v1448 = vpop.f32.mrb[0].mxu0
      %v1449 = vadd.f32 0.0, %v1448
      %1450 = vmatprep.mubr.bf16.mxu0 %v979
      %1451 = vmatmul.mubr.bf16.gmra.mrb[0].mxu0 %v978
      %v1452 = vpop.f32.mrb[0].mxu0
      %v1453 = vadd.f32 0.0, %v1452
      %v1454 = vpop.f32.mrb[0].mxu0
      %v1455 = vadd.f32 0.0, %v1454
      %v1456 = vpop.f32.mrb[0].mxu0
      %v1457 = vadd.f32 0.0, %v1456
      %v1458 = vpop.f32.mrb[0].mxu0
      %v1459 = vadd.f32 0.0, %v1458
      %1460 = vmatprep.mubr.bf16.mxu0 %v981
      %1461 = vmatmul.mubr.bf16.gmra.mrb[0].mxu0 %v980
      %v1462 = vpop.f32.mrb[0].mxu0
      %v1463 = vadd.f32 0.0, %v1462
      %v1464 = vpop.f32.mrb[0].mxu0
      %v1465 = vadd.f32 0.0, %v1464
      %v1466 = vpop.f32.mrb[0].mxu0
      %v1467 = vadd.f32 0.0, %v1466
      %v1468 = vpop.f32.mrb[0].mxu0
      %v1469 = vadd.f32 0.0, %v1468
      %1470 = vmatprep.mubr.bf16.mxu0 %v983
      %1471 = vmatmul.mubr.bf16.gmra.mrb[0].mxu0 %v982
      %v1472 = vpop.f32.mrb[0].mxu0
      %v1473 = vadd.f32 0.0, %v1472
      %v1474 = vpop.f32.mrb[0].mxu0
      %v1475 = vadd.f32 0.0, %v1474
      %v1476 = vpop.f32.mrb[0].mxu0
      %v1477 = vadd.f32 0.0, %v1476
      %v1478 = vpop.f32.mrb[0].mxu0
      %v1479 = vadd.f32 0.0, %v1478
      %1480 = vdwg.mxu0
      %1481 = vmatprep.subr.bf16.mxu0 %v1243
      %1482 = vmatpush1.bf16.msra.mxu0 %v1242
      %1483 = vmatprep.subr.bf16.mxu0 %v1247
      %1484 = vmatpush1.bf16.msra.mxu0 %v1246
      %1485 = vmatprep.subr.bf16.mxu0 %v1251
      %1486 = vmatpush1.bf16.msra.mxu0 %v1250
      %1487 = vmatprep.subr.bf16.mxu0 %v1255
      %1488 = vmatpush1.bf16.msra.mxu0 %v1254
      %1489 = vmatprep.subr.bf16.mxu0 %v1259
      %1490 = vmatpush1.bf16.msra.mxu0 %v1258
      %1491 = vmatprep.subr.bf16.mxu0 %v1263
      %1492 = vmatpush1.bf16.msra.mxu0 %v1262
      %1493 = vmatprep.subr.bf16.mxu0 %v1267
      %1494 = vmatpush1.bf16.msra.mxu0 %v1266
      %1495 = vmatprep.subr.bf16.mxu0 %v1271
      %1496 = vmatpush1.bf16.msra.mxu0 %v1270
      %1497 = vmatprep.subr.bf16.mxu0 %v1275
      %1498 = vmatpush1.bf16.msra.mxu0 %v1274
      %1499 = vmatprep.subr.bf16.mxu0 %v1279
      %1500 = vmatpush1.bf16.msra.mxu0 %v1278
      %1501 = vmatprep.subr.bf16.mxu0 %v1283
      %1502 = vmatpush1.bf16.msra.mxu0 %v1282
      %1503 = vmatprep.subr.bf16.mxu0 %v1287
      %1504 = vmatpush1.bf16.msra.mxu0 %v1286
      %1505 = vmatprep.subr.bf16.mxu0 %v1291
      %1506 = vmatpush1.bf16.msra.mxu0 %v1290
      %1507 = vmatprep.subr.bf16.mxu0 %v1295
      %1508 = vmatpush1.bf16.msra.mxu0 %v1294
      %1509 = vmatprep.subr.bf16.mxu0 %v1299
      %1510 = vmatpush1.bf16.msra.mxu0 %v1298
      %1511 = vmatprep.subr.bf16.mxu0 %v1303
      %1512 = vmatpush1.bf16.msra.mxu0 %v1302
      %1513 = vmatprep.mubr.bf16.mxu0 %v969
      %1514 = vmatmul.mubr.bf16.gmra.mrb[0].mxu0 %v968
      %v1515 = vpop.f32.mrb[0].mxu0
      %v1516 = vadd.f32 0.0, %v1515
      %v1517 = vpop.f32.mrb[0].mxu0
      %v1518 = vadd.f32 0.0, %v1517
      %v1519 = vpop.f32.mrb[0].mxu0
      %v1520 = vadd.f32 0.0, %v1519
      %v1521 = vpop.f32.mrb[0].mxu0
      %v1522 = vadd.f32 0.0, %v1521
      %1523 = vmatprep.mubr.bf16.mxu0 %v971
      %1524 = vmatmul.mubr.bf16.gmra.mrb[0].mxu0 %v970
      %v1525 = vpop.f32.mrb[0].mxu0
      %v1526 = vadd.f32 0.0, %v1525
      %v1527 = vpop.f32.mrb[0].mxu0
      %v1528 = vadd.f32 0.0, %v1527
      %v1529 = vpop.f32.mrb[0].mxu0
      %v1530 = vadd.f32 0.0, %v1529
      %v1531 = vpop.f32.mrb[0].mxu0
      %v1532 = vadd.f32 0.0, %v1531
      %1533 = vmatprep.mubr.bf16.mxu0 %v973
      %1534 = vmatmul.mubr.bf16.gmra.mrb[0].mxu0 %v972
      %v1535 = vpop.f32.mrb[0].mxu0
      %v1536 = vadd.f32 0.0, %v1535
      %v1537 = vpop.f32.mrb[0].mxu0
      %v1538 = vadd.f32 0.0, %v1537
      %v1539 = vpop.f32.mrb[0].mxu0
      %v1540 = vadd.f32 0.0, %v1539
      %v1541 = vpop.f32.mrb[0].mxu0
      %v1542 = vadd.f32 0.0, %v1541
      %1543 = vmatprep.mubr.bf16.mxu0 %v975
      %1544 = vmatmul.mubr.bf16.gmra.mrb[0].mxu0 %v974
      %v1545 = vpop.f32.mrb[0].mxu0
      %v1546 = vadd.f32 0.0, %v1545
      %v1547 = vpop.f32.mrb[0].mxu0
      %v1548 = vadd.f32 0.0, %v1547
      %v1549 = vpop.f32.mrb[0].mxu0
      %v1550 = vadd.f32 0.0, %v1549
      %v1551 = vpop.f32.mrb[0].mxu0
      %v1552 = vadd.f32 0.0, %v1551
      %1553 = vmatprep.mubr.bf16.mxu0 %v977
      %1554 = vmatmul.mubr.bf16.gmra.mrb[0].mxu0 %v976
      %v1555 = vpop.f32.mrb[0].mxu0
      %v1556 = vadd.f32 0.0, %v1555
      %v1557 = vpop.f32.mrb[0].mxu0
      %v1558 = vadd.f32 0.0, %v1557
      %v1559 = vpop.f32.mrb[0].mxu0
      %v1560 = vadd.f32 0.0, %v1559
      %v1561 = vpop.f32.mrb[0].mxu0
      %v1562 = vadd.f32 0.0, %v1561
      %1563 = vmatprep.mubr.bf16.mxu0 %v979
      %1564 = vmatmul.mubr.bf16.gmra.mrb[0].mxu0 %v978
      %v1565 = vpop.f32.mrb[0].mxu0
      %v1566 = vadd.f32 0.0, %v1565
      %v1567 = vpop.f32.mrb[0].mxu0
      %v1568 = vadd.f32 0.0, %v1567
      %v1569 = vpop.f32.mrb[0].mxu0
      %v1570 = vadd.f32 0.0, %v1569
      %v1571 = vpop.f32.mrb[0].mxu0
      %v1572 = vadd.f32 0.0, %v1571
      %1573 = vmatprep.mubr.bf16.mxu0 %v981
      %1574 = vmatmul.mubr.bf16.gmra.mrb[0].mxu0 %v980
      %v1575 = vpop.f32.mrb[0].mxu0
      %v1576 = vadd.f32 0.0, %v1575
      %v1577 = vpop.f32.mrb[0].mxu0
      %v1578 = vadd.f32 0.0, %v1577
      %v1579 = vpop.f32.mrb[0].mxu0
      %v1580 = vadd.f32 0.0, %v1579
      %v1581 = vpop.f32.mrb[0].mxu0
      %v1582 = vadd.f32 0.0, %v1581
      %1583 = vmatprep.mubr.bf16.mxu0 %v983
      %1584 = vmatmul.mubr.bf16.gmra.mrb[0].mxu0 %v982
      %v1585 = vpop.f32.mrb[0].mxu0
      %v1586 = vadd.f32 0.0, %v1585
      %v1587 = vpop.f32.mrb[0].mxu0
      %v1588 = vadd.f32 0.0, %v1587
      %v1589 = vpop.f32.mrb[0].mxu0
      %v1590 = vadd.f32 0.0, %v1589
      %v1591 = vpop.f32.mrb[0].mxu0
      %v1592 = vadd.f32 0.0, %v1591
      %1593 = vdwg.mxu0
      %v1594 = vpack.c.bf16 %v904, %v904
      %v1595 = vpack.c.bf16 %v913, %v913
      %v1596 = vpack.c.bf16 %v922, %v922
      %v1597 = vpack.c.bf16 %v931, %v931
      %v1598 = vpack.c.bf16 %v940, %v940
      %v1599 = vpack.c.bf16 %v949, %v949
      %v1600 = vpack.c.bf16 %v958, %v958
      %v1601 = vpack.c.bf16 %v967, %v967
      %v1602 = vld [vmem:[%s7] sm:$0xff]
      %v1603 = vld [vmem:[%s7 + $0x8] sm:$0xff]
      %v1604 = vld [vmem:[%s7 + $0x10] sm:$0xff]
      %v1605 = vld [vmem:[%s7 + $0x18] sm:$0xff]
      %v1606 = vld [vmem:[%s7 + $0x20] sm:$0xff]
      %v1607 = vld [vmem:[%s7 + $0x28] sm:$0xff]
      %v1608 = vld [vmem:[%s7 + $0x30] sm:$0xff]
      %v1609 = vld [vmem:[%s7 + $0x38] sm:$0xff]
      %v1610 = vld [vmem:[%s7 + $0x40] sm:$0xff]
      %v1611 = vld [vmem:[%s7 + $0x48] sm:$0xff]
      %v1612 = vld [vmem:[%s7 + $0x50] sm:$0xff]
      %v1613 = vld [vmem:[%s7 + $0x58] sm:$0xff]
      %v1614 = vld [vmem:[%s7 + $0x60] sm:$0xff]
      %v1615 = vld [vmem:[%s7 + $0x68] sm:$0xff]
      %v1616 = vld [vmem:[%s7 + $0x70] sm:$0xff]
      %v1617 = vld [vmem:[%s7 + $0x78] sm:$0xff]
      %v1618 = vld [vmem:[%s7 + $0x80] sm:$0xff]
      %v1619 = vld [vmem:[%s7 + $0x88] sm:$0xff]
      %v1620 = vld [vmem:[%s7 + $0x90] sm:$0xff]
      %v1621 = vld [vmem:[%s7 + $0x98] sm:$0xff]
      %v1622 = vld [vmem:[%s7 + $0xa0] sm:$0xff]
      %v1623 = vld [vmem:[%s7 + $0xa8] sm:$0xff]
      %v1624 = vld [vmem:[%s7 + $0xb0] sm:$0xff]
      %v1625 = vld [vmem:[%s7 + $0xb8] sm:$0xff]
      %v1626 = vld [vmem:[%s7 + $0xc0] sm:$0xff]
      %v1627 = vld [vmem:[%s7 + $0xc8] sm:$0xff]
      %v1628 = vld [vmem:[%s7 + $0xd0] sm:$0xff]
      %v1629 = vld [vmem:[%s7 + $0xd8] sm:$0xff]
      %v1630 = vld [vmem:[%s7 + $0xe0] sm:$0xff]
      %v1631 = vld [vmem:[%s7 + $0xe8] sm:$0xff]
      %v1632 = vld [vmem:[%s7 + $0xf0] sm:$0xff]
      %v1633 = vld [vmem:[%s7 + $0xf8] sm:$0xff]
      %v1634 = vld [vmem:[%s7 + $0x100] sm:$0xff]
      %v1635 = vld [vmem:[%s7 + $0x108] sm:$0xff]
      %v1636 = vld [vmem:[%s7 + $0x110] sm:$0xff]
      %v1637 = vld [vmem:[%s7 + $0x118] sm:$0xff]
      %v1638 = vld [vmem:[%s7 + $0x120] sm:$0xff]
      %v1639 = vld [vmem:[%s7 + $0x128] sm:$0xff]
      %v1640 = vld [vmem:[%s7 + $0x130] sm:$0xff]
      %v1641 = vld [vmem:[%s7 + $0x138] sm:$0xff]
      %v1642 = vld [vmem:[%s7 + $0x140] sm:$0xff]
      %v1643 = vld [vmem:[%s7 + $0x148] sm:$0xff]
      %v1644 = vld [vmem:[%s7 + $0x150] sm:$0xff]
      %v1645 = vld [vmem:[%s7 + $0x158] sm:$0xff]
      %v1646 = vld [vmem:[%s7 + $0x160] sm:$0xff]
      %v1647 = vld [vmem:[%s7 + $0x168] sm:$0xff]
      %v1648 = vld [vmem:[%s7 + $0x170] sm:$0xff]
      %v1649 = vld [vmem:[%s7 + $0x178] sm:$0xff]
      %v1650 = vld [vmem:[%s7 + $0x180] sm:$0xff]
      %v1651 = vld [vmem:[%s7 + $0x188] sm:$0xff]
      %v1652 = vld [vmem:[%s7 + $0x190] sm:$0xff]
      %v1653 = vld [vmem:[%s7 + $0x198] sm:$0xff]
      %v1654 = vld [vmem:[%s7 + $0x1a0] sm:$0xff]
      %v1655 = vld [vmem:[%s7 + $0x1a8] sm:$0xff]
      %v1656 = vld [vmem:[%s7 + $0x1b0] sm:$0xff]
      %v1657 = vld [vmem:[%s7 + $0x1b8] sm:$0xff]
      %v1658 = vld [vmem:[%s7 + $0x1c0] sm:$0xff]
      %v1659 = vld [vmem:[%s7 + $0x1c8] sm:$0xff]
      %v1660 = vld [vmem:[%s7 + $0x1d0] sm:$0xff]
      %v1661 = vld [vmem:[%s7 + $0x1d8] sm:$0xff]
      %v1662 = vld [vmem:[%s7 + $0x1e0] sm:$0xff]
      %v1663 = vld [vmem:[%s7 + $0x1e8] sm:$0xff]
      %v1664 = vld [vmem:[%s7 + $0x1f0] sm:$0xff]
      %v1665 = vld [vmem:[%s7 + $0x1f8] sm:$0xff]
      %v1674 = vunpack.c.l.b16 %v1594
      %v1675 = vunpack.c.l.b16 %v1595
      %v1676 = vunpack.c.l.b16 %v1596
      %v1677 = vunpack.c.l.b16 %v1597
      %v1678 = vunpack.c.l.b16 %v1598
      %v1679 = vunpack.c.l.b16 %v1599
      %v1680 = vunpack.c.l.b16 %v1600
      %v1681 = vunpack.c.l.b16 %v1601
      %vm1682 = vcmask 1041409
      %v1683 = vsel %vm1682, %v1676, %v1674
      %vm1684 = vcmask 1042434
      %v1685 = vsel %vm1684, %v1678, %v1683
      %vm1686 = vcmask 1043459
      %v1687 = vsel %vm1686, %v1680, %v1685
      %v1688 = vsel %vm1682, %v1677, %v1675
      %v1689 = vsel %vm1684, %v1679, %v1688
      %v1690 = vsel %vm1686, %v1681, %v1689
      %v1691 = vpack.c.b16 %v1687, %v1687
      %v1692 = vpack.c.b16 %v1690, %v1690
      %v1759 = vunpack.c.l.b16 %v1602
      %v1760 = vunpack.c.h.b16 %v1602
      %v1761 = vunpack.c.l.b16 %v1603
      %v1762 = vunpack.c.h.b16 %v1603
      %v1763 = vunpack.c.l.b16 %v1604
      %v1764 = vunpack.c.h.b16 %v1604
      %v1765 = vunpack.c.l.b16 %v1605
      %v1766 = vunpack.c.h.b16 %v1605
      %v1767 = vunpack.c.l.b16 %v1606
      %v1768 = vunpack.c.h.b16 %v1606
      %v1769 = vunpack.c.l.b16 %v1607
      %v1770 = vunpack.c.h.b16 %v1607
      %v1771 = vunpack.c.l.b16 %v1608
      %v1772 = vunpack.c.h.b16 %v1608
      %v1773 = vunpack.c.l.b16 %v1609
      %v1774 = vunpack.c.h.b16 %v1609
      %v1775 = vunpack.c.l.b16 %v1610
      %v1776 = vunpack.c.h.b16 %v1610
      %v1777 = vunpack.c.l.b16 %v1611
      %v1778 = vunpack.c.h.b16 %v1611
      %v1779 = vunpack.c.l.b16 %v1612
      %v1780 = vunpack.c.h.b16 %v1612
      %v1781 = vunpack.c.l.b16 %v1613
      %v1782 = vunpack.c.h.b16 %v1613
      %v1783 = vunpack.c.l.b16 %v1614
      %v1784 = vunpack.c.h.b16 %v1614
      %v1785 = vunpack.c.l.b16 %v1615
      %v1786 = vunpack.c.h.b16 %v1615
      %v1787 = vunpack.c.l.b16 %v1616
      %v1788 = vunpack.c.h.b16 %v1616
      %v1789 = vunpack.c.l.b16 %v1617
      %v1790 = vunpack.c.h.b16 %v1617
      %v1791 = vunpack.c.l.b16 %v1618
      %v1792 = vunpack.c.h.b16 %v1618
      %v1793 = vunpack.c.l.b16 %v1619
      %v1794 = vunpack.c.h.b16 %v1619
      %v1795 = vunpack.c.l.b16 %v1620
      %v1796 = vunpack.c.h.b16 %v1620
      %v1797 = vunpack.c.l.b16 %v1621
      %v1798 = vunpack.c.h.b16 %v1621
      %v1799 = vunpack.c.l.b16 %v1622
      %v1800 = vunpack.c.h.b16 %v1622
      %v1801 = vunpack.c.l.b16 %v1623
      %v1802 = vunpack.c.h.b16 %v1623
      %v1803 = vunpack.c.l.b16 %v1624
      %v1804 = vunpack.c.h.b16 %v1624
      %v1805 = vunpack.c.l.b16 %v1625
      %v1806 = vunpack.c.h.b16 %v1625
      %v1807 = vunpack.c.l.b16 %v1626
      %v1808 = vunpack.c.h.b16 %v1626
      %v1809 = vunpack.c.l.b16 %v1627
      %v1810 = vunpack.c.h.b16 %v1627
      %v1811 = vunpack.c.l.b16 %v1628
      %v1812 = vunpack.c.h.b16 %v1628
      %v1813 = vunpack.c.l.b16 %v1629
      %v1814 = vunpack.c.h.b16 %v1629
      %v1815 = vunpack.c.l.b16 %v1630
      %v1816 = vunpack.c.h.b16 %v1630
      %v1817 = vunpack.c.l.b16 %v1631
      %v1818 = vunpack.c.h.b16 %v1631
      %v1819 = vunpack.c.l.b16 %v1632
      %v1820 = vunpack.c.h.b16 %v1632
      %v1821 = vunpack.c.l.b16 %v1633
      %v1822 = vunpack.c.h.b16 %v1633
      %v1823 = vunpack.c.l.b16 %v1634
      %v1824 = vunpack.c.h.b16 %v1634
      %v1825 = vunpack.c.l.b16 %v1635
      %v1826 = vunpack.c.h.b16 %v1635
      %v1827 = vunpack.c.l.b16 %v1636
      %v1828 = vunpack.c.h.b16 %v1636
      %v1829 = vunpack.c.l.b16 %v1637
      %v1830 = vunpack.c.h.b16 %v1637
      %v1831 = vunpack.c.l.b16 %v1638
      %v1832 = vunpack.c.h.b16 %v1638
      %v1833 = vunpack.c.l.b16 %v1639
      %v1834 = vunpack.c.h.b16 %v1639
      %v1835 = vunpack.c.l.b16 %v1640
      %v1836 = vunpack.c.h.b16 %v1640
      %v1837 = vunpack.c.l.b16 %v1641
      %v1838 = vunpack.c.h.b16 %v1641
      %v1839 = vunpack.c.l.b16 %v1642
      %v1840 = vunpack.c.h.b16 %v1642
      %v1841 = vunpack.c.l.b16 %v1643
      %v1842 = vunpack.c.h.b16 %v1643
      %v1843 = vunpack.c.l.b16 %v1644
      %v1844 = vunpack.c.h.b16 %v1644
      %v1845 = vunpack.c.l.b16 %v1645
      %v1846 = vunpack.c.h.b16 %v1645
      %v1847 = vunpack.c.l.b16 %v1646
      %v1848 = vunpack.c.h.b16 %v1646
      %v1849 = vunpack.c.l.b16 %v1647
      %v1850 = vunpack.c.h.b16 %v1647
      %v1851 = vunpack.c.l.b16 %v1648
      %v1852 = vunpack.c.h.b16 %v1648
      %v1853 = vunpack.c.l.b16 %v1649
      %v1854 = vunpack.c.h.b16 %v1649
      %v1855 = vunpack.c.l.b16 %v1650
      %v1856 = vunpack.c.h.b16 %v1650
      %v1857 = vunpack.c.l.b16 %v1651
      %v1858 = vunpack.c.h.b16 %v1651
      %v1859 = vunpack.c.l.b16 %v1652
      %v1860 = vunpack.c.h.b16 %v1652
      %v1861 = vunpack.c.l.b16 %v1653
      %v1862 = vunpack.c.h.b16 %v1653
      %v1863 = vunpack.c.l.b16 %v1654
      %v1864 = vunpack.c.h.b16 %v1654
      %v1865 = vunpack.c.l.b16 %v1655
      %v1866 = vunpack.c.h.b16 %v1655
      %v1867 = vunpack.c.l.b16 %v1656
      %v1868 = vunpack.c.h.b16 %v1656
      %v1869 = vunpack.c.l.b16 %v1657
      %v1870 = vunpack.c.h.b16 %v1657
      %v1871 = vunpack.c.l.b16 %v1658
      %v1872 = vunpack.c.h.b16 %v1658
      %v1873 = vunpack.c.l.b16 %v1659
      %v1874 = vunpack.c.h.b16 %v1659
      %v1875 = vunpack.c.l.b16 %v1660
      %v1876 = vunpack.c.h.b16 %v1660
      %v1877 = vunpack.c.l.b16 %v1661
      %v1878 = vunpack.c.h.b16 %v1661
      %v1879 = vunpack.c.l.b16 %v1662
      %v1880 = vunpack.c.h.b16 %v1662
      %v1881 = vunpack.c.l.b16 %v1663
      %v1882 = vunpack.c.h.b16 %v1663
      %v1883 = vunpack.c.l.b16 %v1664
      %v1884 = vunpack.c.h.b16 %v1664
      %v1885 = vunpack.c.l.b16 %v1665
      %v1886 = vunpack.c.h.b16 %v1665
      %v1887 = vpack.c.b16 %v1763, %v1759
      %v1888 = vpack.c.b16 %v1764, %v1760
      %v1889 = vpack.c.b16 %v1765, %v1761
      %v1890 = vpack.c.b16 %v1766, %v1762
      %v1891 = vpack.c.b16 %v1771, %v1767
      %v1892 = vpack.c.b16 %v1772, %v1768
      %v1893 = vpack.c.b16 %v1773, %v1769
      %v1894 = vpack.c.b16 %v1774, %v1770
      %v1895 = vpack.c.b16 %v1779, %v1775
      %v1896 = vpack.c.b16 %v1780, %v1776
      %v1897 = vpack.c.b16 %v1781, %v1777
      %v1898 = vpack.c.b16 %v1782, %v1778
      %v1899 = vpack.c.b16 %v1787, %v1783
      %v1900 = vpack.c.b16 %v1788, %v1784
      %v1901 = vpack.c.b16 %v1789, %v1785
      %v1902 = vpack.c.b16 %v1790, %v1786
      %v1903 = vpack.c.b16 %v1795, %v1791
      %v1904 = vpack.c.b16 %v1796, %v1792
      %v1905 = vpack.c.b16 %v1797, %v1793
      %v1906 = vpack.c.b16 %v1798, %v1794
      %v1907 = vpack.c.b16 %v1803, %v1799
      %v1908 = vpack.c.b16 %v1804, %v1800
      %v1909 = vpack.c.b16 %v1805, %v1801
      %v1910 = vpack.c.b16 %v1806, %v1802
      %v1911 = vpack.c.b16 %v1811, %v1807
      %v1912 = vpack.c.b16 %v1812, %v1808
      %v1913 = vpack.c.b16 %v1813, %v1809
      %v1914 = vpack.c.b16 %v1814, %v1810
      %v1915 = vpack.c.b16 %v1819, %v1815
      %v1916 = vpack.c.b16 %v1820, %v1816
      %v1917 = vpack.c.b16 %v1821, %v1817
      %v1918 = vpack.c.b16 %v1822, %v1818
      %v1919 = vpack.c.b16 %v1827, %v1823
      %v1920 = vpack.c.b16 %v1828, %v1824
      %v1921 = vpack.c.b16 %v1829, %v1825
      %v1922 = vpack.c.b16 %v1830, %v1826
      %v1923 = vpack.c.b16 %v1835, %v1831
      %v1924 = vpack.c.b16 %v1836, %v1832
      %v1925 = vpack.c.b16 %v1837, %v1833
      %v1926 = vpack.c.b16 %v1838, %v1834
      %v1927 = vpack.c.b16 %v1843, %v1839
      %v1928 = vpack.c.b16 %v1844, %v1840
      %v1929 = vpack.c.b16 %v1845, %v1841
      %v1930 = vpack.c.b16 %v1846, %v1842
      %v1931 = vpack.c.b16 %v1851, %v1847
      %v1932 = vpack.c.b16 %v1852, %v1848
      %v1933 = vpack.c.b16 %v1853, %v1849
      %v1934 = vpack.c.b16 %v1854, %v1850
      %v1935 = vpack.c.b16 %v1859, %v1855
      %v1936 = vpack.c.b16 %v1860, %v1856
      %v1937 = vpack.c.b16 %v1861, %v1857
      %v1938 = vpack.c.b16 %v1862, %v1858
      %v1939 = vpack.c.b16 %v1867, %v1863
      %v1940 = vpack.c.b16 %v1868, %v1864
      %v1941 = vpack.c.b16 %v1869, %v1865
      %v1942 = vpack.c.b16 %v1870, %v1866
      %v1943 = vpack.c.b16 %v1875, %v1871
      %v1944 = vpack.c.b16 %v1876, %v1872
      %v1945 = vpack.c.b16 %v1877, %v1873
      %v1946 = vpack.c.b16 %v1878, %v1874
      %v1947 = vpack.c.b16 %v1883, %v1879
      %v1948 = vpack.c.b16 %v1884, %v1880
      %v1949 = vpack.c.b16 %v1885, %v1881
      %v1950 = vpack.c.b16 %v1886, %v1882
      %2015 = vmatprep.subr.bf16.mxu0 %v1888
      %2016 = vmatpush1.bf16.msra.mxu0 %v1887
      %2017 = vmatprep.subr.bf16.mxu0 %v1892
      %2018 = vmatpush1.bf16.msra.mxu0 %v1891
      %2019 = vmatprep.subr.bf16.mxu0 %v1896
      %2020 = vmatpush1.bf16.msra.mxu0 %v1895
      %2021 = vmatprep.subr.bf16.mxu0 %v1900
      %2022 = vmatpush1.bf16.msra.mxu0 %v1899
      %2023 = vmatprep.subr.bf16.mxu0 %v1904
      %2024 = vmatpush1.bf16.msra.mxu0 %v1903
      %2025 = vmatprep.subr.bf16.mxu0 %v1908
      %2026 = vmatpush1.bf16.msra.mxu0 %v1907
      %2027 = vmatprep.subr.bf16.mxu0 %v1912
      %2028 = vmatpush1.bf16.msra.mxu0 %v1911
      %2029 = vmatprep.subr.bf16.mxu0 %v1916
      %2030 = vmatpush1.bf16.msra.mxu0 %v1915
      %2031 = vmatprep.subr.bf16.mxu0 %v1920
      %2032 = vmatpush1.bf16.msra.mxu0 %v1919
      %2033 = vmatprep.subr.bf16.mxu0 %v1924
      %2034 = vmatpush1.bf16.msra.mxu0 %v1923
      %2035 = vmatprep.subr.bf16.mxu0 %v1928
      %2036 = vmatpush1.bf16.msra.mxu0 %v1927
      %2037 = vmatprep.subr.bf16.mxu0 %v1932
      %2038 = vmatpush1.bf16.msra.mxu0 %v1931
      %2039 = vmatprep.subr.bf16.mxu0 %v1936
      %2040 = vmatpush1.bf16.msra.mxu0 %v1935
      %2041 = vmatprep.subr.bf16.mxu0 %v1940
      %2042 = vmatpush1.bf16.msra.mxu0 %v1939
      %2043 = vmatprep.subr.bf16.mxu0 %v1944
      %2044 = vmatpush1.bf16.msra.mxu0 %v1943
      %2045 = vmatprep.subr.bf16.mxu0 %v1948
      %2046 = vmatpush1.bf16.msra.mxu0 %v1947
      %2047 = vmatprep.mubr.bf16.mxu0 %v1692
      %2048 = vmatmul.mubr.bf16.gmra.mrb[0].mxu0 %v1691
      %v2049 = vpop.f32.mrb[0].mxu0
      %v2050 = vadd.f32 0.0, %v2049
      %v2051 = vpop.f32.mrb[0].mxu0
      %v2052 = vadd.f32 0.0, %v2051
      %v2053 = vpop.f32.mrb[0].mxu0
      %v2054 = vpop.f32.mrb[0].mxu0
      %2055 = vdwg.mxu0
      %2056 = vmatprep.subr.bf16.mxu0 %v1890
      %2057 = vmatpush1.bf16.msra.mxu0 %v1889
      %2058 = vmatprep.subr.bf16.mxu0 %v1894
      %2059 = vmatpush1.bf16.msra.mxu0 %v1893
      %2060 = vmatprep.subr.bf16.mxu0 %v1898
      %2061 = vmatpush1.bf16.msra.mxu0 %v1897
      %2062 = vmatprep.subr.bf16.mxu0 %v1902
      %2063 = vmatpush1.bf16.msra.mxu0 %v1901
      %2064 = vmatprep.subr.bf16.mxu0 %v1906
      %2065 = vmatpush1.bf16.msra.mxu0 %v1905
      %2066 = vmatprep.subr.bf16.mxu0 %v1910
      %2067 = vmatpush1.bf16.msra.mxu0 %v1909
      %2068 = vmatprep.subr.bf16.mxu0 %v1914
      %2069 = vmatpush1.bf16.msra.mxu0 %v1913
      %2070 = vmatprep.subr.bf16.mxu0 %v1918
      %2071 = vmatpush1.bf16.msra.mxu0 %v1917
      %2072 = vmatprep.subr.bf16.mxu0 %v1922
      %2073 = vmatpush1.bf16.msra.mxu0 %v1921
      %2074 = vmatprep.subr.bf16.mxu0 %v1926
      %2075 = vmatpush1.bf16.msra.mxu0 %v1925
      %2076 = vmatprep.subr.bf16.mxu0 %v1930
      %2077 = vmatpush1.bf16.msra.mxu0 %v1929
      %2078 = vmatprep.subr.bf16.mxu0 %v1934
      %2079 = vmatpush1.bf16.msra.mxu0 %v1933
      %2080 = vmatprep.subr.bf16.mxu0 %v1938
      %2081 = vmatpush1.bf16.msra.mxu0 %v1937
      %2082 = vmatprep.subr.bf16.mxu0 %v1942
      %2083 = vmatpush1.bf16.msra.mxu0 %v1941
      %2084 = vmatprep.subr.bf16.mxu0 %v1946
      %2085 = vmatpush1.bf16.msra.mxu0 %v1945
      %2086 = vmatprep.subr.bf16.mxu0 %v1950
      %2087 = vmatpush1.bf16.msra.mxu0 %v1949
      %2088 = vmatprep.mubr.bf16.mxu0 %v1692
      %2089 = vmatmul.mubr.bf16.gmra.mrb[0].mxu0 %v1691
      %v2090 = vpop.f32.mrb[0].mxu0
      %v2091 = vadd.f32 0.0, %v2090
      %v2092 = vpop.f32.mrb[0].mxu0
      %v2093 = vadd.f32 0.0, %v2092
      %v2094 = vpop.f32.mrb[0].mxu0
      %v2095 = vpop.f32.mrb[0].mxu0
      %2096 = vdwg.mxu0
      %v2101 = vcombine.low %v2050, %v2052
      %v2102 = vcombine.low %v2091, %v2093
      %v2104 = vunpack.c.l.s4 1966171168
      %v2105 = vunpack.c.0.s8 %v2104
      %v2106 = vlaneseq
      %v2107 = vshrl.u32 %v2106, 7
      %v2108 = vsub.s32 %v2105, %v2107
      %v2109 = vrot.slane %v2101, %v2108
      %v2111 = vunpack.c.l.s4 1966171168
      %v2112 = vunpack.c.0.s8 %v2111
      %v2113 = vlaneseq
      %v2114 = vshrl.u32 %v2113, 7
      %v2115 = vsub.s32 %v2112, %v2114
      %v2116 = vrot.slane %v2102, %v2115
      %v2117 = vcombine.low %v2109, %v2116
      %v2118 = vcombine.high %v2109, %v2116
      %v2120 = vunpack.c.l.s4 1966171168
      %v2121 = vunpack.c.0.s8 %v2120
      %v2122 = vlaneseq
      %v2123 = vshrl.u32 %v2122, 7
      %v2124 = vsub.s32 %v2121, %v2123
      %v2125 = vrot.slane %v2117, %v2124
      %v2127 = vunpack.c.l.s4 1966171168
      %v2128 = vunpack.c.0.s8 %v2127
      %v2129 = vlaneseq
      %v2130 = vshrl.u32 %v2129, 7
      %v2131 = vsub.s32 %v2128, %v2130
      %v2132 = vrot.slane %v2118, %v2131
      %v2133 = vcombine.high %v2125, %v2125
      %v2134 = vcombine.high %v2132, %v2132
      %v2135 = vlaneseq
      %v2136 = vshrl.u32 %v2135, 7
      %v2137 = vsub.s32 0, %v2136
      %v2138 = vrot.slane %v2125, %v2137
      %v2139 = vlaneseq
      %v2140 = vshrl.u32 %v2139, 7
      %v2141 = vsub.s32 1, %v2140
      %v2142 = vrot.slane %v2125, %v2141
      %v2143 = vlaneseq
      %v2144 = vshrl.u32 %v2143, 7
      %v2145 = vsub.s32 2, %v2144
      %v2146 = vrot.slane %v2125, %v2145
      %v2147 = vlaneseq
      %v2148 = vshrl.u32 %v2147, 7
      %v2149 = vsub.s32 3, %v2148
      %v2150 = vrot.slane %v2125, %v2149
      %v2151 = vlaneseq
      %v2152 = vshrl.u32 %v2151, 7
      %v2153 = vsub.s32 0, %v2152
      %v2154 = vrot.slane %v2132, %v2153
      %v2155 = vlaneseq
      %v2156 = vshrl.u32 %v2155, 7
      %v2157 = vsub.s32 1, %v2156
      %v2158 = vrot.slane %v2132, %v2157
      %v2159 = vlaneseq
      %v2160 = vshrl.u32 %v2159, 7
      %v2161 = vsub.s32 2, %v2160
      %v2162 = vrot.slane %v2132, %v2161
      %v2163 = vlaneseq
      %v2164 = vshrl.u32 %v2163, 7
      %v2165 = vsub.s32 3, %v2164
      %v2166 = vrot.slane %v2132, %v2165
      %v2167 = vlaneseq
      %v2168 = vshrl.u32 %v2167, 7
      %v2169 = vsub.s32 0, %v2168
      %v2170 = vrot.slane %v2133, %v2169
      %v2171 = vlaneseq
      %v2172 = vshrl.u32 %v2171, 7
      %v2173 = vsub.s32 1, %v2172
      %v2174 = vrot.slane %v2133, %v2173
      %v2175 = vlaneseq
      %v2176 = vshrl.u32 %v2175, 7
      %v2177 = vsub.s32 2, %v2176
      %v2178 = vrot.slane %v2133, %v2177
      %v2179 = vlaneseq
      %v2180 = vshrl.u32 %v2179, 7
      %v2181 = vsub.s32 3, %v2180
      %v2182 = vrot.slane %v2133, %v2181
      %v2183 = vlaneseq
      %v2184 = vshrl.u32 %v2183, 7
      %v2185 = vsub.s32 0, %v2184
      %v2186 = vrot.slane %v2134, %v2185
      %v2187 = vlaneseq
      %v2188 = vshrl.u32 %v2187, 7
      %v2189 = vsub.s32 1, %v2188
      %v2190 = vrot.slane %v2134, %v2189
      %v2191 = vlaneseq
      %v2192 = vshrl.u32 %v2191, 7
      %v2193 = vsub.s32 2, %v2192
      %v2194 = vrot.slane %v2134, %v2193
      %v2195 = vlaneseq
      %v2196 = vshrl.u32 %v2195, 7
      %v2197 = vsub.s32 3, %v2196
      %v2198 = vrot.slane %v2134, %v2197
      %v2215 = vadd.f32 %v1403, %v2138
      %v2216 = vadd.f32 %v1405, %v2142
      %v2217 = vadd.f32 %v1516, %v2146
      %v2218 = vadd.f32 %v1518, %v2150
      %v2219 = vadd.f32 %v1407, %v2138
      %v2220 = vadd.f32 %v1409, %v2142
      %v2221 = vadd.f32 %v1520, %v2146
      %v2222 = vadd.f32 %v1522, %v2150
      %v2223 = vadd.f32 %v1413, %v2138
      %v2224 = vadd.f32 %v1415, %v2142
      %v2225 = vadd.f32 %v1526, %v2146
      %v2226 = vadd.f32 %v1528, %v2150
      %v2227 = vadd.f32 %v1417, %v2138
      %v2228 = vadd.f32 %v1419, %v2142
      %v2229 = vadd.f32 %v1530, %v2146
      %v2230 = vadd.f32 %v1532, %v2150
      %v2231 = vadd.f32 %v1423, %v2154
      %v2232 = vadd.f32 %v1425, %v2158
      %v2233 = vadd.f32 %v1536, %v2162
      %v2234 = vadd.f32 %v1538, %v2166
      %v2235 = vadd.f32 %v1427, %v2154
      %v2236 = vadd.f32 %v1429, %v2158
      %v2237 = vadd.f32 %v1540, %v2162
      %v2238 = vadd.f32 %v1542, %v2166
      %v2239 = vadd.f32 %v1433, %v2154
      %v2240 = vadd.f32 %v1435, %v2158
      %v2241 = vadd.f32 %v1546, %v2162
      %v2242 = vadd.f32 %v1548, %v2166
      %v2243 = vadd.f32 %v1437, %v2154
      %v2244 = vadd.f32 %v1439, %v2158
      %v2245 = vadd.f32 %v1550, %v2162
      %v2246 = vadd.f32 %v1552, %v2166
      %v2247 = vadd.f32 %v1443, %v2170
      %v2248 = vadd.f32 %v1445, %v2174
      %v2249 = vadd.f32 %v1556, %v2178
      %v2250 = vadd.f32 %v1558, %v2182
      %v2251 = vadd.f32 %v1447, %v2170
      %v2252 = vadd.f32 %v1449, %v2174
      %v2253 = vadd.f32 %v1560, %v2178
      %v2254 = vadd.f32 %v1562, %v2182
      %v2255 = vadd.f32 %v1453, %v2170
      %v2256 = vadd.f32 %v1455, %v2174
      %v2257 = vadd.f32 %v1566, %v2178
      %v2258 = vadd.f32 %v1568, %v2182
      %v2259 = vadd.f32 %v1457, %v2170
      %v2260 = vadd.f32 %v1459, %v2174
      %v2261 = vadd.f32 %v1570, %v2178
      %v2262 = vadd.f32 %v1572, %v2182
      %v2263 = vadd.f32 %v1463, %v2186
      %v2264 = vadd.f32 %v1465, %v2190
      %v2265 = vadd.f32 %v1576, %v2194
      %v2266 = vadd.f32 %v1578, %v2198
      %v2267 = vadd.f32 %v1467, %v2186
      %v2268 = vadd.f32 %v1469, %v2190
      %v2269 = vadd.f32 %v1580, %v2194
      %v2270 = vadd.f32 %v1582, %v2198
      %v2271 = vadd.f32 %v1473, %v2186
      %v2272 = vadd.f32 %v1475, %v2190
      %v2273 = vadd.f32 %v1586, %v2194
      %v2274 = vadd.f32 %v1588, %v2198
      %v2275 = vadd.f32 %v1477, %v2186
      %v2276 = vadd.f32 %v1479, %v2190
      %v2277 = vadd.f32 %v1590, %v2194
      %v2278 = vadd.f32 %v1592, %v2198
      %v2279 = vld [vmem:[%s382] sm:$0xf]
      %v2280 = vld [vmem:[%s382 + $0x4] sm:$0xf]
      %v2281 = vld [vmem:[%s382 + $0x8] sm:$0xf]
      %v2282 = vld [vmem:[%s382 + $0xc] sm:$0xf]
      %v2283 = vld [vmem:[%s382 + $0x10] sm:$0xf]
      %v2284 = vld [vmem:[%s382 + $0x14] sm:$0xf]
      %v2285 = vld [vmem:[%s382 + $0x18] sm:$0xf]
      %v2286 = vld [vmem:[%s382 + $0x1c] sm:$0xf]
      %v2287 = vld [vmem:[%s382 + $0x20] sm:$0xf]
      %v2288 = vld [vmem:[%s382 + $0x24] sm:$0xf]
      %v2289 = vld [vmem:[%s382 + $0x28] sm:$0xf]
      %v2290 = vld [vmem:[%s382 + $0x2c] sm:$0xf]
      %v2291 = vld [vmem:[%s382 + $0x30] sm:$0xf]
      %v2292 = vld [vmem:[%s382 + $0x34] sm:$0xf]
      %v2293 = vld [vmem:[%s382 + $0x38] sm:$0xf]
      %v2294 = vld [vmem:[%s382 + $0x3c] sm:$0xf]
      %v2295 = vunpack.c.l.bf16 %v2279
      %v2296 = vunpack.c.l.bf16 %v2280
      %v2297 = vunpack.c.l.bf16 %v2281
      %v2298 = vunpack.c.l.bf16 %v2282
      %v2299 = vunpack.c.l.bf16 %v2283
      %v2300 = vunpack.c.l.bf16 %v2284
      %v2301 = vunpack.c.l.bf16 %v2285
      %v2302 = vunpack.c.l.bf16 %v2286
      %v2303 = vunpack.c.l.bf16 %v2287
      %v2304 = vunpack.c.l.bf16 %v2288
      %v2305 = vunpack.c.l.bf16 %v2289
      %v2306 = vunpack.c.l.bf16 %v2290
      %v2307 = vunpack.c.l.bf16 %v2291
      %v2308 = vunpack.c.l.bf16 %v2292
      %v2309 = vunpack.c.l.bf16 %v2293
      %v2310 = vunpack.c.l.bf16 %v2294
      %2312 = vset.pattern.permute.xlu0 0
      %2313 = vperm.xlu0 %2312, %v2295
      %v2314 = vpop.permute.xlu0 %2313
      %2317 = vset.pattern.permute.xlu0 0
      %2318 = vperm.xlu0 %2317, %v2296
      %v2319 = vpop.permute.xlu0 %2318
      %2322 = vset.pattern.permute.xlu0 0
      %2323 = vperm.xlu0 %2322, %v2297
      %v2324 = vpop.permute.xlu0 %2323
      %2327 = vset.pattern.permute.xlu0 0
      %2328 = vperm.xlu0 %2327, %v2298
      %v2329 = vpop.permute.xlu0 %2328
      %2332 = vset.pattern.permute.xlu0 0
      %2333 = vperm.xlu0 %2332, %v2299
      %v2334 = vpop.permute.xlu0 %2333
      %2337 = vset.pattern.permute.xlu0 0
      %2338 = vperm.xlu0 %2337, %v2300
      %v2339 = vpop.permute.xlu0 %2338
      %2342 = vset.pattern.permute.xlu0 0
      %2343 = vperm.xlu0 %2342, %v2301
      %v2344 = vpop.permute.xlu0 %2343
      %2347 = vset.pattern.permute.xlu0 0
      %2348 = vperm.xlu0 %2347, %v2302
      %v2349 = vpop.permute.xlu0 %2348
      %2352 = vset.pattern.permute.xlu0 0
      %2353 = vperm.xlu0 %2352, %v2303
      %v2354 = vpop.permute.xlu0 %2353
      %2357 = vset.pattern.permute.xlu0 0
      %2358 = vperm.xlu0 %2357, %v2304
      %v2359 = vpop.permute.xlu0 %2358
      %2362 = vset.pattern.permute.xlu0 0
      %2363 = vperm.xlu0 %2362, %v2305
      %v2364 = vpop.permute.xlu0 %2363
      %2367 = vset.pattern.permute.xlu0 0
      %2368 = vperm.xlu0 %2367, %v2306
      %v2369 = vpop.permute.xlu0 %2368
      %2372 = vset.pattern.permute.xlu0 0
      %2373 = vperm.xlu0 %2372, %v2307
      %v2374 = vpop.permute.xlu0 %2373
      %2377 = vset.pattern.permute.xlu0 0
      %2378 = vperm.xlu0 %2377, %v2308
      %v2379 = vpop.permute.xlu0 %2378
      %2382 = vset.pattern.permute.xlu0 0
      %2383 = vperm.xlu0 %2382, %v2309
      %v2384 = vpop.permute.xlu0 %2383
      %2387 = vset.pattern.permute.xlu0 0
      %2388 = vperm.xlu0 %2387, %v2310
      %v2389 = vpop.permute.xlu0 %2388
      %v2391 = vmul.f32 %v2215, %v2314
      %v2392 = vmul.f32 %v2216, %v2314
      %v2393 = vmul.f32 %v2217, %v2314
      %v2394 = vmul.f32 %v2218, %v2314
      %v2395 = vmul.f32 %v2219, %v2319
      %v2396 = vmul.f32 %v2220, %v2319
      %v2397 = vmul.f32 %v2221, %v2319
      %v2398 = vmul.f32 %v2222, %v2319
      %v2399 = vmul.f32 %v2223, %v2324
      %v2400 = vmul.f32 %v2224, %v2324
      %v2401 = vmul.f32 %v2225, %v2324
      %v2402 = vmul.f32 %v2226, %v2324
      %v2403 = vmul.f32 %v2227, %v2329
      %v2404 = vmul.f32 %v2228, %v2329
      %v2405 = vmul.f32 %v2229, %v2329
      %v2406 = vmul.f32 %v2230, %v2329
      %v2407 = vmul.f32 %v2231, %v2334
      %v2408 = vmul.f32 %v2232, %v2334
      %v2409 = vmul.f32 %v2233, %v2334
      %v2410 = vmul.f32 %v2234, %v2334
      %v2411 = vmul.f32 %v2235, %v2339
      %v2412 = vmul.f32 %v2236, %v2339
      %v2413 = vmul.f32 %v2237, %v2339
      %v2414 = vmul.f32 %v2238, %v2339
      %v2415 = vmul.f32 %v2239, %v2344
      %v2416 = vmul.f32 %v2240, %v2344
      %v2417 = vmul.f32 %v2241, %v2344
      %v2418 = vmul.f32 %v2242, %v2344
      %v2419 = vmul.f32 %v2243, %v2349
      %v2420 = vmul.f32 %v2244, %v2349
      %v2421 = vmul.f32 %v2245, %v2349
      %v2422 = vmul.f32 %v2246, %v2349
      %v2423 = vmul.f32 %v2247, %v2354
      %v2424 = vmul.f32 %v2248, %v2354
      %v2425 = vmul.f32 %v2249, %v2354
      %v2426 = vmul.f32 %v2250, %v2354
      %v2427 = vmul.f32 %v2251, %v2359
      %v2428 = vmul.f32 %v2252, %v2359
      %v2429 = vmul.f32 %v2253, %v2359
      %v2430 = vmul.f32 %v2254, %v2359
      %v2431 = vmul.f32 %v2255, %v2364
      %v2432 = vmul.f32 %v2256, %v2364
      %v2433 = vmul.f32 %v2257, %v2364
      %v2434 = vmul.f32 %v2258, %v2364
      %v2435 = vmul.f32 %v2259, %v2369
      %v2436 = vmul.f32 %v2260, %v2369
      %v2437 = vmul.f32 %v2261, %v2369
      %v2438 = vmul.f32 %v2262, %v2369
      %v2439 = vmul.f32 %v2263, %v2374
      %v2440 = vmul.f32 %v2264, %v2374
      %v2441 = vmul.f32 %v2265, %v2374
      %v2442 = vmul.f32 %v2266, %v2374
      %v2443 = vmul.f32 %v2267, %v2379
      %v2444 = vmul.f32 %v2268, %v2379
      %v2445 = vmul.f32 %v2269, %v2379
      %v2446 = vmul.f32 %v2270, %v2379
      %v2447 = vmul.f32 %v2271, %v2384
      %v2448 = vmul.f32 %v2272, %v2384
      %v2449 = vmul.f32 %v2273, %v2384
      %v2450 = vmul.f32 %v2274, %v2384
      %v2451 = vmul.f32 %v2275, %v2389
      %v2452 = vmul.f32 %v2276, %v2389
      %v2453 = vmul.f32 %v2277, %v2389
      %v2454 = vmul.f32 %v2278, %v2389
      %v2455 = vadd.f32 %v2391, %v2395
      %v2456 = vadd.f32 %v2455, %v2399
      %v2457 = vadd.f32 %v2456, %v2403
      %v2458 = vadd.f32 %v2457, %v2407
      %v2459 = vadd.f32 %v2458, %v2411
      %v2460 = vadd.f32 %v2459, %v2415
      %v2461 = vadd.f32 %v2460, %v2419
      %v2462 = vadd.f32 %v2461, %v2423
      %v2463 = vadd.f32 %v2462, %v2427
      %v2464 = vadd.f32 %v2463, %v2431
      %v2465 = vadd.f32 %v2464, %v2435
      %v2466 = vadd.f32 %v2465, %v2439
      %v2467 = vadd.f32 %v2466, %v2443
      %v2468 = vadd.f32 %v2467, %v2447
      %v2469 = vadd.f32 %v2468, %v2451
      %v2470 = vrot.slane %v2469, 4
      %v2471 = vadd.f32 %v2469, %v2470
      %v2472 = vrot.slane %v2471, 2
      %v2473 = vadd.f32 %v2471, %v2472
      %v2474 = vrot.slane %v2473, 1
      %v2475 = vadd.f32 %v2473, %v2474
      %v2476 = vadd.f32 %v2392, %v2396
      %v2477 = vadd.f32 %v2476, %v2400
      %v2478 = vadd.f32 %v2477, %v2404
      %v2479 = vadd.f32 %v2478, %v2408
      %v2480 = vadd.f32 %v2479, %v2412
      %v2481 = vadd.f32 %v2480, %v2416
      %v2482 = vadd.f32 %v2481, %v2420
      %v2483 = vadd.f32 %v2482, %v2424
      %v2484 = vadd.f32 %v2483, %v2428
      %v2485 = vadd.f32 %v2484, %v2432
      %v2486 = vadd.f32 %v2485, %v2436
      %v2487 = vadd.f32 %v2486, %v2440
      %v2488 = vadd.f32 %v2487, %v2444
      %v2489 = vadd.f32 %v2488, %v2448
      %v2490 = vadd.f32 %v2489, %v2452
      %v2491 = vrot.slane %v2490, 4
      %v2492 = vadd.f32 %v2490, %v2491
      %v2493 = vrot.slane %v2492, 2
      %v2494 = vadd.f32 %v2492, %v2493
      %v2495 = vrot.slane %v2494, 1
      %v2496 = vadd.f32 %v2494, %v2495
      %v2497 = vadd.f32 %v2393, %v2397
      %v2498 = vadd.f32 %v2497, %v2401
      %v2499 = vadd.f32 %v2498, %v2405
      %v2500 = vadd.f32 %v2499, %v2409
      %v2501 = vadd.f32 %v2500, %v2413
      %v2502 = vadd.f32 %v2501, %v2417
      %v2503 = vadd.f32 %v2502, %v2421
      %v2504 = vadd.f32 %v2503, %v2425
      %v2505 = vadd.f32 %v2504, %v2429
      %v2506 = vadd.f32 %v2505, %v2433
      %v2507 = vadd.f32 %v2506, %v2437
      %v2508 = vadd.f32 %v2507, %v2441
      %v2509 = vadd.f32 %v2508, %v2445
      %v2510 = vadd.f32 %v2509, %v2449
      %v2511 = vadd.f32 %v2510, %v2453
      %v2512 = vrot.slane %v2511, 4
      %v2513 = vadd.f32 %v2511, %v2512
      %v2514 = vrot.slane %v2513, 2
      %v2515 = vadd.f32 %v2513, %v2514
      %v2516 = vrot.slane %v2515, 1
      %v2517 = vadd.f32 %v2515, %v2516
      %v2518 = vadd.f32 %v2394, %v2398
      %v2519 = vadd.f32 %v2518, %v2402
      %v2520 = vadd.f32 %v2519, %v2406
      %v2521 = vadd.f32 %v2520, %v2410
      %v2522 = vadd.f32 %v2521, %v2414
      %v2523 = vadd.f32 %v2522, %v2418
      %v2524 = vadd.f32 %v2523, %v2422
      %v2525 = vadd.f32 %v2524, %v2426
      %v2526 = vadd.f32 %v2525, %v2430
      %v2527 = vadd.f32 %v2526, %v2434
      %v2528 = vadd.f32 %v2527, %v2438
      %v2529 = vadd.f32 %v2528, %v2442
      %v2530 = vadd.f32 %v2529, %v2446
      %v2531 = vadd.f32 %v2530, %v2450
      %v2532 = vadd.f32 %v2531, %v2454
      %v2533 = vrot.slane %v2532, 4
      %v2534 = vadd.f32 %v2532, %v2533
      %v2535 = vrot.slane %v2534, 2
      %v2536 = vadd.f32 %v2534, %v2535
      %v2537 = vrot.slane %v2536, 1
      %v2538 = vadd.f32 %v2536, %v2537
      %v2539 = vmul.f32 %v2391, %v2215
      %v2540 = vmul.f32 %v2392, %v2216
      %v2541 = vmul.f32 %v2393, %v2217
      %v2542 = vmul.f32 %v2394, %v2218
      %v2543 = vmul.f32 %v2395, %v2219
      %v2544 = vmul.f32 %v2396, %v2220
      %v2545 = vmul.f32 %v2397, %v2221
      %v2546 = vmul.f32 %v2398, %v2222
      %v2547 = vmul.f32 %v2399, %v2223
      %v2548 = vmul.f32 %v2400, %v2224
      %v2549 = vmul.f32 %v2401, %v2225
      %v2550 = vmul.f32 %v2402, %v2226
      %v2551 = vmul.f32 %v2403, %v2227
      %v2552 = vmul.f32 %v2404, %v2228
      %v2553 = vmul.f32 %v2405, %v2229
      %v2554 = vmul.f32 %v2406, %v2230
      %v2555 = vmul.f32 %v2407, %v2231
      %v2556 = vmul.f32 %v2408, %v2232
      %v2557 = vmul.f32 %v2409, %v2233
      %v2558 = vmul.f32 %v2410, %v2234
      %v2559 = vmul.f32 %v2411, %v2235
      %v2560 = vmul.f32 %v2412, %v2236
      %v2561 = vmul.f32 %v2413, %v2237
      %v2562 = vmul.f32 %v2414, %v2238
      %v2563 = vmul.f32 %v2415, %v2239
      %v2564 = vmul.f32 %v2416, %v2240
      %v2565 = vmul.f32 %v2417, %v2241
      %v2566 = vmul.f32 %v2418, %v2242
      %v2567 = vmul.f32 %v2419, %v2243
      %v2568 = vmul.f32 %v2420, %v2244
      %v2569 = vmul.f32 %v2421, %v2245
      %v2570 = vmul.f32 %v2422, %v2246
      %v2571 = vmul.f32 %v2423, %v2247
      %v2572 = vmul.f32 %v2424, %v2248
      %v2573 = vmul.f32 %v2425, %v2249
      %v2574 = vmul.f32 %v2426, %v2250
      %v2575 = vmul.f32 %v2427, %v2251
      %v2576 = vmul.f32 %v2428, %v2252
      %v2577 = vmul.f32 %v2429, %v2253
      %v2578 = vmul.f32 %v2430, %v2254
      %v2579 = vmul.f32 %v2431, %v2255
      %v2580 = vmul.f32 %v2432, %v2256
      %v2581 = vmul.f32 %v2433, %v2257
      %v2582 = vmul.f32 %v2434, %v2258
      %v2583 = vmul.f32 %v2435, %v2259
      %v2584 = vmul.f32 %v2436, %v2260
      %v2585 = vmul.f32 %v2437, %v2261
      %v2586 = vmul.f32 %v2438, %v2262
      %v2587 = vmul.f32 %v2439, %v2263
      %v2588 = vmul.f32 %v2440, %v2264
      %v2589 = vmul.f32 %v2441, %v2265
      %v2590 = vmul.f32 %v2442, %v2266
      %v2591 = vmul.f32 %v2443, %v2267
      %v2592 = vmul.f32 %v2444, %v2268
      %v2593 = vmul.f32 %v2445, %v2269
      %v2594 = vmul.f32 %v2446, %v2270
      %v2595 = vmul.f32 %v2447, %v2271
      %v2596 = vmul.f32 %v2448, %v2272
      %v2597 = vmul.f32 %v2449, %v2273
      %v2598 = vmul.f32 %v2450, %v2274
      %v2599 = vmul.f32 %v2451, %v2275
      %v2600 = vmul.f32 %v2452, %v2276
      %v2601 = vmul.f32 %v2453, %v2277
      %v2602 = vmul.f32 %v2454, %v2278
      %v2603 = vadd.f32 %v2539, %v2543
      %v2604 = vadd.f32 %v2603, %v2547
      %v2605 = vadd.f32 %v2604, %v2551
      %v2606 = vadd.f32 %v2605, %v2555
      %v2607 = vadd.f32 %v2606, %v2559
      %v2608 = vadd.f32 %v2607, %v2563
      %v2609 = vadd.f32 %v2608, %v2567
      %v2610 = vadd.f32 %v2609, %v2571
      %v2611 = vadd.f32 %v2610, %v2575
      %v2612 = vadd.f32 %v2611, %v2579
      %v2613 = vadd.f32 %v2612, %v2583
      %v2614 = vadd.f32 %v2613, %v2587
      %v2615 = vadd.f32 %v2614, %v2591
      %v2616 = vadd.f32 %v2615, %v2595
      %v2617 = vadd.f32 %v2616, %v2599
      %v2618 = vrot.slane %v2617, 4
      %v2619 = vadd.f32 %v2617, %v2618
      %v2620 = vrot.slane %v2619, 2
      %v2621 = vadd.f32 %v2619, %v2620
      %v2622 = vrot.slane %v2621, 1
      %v2623 = vadd.f32 %v2621, %v2622
      %v2624 = vadd.f32 %v2540, %v2544
      %v2625 = vadd.f32 %v2624, %v2548
      %v2626 = vadd.f32 %v2625, %v2552
      %v2627 = vadd.f32 %v2626, %v2556
      %v2628 = vadd.f32 %v2627, %v2560
      %v2629 = vadd.f32 %v2628, %v2564
      %v2630 = vadd.f32 %v2629, %v2568
      %v2631 = vadd.f32 %v2630, %v2572
      %v2632 = vadd.f32 %v2631, %v2576
      %v2633 = vadd.f32 %v2632, %v2580
      %v2634 = vadd.f32 %v2633, %v2584
      %v2635 = vadd.f32 %v2634, %v2588
      %v2636 = vadd.f32 %v2635, %v2592
      %v2637 = vadd.f32 %v2636, %v2596
      %v2638 = vadd.f32 %v2637, %v2600
      %v2639 = vrot.slane %v2638, 4
      %v2640 = vadd.f32 %v2638, %v2639
      %v2641 = vrot.slane %v2640, 2
      %v2642 = vadd.f32 %v2640, %v2641
      %v2643 = vrot.slane %v2642, 1
      %v2644 = vadd.f32 %v2642, %v2643
      %v2645 = vadd.f32 %v2541, %v2545
      %v2646 = vadd.f32 %v2645, %v2549
      %v2647 = vadd.f32 %v2646, %v2553
      %v2648 = vadd.f32 %v2647, %v2557
      %v2649 = vadd.f32 %v2648, %v2561
      %v2650 = vadd.f32 %v2649, %v2565
      %v2651 = vadd.f32 %v2650, %v2569
      %v2652 = vadd.f32 %v2651, %v2573
      %v2653 = vadd.f32 %v2652, %v2577
      %v2654 = vadd.f32 %v2653, %v2581
      %v2655 = vadd.f32 %v2654, %v2585
      %v2656 = vadd.f32 %v2655, %v2589
      %v2657 = vadd.f32 %v2656, %v2593
      %v2658 = vadd.f32 %v2657, %v2597
      %v2659 = vadd.f32 %v2658, %v2601
      %v2660 = vrot.slane %v2659, 4
      %v2661 = vadd.f32 %v2659, %v2660
      %v2662 = vrot.slane %v2661, 2
      %v2663 = vadd.f32 %v2661, %v2662
      %v2664 = vrot.slane %v2663, 1
      %v2665 = vadd.f32 %v2663, %v2664
      %v2666 = vadd.f32 %v2542, %v2546
      %v2667 = vadd.f32 %v2666, %v2550
      %v2668 = vadd.f32 %v2667, %v2554
      %v2669 = vadd.f32 %v2668, %v2558
      %v2670 = vadd.f32 %v2669, %v2562
      %v2671 = vadd.f32 %v2670, %v2566
      %v2672 = vadd.f32 %v2671, %v2570
      %v2673 = vadd.f32 %v2672, %v2574
      %v2674 = vadd.f32 %v2673, %v2578
      %v2675 = vadd.f32 %v2674, %v2582
      %v2676 = vadd.f32 %v2675, %v2586
      %v2677 = vadd.f32 %v2676, %v2590
      %v2678 = vadd.f32 %v2677, %v2594
      %v2679 = vadd.f32 %v2678, %v2598
      %v2680 = vadd.f32 %v2679, %v2602
      %v2681 = vrot.slane %v2680, 4
      %v2682 = vadd.f32 %v2680, %v2681
      %v2683 = vrot.slane %v2682, 2
      %v2684 = vadd.f32 %v2682, %v2683
      %v2685 = vrot.slane %v2684, 1
      %v2686 = vadd.f32 %v2684, %v2685
      %vm2687 = vcmask 1040384
      %v2688 = vsel %vm2687, %v2475, %v2623
      %v2689 = vsel %vm2687, %v2496, %v2644
      %v2690 = vsel %vm2687, %v2517, %v2665
      %v2691 = vsel %vm2687, %v2538, %v2686
      %vm2692 = vcmask 1041408
      %v2693 = vsel %vm2692, %v2688, 0.0
      %v2694 = vsel %vm2692, %v2689, 0.0
      %v2695 = vsel %vm2692, %v2690, 0.0
      %v2696 = vsel %vm2692, %v2691, 0.0
      %2697 = vst [vmem:[%s392] sm:$0xff] %v2693
      %2698 = vst [vmem:[%s392 + $0x8] sm:$0xff] %v2694
      %2699 = vst [vmem:[%s392 + $0x10] sm:$0xff] %v2695
      %2700 = vst [vmem:[%s392 + $0x18] sm:$0xff] %v2696
      %v2701 = vpack.c.bf16 %v2219, %v2215
      %v2702 = vpack.c.bf16 %v2220, %v2216
      %v2703 = vpack.c.bf16 %v2221, %v2217
      %v2704 = vpack.c.bf16 %v2222, %v2218
      %v2705 = vpack.c.bf16 %v2227, %v2223
      %v2706 = vpack.c.bf16 %v2228, %v2224
      %v2707 = vpack.c.bf16 %v2229, %v2225
      %v2708 = vpack.c.bf16 %v2230, %v2226
      %v2709 = vpack.c.bf16 %v2235, %v2231
      %v2710 = vpack.c.bf16 %v2236, %v2232
      %v2711 = vpack.c.bf16 %v2237, %v2233
      %v2712 = vpack.c.bf16 %v2238, %v2234
      %v2713 = vpack.c.bf16 %v2243, %v2239
      %v2714 = vpack.c.bf16 %v2244, %v2240
      %v2715 = vpack.c.bf16 %v2245, %v2241
      %v2716 = vpack.c.bf16 %v2246, %v2242
      %v2717 = vpack.c.bf16 %v2251, %v2247
      %v2718 = vpack.c.bf16 %v2252, %v2248
      %v2719 = vpack.c.bf16 %v2253, %v2249
      %v2720 = vpack.c.bf16 %v2254, %v2250
      %v2721 = vpack.c.bf16 %v2259, %v2255
      %v2722 = vpack.c.bf16 %v2260, %v2256
      %v2723 = vpack.c.bf16 %v2261, %v2257
      %v2724 = vpack.c.bf16 %v2262, %v2258
      %v2725 = vpack.c.bf16 %v2267, %v2263
      %v2726 = vpack.c.bf16 %v2268, %v2264
      %v2727 = vpack.c.bf16 %v2269, %v2265
      %v2728 = vpack.c.bf16 %v2270, %v2266
      %v2729 = vpack.c.bf16 %v2275, %v2271
      %v2730 = vpack.c.bf16 %v2276, %v2272
      %v2731 = vpack.c.bf16 %v2277, %v2273
      %v2732 = vpack.c.bf16 %v2278, %v2274
      %v2765 = vunpack.c.l.b16 %v2701
      %v2766 = vunpack.c.l.b16 %v2702
      %v2767 = vunpack.c.l.b16 %v2703
      %v2768 = vunpack.c.l.b16 %v2704
      %v2769 = vunpack.c.h.b16 %v2701
      %v2770 = vunpack.c.h.b16 %v2702
      %v2771 = vunpack.c.h.b16 %v2703
      %v2772 = vunpack.c.h.b16 %v2704
      %v2773 = vunpack.c.l.b16 %v2705
      %v2774 = vunpack.c.l.b16 %v2706
      %v2775 = vunpack.c.l.b16 %v2707
      %v2776 = vunpack.c.l.b16 %v2708
      %v2777 = vunpack.c.h.b16 %v2705
      %v2778 = vunpack.c.h.b16 %v2706
      %v2779 = vunpack.c.h.b16 %v2707
      %v2780 = vunpack.c.h.b16 %v2708
      %v2781 = vunpack.c.l.b16 %v2709
      %v2782 = vunpack.c.l.b16 %v2710
      %v2783 = vunpack.c.l.b16 %v2711
      %v2784 = vunpack.c.l.b16 %v2712
      %v2785 = vunpack.c.h.b16 %v2709
      %v2786 = vunpack.c.h.b16 %v2710
      %v2787 = vunpack.c.h.b16 %v2711
      %v2788 = vunpack.c.h.b16 %v2712
      %v2789 = vunpack.c.l.b16 %v2713
      %v2790 = vunpack.c.l.b16 %v2714
      %v2791 = vunpack.c.l.b16 %v2715
      %v2792 = vunpack.c.l.b16 %v2716
      %v2793 = vunpack.c.h.b16 %v2713
      %v2794 = vunpack.c.h.b16 %v2714
      %v2795 = vunpack.c.h.b16 %v2715
      %v2796 = vunpack.c.h.b16 %v2716
      %v2797 = vunpack.c.l.b16 %v2717
      %v2798 = vunpack.c.l.b16 %v2718
      %v2799 = vunpack.c.l.b16 %v2719
      %v2800 = vunpack.c.l.b16 %v2720
      %v2801 = vunpack.c.h.b16 %v2717
      %v2802 = vunpack.c.h.b16 %v2718
      %v2803 = vunpack.c.h.b16 %v2719
      %v2804 = vunpack.c.h.b16 %v2720
      %v2805 = vunpack.c.l.b16 %v2721
      %v2806 = vunpack.c.l.b16 %v2722
      %v2807 = vunpack.c.l.b16 %v2723
      %v2808 = vunpack.c.l.b16 %v2724
      %v2809 = vunpack.c.h.b16 %v2721
      %v2810 = vunpack.c.h.b16 %v2722
      %v2811 = vunpack.c.h.b16 %v2723
      %v2812 = vunpack.c.h.b16 %v2724
      %v2813 = vunpack.c.l.b16 %v2725
      %v2814 = vunpack.c.l.b16 %v2726
      %v2815 = vunpack.c.l.b16 %v2727
      %v2816 = vunpack.c.l.b16 %v2728
      %v2817 = vunpack.c.h.b16 %v2725
      %v2818 = vunpack.c.h.b16 %v2726
      %v2819 = vunpack.c.h.b16 %v2727
      %v2820 = vunpack.c.h.b16 %v2728
      %v2821 = vunpack.c.l.b16 %v2729
      %v2822 = vunpack.c.l.b16 %v2730
      %v2823 = vunpack.c.l.b16 %v2731
      %v2824 = vunpack.c.l.b16 %v2732
      %v2825 = vunpack.c.h.b16 %v2729
      %v2826 = vunpack.c.h.b16 %v2730
      %v2827 = vunpack.c.h.b16 %v2731
      %v2828 = vunpack.c.h.b16 %v2732
      %v2829 = vpack.c.b16 %v2766, %v2765
      %v2830 = vpack.c.b16 %v2768, %v2767
      %v2831 = vpack.c.b16 %v2770, %v2769
      %v2832 = vpack.c.b16 %v2772, %v2771
      %v2833 = vpack.c.b16 %v2774, %v2773
      %v2834 = vpack.c.b16 %v2776, %v2775
      %v2835 = vpack.c.b16 %v2778, %v2777
      %v2836 = vpack.c.b16 %v2780, %v2779
      %v2837 = vpack.c.b16 %v2782, %v2781
      %v2838 = vpack.c.b16 %v2784, %v2783
      %v2839 = vpack.c.b16 %v2786, %v2785
      %v2840 = vpack.c.b16 %v2788, %v2787
      %v2841 = vpack.c.b16 %v2790, %v2789
      %v2842 = vpack.c.b16 %v2792, %v2791
      %v2843 = vpack.c.b16 %v2794, %v2793
      %v2844 = vpack.c.b16 %v2796, %v2795
      %v2845 = vpack.c.b16 %v2798, %v2797
      %v2846 = vpack.c.b16 %v2800, %v2799
      %v2847 = vpack.c.b16 %v2802, %v2801
      %v2848 = vpack.c.b16 %v2804, %v2803
      %v2849 = vpack.c.b16 %v2806, %v2805
      %v2850 = vpack.c.b16 %v2808, %v2807
      %v2851 = vpack.c.b16 %v2810, %v2809
      %v2852 = vpack.c.b16 %v2812, %v2811
      %v2853 = vpack.c.b16 %v2814, %v2813
      %v2854 = vpack.c.b16 %v2816, %v2815
      %v2855 = vpack.c.b16 %v2818, %v2817
      %v2856 = vpack.c.b16 %v2820, %v2819
      %v2857 = vpack.c.b16 %v2822, %v2821
      %v2858 = vpack.c.b16 %v2824, %v2823
      %v2859 = vpack.c.b16 %v2826, %v2825
      %v2860 = vpack.c.b16 %v2828, %v2827
      %2893 = vst [vmem:[%s387] sm:$0xff] %v2829
      %2894 = vst [vmem:[%s387 + $0x8] sm:$0xff] %v2830
      %2895 = vst [vmem:[%s387 + $0x10] sm:$0xff] %v2831
      %2896 = vst [vmem:[%s387 + $0x18] sm:$0xff] %v2832
      %2897 = vst [vmem:[%s387 + $0x20] sm:$0xff] %v2833
      %2898 = vst [vmem:[%s387 + $0x28] sm:$0xff] %v2834
      %2899 = vst [vmem:[%s387 + $0x30] sm:$0xff] %v2835
      %2900 = vst [vmem:[%s387 + $0x38] sm:$0xff] %v2836
      %2901 = vst [vmem:[%s387 + $0x40] sm:$0xff] %v2837
      %2902 = vst [vmem:[%s387 + $0x48] sm:$0xff] %v2838
      %2903 = vst [vmem:[%s387 + $0x50] sm:$0xff] %v2839
      %2904 = vst [vmem:[%s387 + $0x58] sm:$0xff] %v2840
      %2905 = vst [vmem:[%s387 + $0x60] sm:$0xff] %v2841
      %2906 = vst [vmem:[%s387 + $0x68] sm:$0xff] %v2842
      %2907 = vst [vmem:[%s387 + $0x70] sm:$0xff] %v2843
      %2908 = vst [vmem:[%s387 + $0x78] sm:$0xff] %v2844
      %2909 = vst [vmem:[%s387 + $0x80] sm:$0xff] %v2845
      %2910 = vst [vmem:[%s387 + $0x88] sm:$0xff] %v2846
      %2911 = vst [vmem:[%s387 + $0x90] sm:$0xff] %v2847
      %2912 = vst [vmem:[%s387 + $0x98] sm:$0xff] %v2848
      %2913 = vst [vmem:[%s387 + $0xa0] sm:$0xff] %v2849
      %2914 = vst [vmem:[%s387 + $0xa8] sm:$0xff] %v2850
      %2915 = vst [vmem:[%s387 + $0xb0] sm:$0xff] %v2851
      %2916 = vst [vmem:[%s387 + $0xb8] sm:$0xff] %v2852
      %2917 = vst [vmem:[%s387 + $0xc0] sm:$0xff] %v2853
      %2918 = vst [vmem:[%s387 + $0xc8] sm:$0xff] %v2854
      %2919 = vst [vmem:[%s387 + $0xd0] sm:$0xff] %v2855
      %2920 = vst [vmem:[%s387 + $0xd8] sm:$0xff] %v2856
      %2921 = vst [vmem:[%s387 + $0xe0] sm:$0xff] %v2857
      %2922 = vst [vmem:[%s387 + $0xe8] sm:$0xff] %v2858
      %2923 = vst [vmem:[%s387 + $0xf0] sm:$0xff] %v2859
      %2924 = vst [vmem:[%s387 + $0xf8] sm:$0xff] %v2860
      %p2925 = scmp.lt.s32.totalorder %s22, 1
      %s2926 = scalar_select %p2925, %s22, 1
      %s2927 = smul.addr %s2926, 64
      %s2928 = smul.addr %s2927, 4
      %s2929 = scalar_lea.vmem %s9, %s2928
      %p2930 = scmp.lt.s32.totalorder %s22, 1
      %s2931 = scalar_select %p2930, %s22, 1
      %s2932 = smul.addr %s2931, 4
      %s2933 = smul.addr %s2932, 8
      %s2934 = scalar_lea.vmem %s10, %s2933
      // Predicated region
      $region57: #{masked_mini_pointnet.2} parent=55 // pred_check
        %p2935 = pneg %p239
      $region58: #{masked_mini_pointnet.2} parent=55 // pred_check_branch
        %2937 = sbr.rel (%p2935) target = $region60
      $region59: #{masked_mini_pointnet.2} parent=55 // pred_region
        _
      $region60: #{masked_mini_pointnet.2} parent=55 // pred_fallthru
        _
      // Predicated region
      $region61: #{masked_mini_pointnet.2} parent=55 // pred_check
        %p2938 = pneg %p265
      $region62: #{masked_mini_pointnet.2} parent=55 // pred_check_branch
        %2940 = sbr.rel (%p2938) target = $region64
      $region63: #{masked_mini_pointnet.2} parent=55 // pred_region
        _
      $region64: #{masked_mini_pointnet.2} parent=55 // pred_fallthru
        _
    $region56: #{masked_mini_pointnet.2} parent=5 // pred_fallthru
      _
    %p2941 = scmp.le.s32.totalorder 2, %s17
    // Predicated region
    $region65: #{masked_mini_pointnet.2} parent=5 // pred_check
      %p2942 = pneg %p2941
    $region66: #{masked_mini_pointnet.2} parent=5 // pred_check_branch
      %2944 = sbr.rel (%p2942) target = $region68
    $region67: #{masked_mini_pointnet.2} parent=5 // pred_region
      %s2945 = ssub.s32 %s17, 2
      // Predicated region
      $region69: #{masked_mini_pointnet.2} parent=67 // pred_check
        %p2946 = pneg %p245
      $region70: #{masked_mini_pointnet.2} parent=67 // pred_check_branch
        %2948 = sbr.rel (%p2946) target = $region72
      $region71: #{masked_mini_pointnet.2} parent=67 // pred_region
        %p2949 = scmp.lt.s32.totalorder %s23, 1
        %s2950 = scalar_select %p2949, %s23, 1
        %s2951 = smul.addr %s2950, 64
        %s2952 = smul.addr %s2951, 4
        %s2953 = scalar_lea.vmem %s9, %s2952
      $region72: #{masked_mini_pointnet.2} parent=67 // pred_fallthru
        _
      // Predicated region
      $region73: #{masked_mini_pointnet.2} parent=67 // pred_check
        %p2954 = pneg %p271
      $region74: #{masked_mini_pointnet.2} parent=67 // pred_check_branch
        %2956 = sbr.rel (%p2954) target = $region76
      $region75: #{masked_mini_pointnet.2} parent=67 // pred_region
        %p2957 = scmp.lt.s32.totalorder %s23, 1
        %s2958 = scalar_select %p2957, %s23, 1
        %s2959 = smul.addr %s2958, 4
        %s2960 = smul.addr %s2959, 8
        %s2961 = scalar_lea.vmem %s10, %s2960
      $region76: #{masked_mini_pointnet.2} parent=67 // pred_fallthru
        _
    $region68: #{masked_mini_pointnet.2} parent=5 // pred_fallthru
      _
  $region6: #{masked_mini_pointnet.2} parent=0 // loop_footer
    %s21 = sadd.s32 1, %s17
  $region7: #{masked_mini_pointnet.2} parent=0 // loop_footer_branch
    %16 = sbr.rel target = $region3
  $region8: #{masked_mini_pointnet.2} parent=0 // loop_exit
    _

</llo_original>
